<compile_context>
chip_gen: v5e
topology: v5e:2x2
jax: 0.10.0
libtpu: 0.0.40
codegen_flags: <defaults>
</compile_context>

<pallas_src>
import functools

import jax
import jax.numpy as jnp
from jax import lax
from jax.experimental import pallas as pl
from jax.experimental.pallas import tpu as pltpu

LANE = 128


def _round_up(x, m):
    return (x + m - 1) // m * m


# ------------------------------ fused Pallas kernel ------------------------------ #

def _standard_unit_kernel(*refs, TR, Wo, kh, kw, identity_residual):
    """Fused ResNet basic block for one (batch, row-tile) grid cell.

    y_ref : (Hp, Wp, C1p)   spatially padded (and space-to-depth'd if stride>1) f32 input,
                            resident for the whole row-tile loop of this batch element.
    w1_ref: (kh*kw, C1p, Cop) bf16 conv1 weights (BN scale folded), one tap per leading idx.
    w2_ref: (9, Cop, Cop)     bf16 conv2 weights (BN scale folded).
    wp_ref: (C1p, Cop)        bf16 1x1 projection weights (BN scale folded), only if proj.
    b*_ref: (1, Cop)          f32 folded BN biases.
    o_ref : (TR, Wo, Cop)     f32 output row tile (lane-dense last dim).
    hs_ref: (TR+2, Wo+2, Cop) bf16 scratch holding conv1 output with zero borders.
    """
    if identity_residual:
        (y_ref, w1_ref, b1_ref, w2_ref, b2_ref, o_ref, hs_ref) = refs
        wp_ref = bp_ref = None
    else:
        (y_ref, w1_ref, b1_ref, w2_ref, b2_ref, wp_ref, bp_ref, o_ref, hs_ref) = refs

    i = pl.program_id(1)
    r0 = pl.multiple_of(i * TR, TR)        # first output row of this tile
    R1 = TR + 2                            # h rows needed (conv2 row halo)
    Ly = TR + kh + 1                       # input rows needed (conv1 + conv2 halo)
    C1p = y_ref.shape[-1]
    Cop = o_ref.shape[-1]

    yt = y_ref[pl.ds(r0, Ly), :, :]        # (Ly, Wp, C1p) f32, loaded once
    ytb = yt.astype(jnp.bfloat16)          # bf16 copy for MXU operands

    # ---- conv1 (+folded BN bias + ReLU): per-tap accumulated MXU matmuls ---------- #
    acc = None
    for dy in range(kh):
        for dx in range(kw):
            sl = ytb[dy:dy + R1, dx:dx + Wo, :].reshape(R1 * Wo, C1p)
            p = jnp.dot(sl, w1_ref[dy * kw + dx], preferred_element_type=jnp.float32)
            acc = p if acc is None else acc + p
    h = jnp.maximum(acc + b1_ref[...], 0.0).astype(jnp.bfloat16).reshape(R1, Wo, Cop)

    # ---- stage h in zero-bordered scratch (conv2 'same' W-padding for free) ------- #
    hs_ref[:, 0, :] = jnp.zeros((R1, Cop), jnp.bfloat16)
    hs_ref[:, Wo + 1, :] = jnp.zeros((R1, Cop), jnp.bfloat16)
    hs_ref[:, 1:Wo + 1, :] = h

    # conv2 row padding: h rows outside [0, Ho) must be zero -> only first/last tile.
    @pl.when(i == 0)
    def _():
        hs_ref[0, :, :] = jnp.zeros((Wo + 2, Cop), jnp.bfloat16)

    @pl.when(i == pl.num_programs(1) - 1)
    def _():
        hs_ref[TR + 1, :, :] = jnp.zeros((Wo + 2, Cop), jnp.bfloat16)

    # ---- conv2 (+folded BN bias): per-tap accumulated MXU matmuls ----------------- #
    acc2 = None
    for dy in range(3):
        for dx in range(3):
            sl = hs_ref[dy:dy + TR, dx:dx + Wo, :].reshape(TR * Wo, Cop)
            p = jnp.dot(sl, w2_ref[dy * 3 + dx], preferred_element_type=jnp.float32)
            acc2 = p if acc2 is None else acc2 + p
    out = acc2 + b2_ref[...]

    # ---- residual (1x1 projection, or identity), add, final ReLU ------------------ #
    if identity_residual:
        res = yt[2:2 + TR, 1:1 + Wo, :].reshape(TR * Wo, Cop)     # C1p == Cop here (f32)
    else:
        ry = ytb[2:2 + TR, 1:1 + Wo, :].reshape(TR * Wo, C1p)
        res = jnp.dot(ry, wp_ref[...], preferred_element_type=jnp.float32) + bp_ref[...]

    out = jnp.maximum(out + res, 0.0)
    o_ref[...] = out.reshape(TR, Wo, Cop).astype(o_ref.dtype)


# ----------------------- parameter prep (one-time, plain JAX) --------------------- #

def _space_to_depth(x, s):
    """(N,H,W,C) -> (N,H/s,W/s,C*s*s); channel index = (a*s + b)*C + c."""
    N, H, W, C = x.shape
    x = x.reshape(N, H // s, s, W // s, s, C)
    x = x.transpose(0, 1, 3, 2, 4, 5)
    return x.reshape(N, H // s, W // s, s * s * C)


def _s2d_conv3x3_weights(w, s):
    """Rearrange (3,3,Cin,Cout) stride-s weights into (kh,kw,s*s*Cin,Cout) stride-1
    weights over the space-to-depth input (tap index dy corresponds to offset dy-1)."""
    if s == 1:
        return w
    K, _, Cin, Cout = w.shape
    kh = kw = 2
    wt = jnp.zeros((kh, kw, s, s, Cin, Cout), w.dtype)
    for ky in range(K):
        for kx in range(K):
            dp = (ky - 1) // s
            a = (ky - 1) - dp * s
            dq = (kx - 1) // s
            b = (kx - 1) - dq * s
            wt = wt.at[dp + 1, dq + 1, a, b].set(w[ky, kx])
    return wt.reshape(kh, kw, s * s * Cin, Cout)


def _s2d_proj_weights(wp, s):
    """(1,1,Cin,Cout) stride-s 1x1 weights -> (s*s*Cin, Cout) over the s2d input."""
    Cin, Cout = wp.shape[-2], wp.shape[-1]
    w = wp.reshape(Cin, Cout)
    if s == 1:
        return w
    z = jnp.zeros((s * s, Cin, Cout), w.dtype)
    z = z.at[0].set(w)                                       # only phase (a=0, b=0)
    return z.reshape(s * s * Cin, Cout)


def fold_bn(gamma, beta, mean, var, eps=1e-5):
    scale = gamma / jnp.sqrt(var + eps)
    bias = beta - mean * scale
    return scale.reshape(1, -1), bias.reshape(1, -1)


def prepare_unit_params(params, stride):
    """Fold BN scales into weights, pad to lane width, cast to bf16 (done once)."""
    s = stride
    assert s in (1, 2)
    w1 = params["w1"]
    Cin, Cout = w1.shape[2], w1.shape[3]
    kh = kw = 3 if s == 1 else 2
    C1 = Cin * s * s if s > 1 else Cin
    C1p, Cop = _round_up(C1, LANE), _round_up(Cout, LANE)

    def padv(v):  # (1, Cout) -> (1, Cop)
        return jnp.pad(v.reshape(1, -1), ((0, 0), (0, Cop - Cout))).astype(jnp.float32)

    # conv1: s2d-rearrange, fold BN scale, pad, flatten taps, bf16
    w1t = _s2d_conv3x3_weights(w1, s) * params["scale1"].reshape(1, 1, 1, -1)
    w1t = jnp.pad(w1t, ((0, 0), (0, 0), (0, C1p - C1), (0, Cop - Cout)))
    w1f = w1t.reshape(kh * kw, C1p, Cop).astype(jnp.bfloat16)

    # conv2: fold BN scale, pad, flatten taps, bf16
    w2t = params["w2"] * params["scale2"].reshape(1, 1, 1, -1)
    w2t = jnp.pad(w2t, ((0, 0), (0, 0), (0, Cop - Cout), (0, Cop - Cout)))
    w2f = w2t.reshape(9, Cop, Cop).astype(jnp.bfloat16)

    prep = dict(w1f=w1f, b1=padv(params["bias1"]),
                w2f=w2f, b2=padv(params["bias2"]),
                kh=kh, kw=kw, C1p=C1p, Cop=Cop, Cout=Cout,
                identity_residual=not params["use_projection"])

    if params["use_projection"]:
        wp = _s2d_proj_weights(params["wp"], s) * params["scale_p"].reshape(1, -1)
        wpf = jnp.pad(wp, ((0, C1p - C1), (0, Cop - Cout))).astype(jnp.bfloat16)
        prep.update(wpf=wpf, bp=padv(params["bias_p"]))
    else:
        assert s == 1 and Cin == Cout
    return prep


# ---------------------------------- forward --------------------------------------- #

def _pick_row_tile(Ho, Wo):
    """Smallest divisor of Ho giving an MXU-friendly M (>=256 rows) per tile; else Ho."""
    target = max(8, -(-256 // Wo))
    for tr in range(1, Ho + 1):
        if Ho % tr == 0 and tr >= target:
            return tr
    return Ho


def standard_unit_forward(x_nchw, prep, *, stride, row_tile=None):
    s = stride
    x = jnp.transpose(x_nchw, (0, 2, 3, 1)).astype(jnp.float32)   # NCHW -> NHWC
    N, H, W, _ = x.shape
    assert H % s == 0 and W % s == 0
    Ho, Wo = H // s, W // s
    kh, kw = prep["kh"], prep["kw"]
    C1p, Cop = prep["C1p"], prep["Cop"]
    identity = prep["identity_residual"]

    y = x if s == 1 else _space_to_depth(x, s)                    # (N, Ho, Wo, C1)
    C1 = y.shape[-1]
    # one pass: spatial halo (for both convs' row tiles) + lane padding of channels
    y = jnp.pad(y, ((0, 0), (2, kh - 1), (1, kw - 2), (0, C1p - C1)))
    Hp, Wp = Ho + kh + 1, Wo + kw - 1

    TR = row_tile if row_tile is not None else _pick_row_tile(Ho, Wo)
    assert Ho % TR == 0
    RT = Ho // TR

    kern = functools.partial(_standard_unit_kernel, TR=TR, Wo=Wo, kh=kh, kw=kw,
                             identity_residual=identity)

    def build(buffer_once):
        # Constant-index operands (weights/biases): single-buffered when supported —
        # their index_map never changes so double-buffering them is pure VMEM waste.
        pm = pl.Buffered(1) if buffer_once else None

        def const_spec(shape):
            nd = len(shape)
            imap = lambda n, i, _nd=nd: (0,) * _nd
            if pm is None:
                return pl.BlockSpec(shape, imap)
            return pl.BlockSpec(shape, imap, pipeline_mode=pm)

        in_specs = [
            # full padded image per batch element; constant along the row-tile axis so it
            # is fetched once per batch element and stays resident in VMEM.
            pl.BlockSpec((None, Hp, Wp, C1p), lambda n, i: (n, 0, 0, 0)),
            const_spec(prep["w1f"].shape), const_spec(prep["b1"].shape),
            const_spec(prep["w2f"].shape), const_spec(prep["b2"].shape),
        ]
        operands = [y, prep["w1f"], prep["b1"], prep["w2f"], prep["b2"]]
        if not identity:
            in_specs += [const_spec(prep["wpf"].shape), const_spec(prep["bp"].shape)]
            operands += [prep["wpf"], prep["bp"]]

        call = pl.pallas_call(
            kern,
            out_shape=jax.ShapeDtypeStruct((N, Ho, Wo, Cop), jnp.float32),
            grid=(N, RT),
            in_specs=in_specs,
            out_specs=pl.BlockSpec((None, TR, Wo, Cop), lambda n, i: (n, i, 0, 0)),
            scratch_shapes=[pltpu.VMEM((TR + 2, Wo + 2, Cop), jnp.bfloat16)],
            compiler_params=pltpu.CompilerParams(
                # no cross-iteration carry on either axis -> both parallel (2 TCs on v7x)
                dimension_semantics=("parallel", "parallel"),
                vmem_limit_bytes=64 * 1024 * 1024),
        )
        return call(*operands)

    try:
        out = build(True)
    except Exception:
        # fall back if this JAX build rejects pipeline_mode=pl.Buffered(1)
        out = build(False)

    out = out[..., :prep["Cout"]]                                 # drop lane padding
    return jnp.transpose(out, (0, 3, 1, 2))                       # NHWC -> NCHW


# ----------------------------- params / reference --------------------------------- #

def init_standard_unit_params(key, in_channels, out_channels, stride):
    use_projection = (in_channels != out_channels) or (stride != 1)
    ks = jax.random.split(key, 16)

    def bn(i, c):
        gamma = 1.0 + 0.1 * jax.random.normal(ks[i], (c,), jnp.float32)
        beta = 0.1 * jax.random.normal(ks[i + 1], (c,), jnp.float32)
        mean = 0.05 * jax.random.normal(ks[i + 2], (c,), jnp.float32)
        var = 1.0 + 0.1 * jax.random.uniform(ks[i + 3], (c,), jnp.float32)
        return fold_bn(gamma, beta, mean, var)

    p = {"use_projection": use_projection}
    p["w1"] = 0.1 * jax.random.normal(ks[0], (3, 3, in_channels, out_channels), jnp.float32)
    p["scale1"], p["bias1"] = bn(1, out_channels)
    p["w2"] = 0.1 * jax.random.normal(ks[5], (3, 3, out_channels, out_channels), jnp.float32)
    p["scale2"], p["bias2"] = bn(6, out_channels)
    if use_projection:
        p["wp"] = 0.1 * jax.random.normal(ks[10], (1, 1, in_channels, out_channels), jnp.float32)
        p["scale_p"], p["bias_p"] = bn(11, out_channels)
    return p


def _ref_conv_bn(x, w, scale, bias, stride, pad, relu):
    y = lax.conv_general_dilated(x, w, (stride, stride), ((pad, pad), (pad, pad)),
                                 dimension_numbers=("NHWC", "HWIO", "NHWC"))
    y = y * scale.reshape(1, 1, 1, -1) + bias.reshape(1, 1, 1, -1)
    return jnp.maximum(y, 0.0) if relu else y


def standard_unit_reference(x_nchw, params, *, stride):
    x = jnp.transpose(x_nchw, (0, 2, 3, 1))
    if params["use_projection"]:
        residual = _ref_conv_bn(x, params["wp"], params["scale_p"], params["bias_p"],
                                stride, 0, False)
    else:
        residual = x
    h = _ref_conv_bn(x, params["w1"], params["scale1"], params["bias1"], stride, 1, True)
    y = _ref_conv_bn(h, params["w2"], params["scale2"], params["bias2"], 1, 1, False)
    y = jnp.maximum(y + residual, 0.0)
    return jnp.transpose(y, (0, 3, 1, 2))


# ------------------------------------ main ----------------------------------------- #

if __name__ == "__main__":
    key = jax.random.PRNGKey(0)

    # bf16 MXU operands vs f32 reference -> loosened tolerance
    ATOL, RTOL = 1e-1, 1e-1

    # Case 1: projection block (in != out, stride 2) -- strided path, multi-tile grid with
    # interior row tiles (exercises the first/last-tile-only halo masking).
    in_c, out_c, stride = 4, 8, 2
    k1, k2, key = jax.random.split(key, 3)
    params = init_standard_unit_params(k1, in_c, out_c, stride)
    x = jax.random.normal(k2, (2, in_c, 16, 16), jnp.float32)      # NCHW
    prep = prepare_unit_params(params, stride)
    out = jax.block_until_ready(standard_unit_forward(x, prep, stride=stride, row_tile=2))
    ref = jax.block_until_ready(standard_unit_reference(x, params, stride=stride))
    assert out.shape == (2, out_c, 8, 8), out.shape
    err = float(jnp.max(jnp.abs(out - ref)))
    assert jnp.allclose(out, ref, atol=ATOL, rtol=RTOL), err

    # Case 2: identity block (in == out, stride 1) -- no-projection path, default row tile.
    in_c2 = out_c2 = 8
    k3, k4, key = jax.random.split(key, 3)
    params2 = init_standard_unit_params(k3, in_c2, out_c2, 1)
    x2 = jax.random.normal(k4, (2, in_c2, 16, 16), jnp.float32)
    prep2 = prepare_unit_params(params2, 1)
    out2 = jax.block_until_ready(standard_unit_forward(x2, prep2, stride=1))
    ref2 = jax.block_until_ready(standard_unit_reference(x2, params2, stride=1))
    assert out2.shape == (2, out_c2, 16, 16), out2.shape
    err2 = float(jnp.max(jnp.abs(out2 - ref2)))
    assert jnp.allclose(out2, ref2, atol=ATOL, rtol=RTOL), err2

    print("KERNEL_OK")
</pallas_src>

<mosaic_0001>
module attributes {stable_mosaic.version = 11 : i64} {
  func.func @_standard_unit_kernel(%arg0: i32, %arg1: i32, %arg2: memref<1x11x9x128xf32, #tpu.memory_space<vmem>>, %arg3: memref<4x128x128xbf16, #tpu.memory_space<vmem>>, %arg4: memref<1x128xf32, #tpu.memory_space<vmem>>, %arg5: memref<9x128x128xbf16, #tpu.memory_space<vmem>>, %arg6: memref<1x128xf32, #tpu.memory_space<vmem>>, %arg7: memref<128x128xbf16, #tpu.memory_space<vmem>>, %arg8: memref<1x128xf32, #tpu.memory_space<vmem>>, %arg9: memref<1x2x8x128xf32, #tpu.memory_space<vmem>>, %arg10: memref<4x10x128xbf16, #tpu.memory_space<vmem>>) attributes {dimension_semantics = [#tpu.dimension_semantics<parallel>, #tpu.dimension_semantics<parallel>], iteration_bounds = array<i64: 2, 4>, scalar_prefetch = 0 : i64, scratch_operands = 1 : i64, tpu.core_type = #tpu.core_type<tc>, window_params = [{transform_indices = @transform_0, window_bounds = array<i64: 1, 11, 9, 128>}, {pipeline_mode = #tpu.pipeline_mode<synchronous>, transform_indices = @transform_1, window_bounds = array<i64: 4, 128, 128>}, {pipeline_mode = #tpu.pipeline_mode<synchronous>, transform_indices = @transform_2, window_bounds = array<i64: 1, 128>}, {pipeline_mode = #tpu.pipeline_mode<synchronous>, transform_indices = @transform_3, window_bounds = array<i64: 9, 128, 128>}, {pipeline_mode = #tpu.pipeline_mode<synchronous>, transform_indices = @transform_4, window_bounds = array<i64: 1, 128>}, {pipeline_mode = #tpu.pipeline_mode<synchronous>, transform_indices = @transform_5, window_bounds = array<i64: 128, 128>}, {pipeline_mode = #tpu.pipeline_mode<synchronous>, transform_indices = @transform_6, window_bounds = array<i64: 1, 128>}, {transform_indices = @transform_7, window_bounds = array<i64: 1, 2, 8, 128>}]} {
    %c2_i32 = arith.constant 2 : i32
    %0 = arith.muli %arg1, %c2_i32 : i32
    %1 = tpu.assume_multiple %0, 2 : i32
    %c0 = arith.constant 0 : index
    %2 = arith.index_cast %1 : i32 to index
    %c0_0 = arith.constant 0 : index
    %c0_1 = arith.constant 0 : index
    %3 = vector.load %arg2[%c0, %2, %c0_0, %c0_1] : memref<1x11x9x128xf32, #tpu.memory_space<vmem>>, vector<1x5x9x128xf32>
    %4 = vector.shape_cast %3 : vector<1x5x9x128xf32> to vector<5x9x128xf32>
    %5 = arith.truncf %4 : vector<5x9x128xf32> to vector<5x9x128xbf16>
    %6 = vector.extract_strided_slice %5 {offsets = [0, 0, 0], sizes = [4, 8, 128], strides = [1, 1, 1]} : vector<5x9x128xbf16> to vector<4x8x128xbf16>
    %7 = vector.shape_cast %6 : vector<4x8x128xbf16> to vector<32x128xbf16>
    %c0_2 = arith.constant 0 : index
    %c0_3 = arith.constant 0 : index
    %c0_4 = arith.constant 0 : index
    %8 = vector.load %arg3[%c0_2, %c0_3, %c0_4] : memref<4x128x128xbf16, #tpu.memory_space<vmem>>, vector<1x128x128xbf16>
    %9 = vector.shape_cast %8 : vector<1x128x128xbf16> to vector<128x128xbf16>
    %cst = arith.constant dense<0.000000e+00> : vector<32x128xf32>
    %10 = tpu.matmul %7, %9, %cst {dimension_numbers = #tpu.dot_dimension_numbers<[1], [0], [0], [1], [0, 0, 1, 1], [], []>} : vector<32x128xbf16>, vector<128x128xbf16>, vector<32x128xf32> -> vector<32x128xf32>
    %11 = vector.extract_strided_slice %5 {offsets = [0, 1, 0], sizes = [4, 8, 128], strides = [1, 1, 1]} : vector<5x9x128xbf16> to vector<4x8x128xbf16>
    %12 = vector.shape_cast %11 : vector<4x8x128xbf16> to vector<32x128xbf16>
    %c1 = arith.constant 1 : index
    %c0_5 = arith.constant 0 : index
    %c0_6 = arith.constant 0 : index
    %13 = vector.load %arg3[%c1, %c0_5, %c0_6] : memref<4x128x128xbf16, #tpu.memory_space<vmem>>, vector<1x128x128xbf16>
    %14 = vector.shape_cast %13 : vector<1x128x128xbf16> to vector<128x128xbf16>
    %cst_7 = arith.constant dense<0.000000e+00> : vector<32x128xf32>
    %15 = tpu.matmul %12, %14, %cst_7 {dimension_numbers = #tpu.dot_dimension_numbers<[1], [0], [0], [1], [0, 0, 1, 1], [], []>} : vector<32x128xbf16>, vector<128x128xbf16>, vector<32x128xf32> -> vector<32x128xf32>
    %16 = arith.addf %10, %15 : vector<32x128xf32>
    %17 = vector.extract_strided_slice %5 {offsets = [1, 0, 0], sizes = [4, 8, 128], strides = [1, 1, 1]} : vector<5x9x128xbf16> to vector<4x8x128xbf16>
    %18 = vector.shape_cast %17 : vector<4x8x128xbf16> to vector<32x128xbf16>
    %c2 = arith.constant 2 : index
    %c0_8 = arith.constant 0 : index
    %c0_9 = arith.constant 0 : index
    %19 = vector.load %arg3[%c2, %c0_8, %c0_9] : memref<4x128x128xbf16, #tpu.memory_space<vmem>>, vector<1x128x128xbf16>
    %20 = vector.shape_cast %19 : vector<1x128x128xbf16> to vector<128x128xbf16>
    %cst_10 = arith.constant dense<0.000000e+00> : vector<32x128xf32>
    %21 = tpu.matmul %18, %20, %cst_10 {dimension_numbers = #tpu.dot_dimension_numbers<[1], [0], [0], [1], [0, 0, 1, 1], [], []>} : vector<32x128xbf16>, vector<128x128xbf16>, vector<32x128xf32> -> vector<32x128xf32>
    %22 = arith.addf %16, %21 : vector<32x128xf32>
    %23 = vector.extract_strided_slice %5 {offsets = [1, 1, 0], sizes = [4, 8, 128], strides = [1, 1, 1]} : vector<5x9x128xbf16> to vector<4x8x128xbf16>
    %24 = vector.shape_cast %23 : vector<4x8x128xbf16> to vector<32x128xbf16>
    %c3 = arith.constant 3 : index
    %c0_11 = arith.constant 0 : index
    %c0_12 = arith.constant 0 : index
    %25 = vector.load %arg3[%c3, %c0_11, %c0_12] : memref<4x128x128xbf16, #tpu.memory_space<vmem>>, vector<1x128x128xbf16>
    %26 = vector.shape_cast %25 : vector<1x128x128xbf16> to vector<128x128xbf16>
    %cst_13 = arith.constant dense<0.000000e+00> : vector<32x128xf32>
    %27 = tpu.matmul %24, %26, %cst_13 {dimension_numbers = #tpu.dot_dimension_numbers<[1], [0], [0], [1], [0, 0, 1, 1], [], []>} : vector<32x128xbf16>, vector<128x128xbf16>, vector<32x128xf32> -> vector<32x128xf32>
    %28 = arith.addf %22, %27 : vector<32x128xf32>
    %c0_14 = arith.constant 0 : index
    %c0_15 = arith.constant 0 : index
    %29 = vector.load %arg4[%c0_14, %c0_15] : memref<1x128xf32, #tpu.memory_space<vmem>>, vector<1x128xf32>
    %30 = vector.broadcast %29 : vector<1x128xf32> to vector<32x128xf32>
    %31 = arith.addf %28, %30 : vector<32x128xf32>
    %cst_16 = arith.constant 0.000000e+00 : f32
    %32 = vector.broadcast %cst_16 : f32 to vector<32x128xf32>
    %33 = arith.maximumf %31, %32 : vector<32x128xf32>
    %34 = arith.truncf %33 : vector<32x128xf32> to vector<32x128xbf16>
    %35 = vector.shape_cast %34 : vector<32x128xbf16> to vector<4x8x128xbf16>
    %cst_17 = arith.constant 0.000000e+00 : bf16
    %36 = vector.broadcast %cst_17 : bf16 to vector<4x128xbf16>
    %c0_18 = arith.constant 0 : index
    %c0_19 = arith.constant 0 : index
    %c0_20 = arith.constant 0 : index
    %37 = vector.load %arg10[%c0_18, %c0_19, %c0_20] : memref<4x10x128xbf16, #tpu.memory_space<vmem>>, vector<4x1x128xbf16>
    %38 = vector.shape_cast %37 : vector<4x1x128xbf16> to vector<4x128xbf16>
    %39 = vector.shape_cast %36 : vector<4x128xbf16> to vector<4x1x128xbf16>
    tpu.vector_store %arg10[%c0_18, %c0_19, %c0_20], %39 {strides = array<i32>} : memref<4x10x128xbf16, #tpu.memory_space<vmem>>, vector<4x1x128xbf16>,
    %cst_21 = arith.constant 0.000000e+00 : bf16
    %40 = vector.broadcast %cst_21 : bf16 to vector<4x128xbf16>
    %c0_22 = arith.constant 0 : index
    %c9 = arith.constant 9 : index
    %c0_23 = arith.constant 0 : index
    %41 = vector.load %arg10[%c0_22, %c9, %c0_23] : memref<4x10x128xbf16, #tpu.memory_space<vmem>>, vector<4x1x128xbf16>
    %42 = vector.shape_cast %41 : vector<4x1x128xbf16> to vector<4x128xbf16>
    %43 = vector.shape_cast %40 : vector<4x128xbf16> to vector<4x1x128xbf16>
    tpu.vector_store %arg10[%c0_22, %c9, %c0_23], %43 {strides = array<i32>} : memref<4x10x128xbf16, #tpu.memory_space<vmem>>, vector<4x1x128xbf16>,
    %c0_24 = arith.constant 0 : index
    %c1_25 = arith.constant 1 : index
    %c0_26 = arith.constant 0 : index
    %44 = vector.load %arg10[%c0_24, %c1_25, %c0_26] : memref<4x10x128xbf16, #tpu.memory_space<vmem>>, vector<4x8x128xbf16>
    tpu.vector_store %arg10[%c0_24, %c1_25, %c0_26], %35 {strides = array<i32>} : memref<4x10x128xbf16, #tpu.memory_space<vmem>>, vector<4x8x128xbf16>,
    %c0_i32 = arith.constant 0 : i32
    %45 = arith.cmpi eq, %arg1, %c0_i32 : i32
    %46 = arith.extui %45 : i1 to i32
    %c0_i32_27 = arith.constant 0 : i32
    %47 = arith.cmpi ne, %46, %c0_i32_27 : i32
    scf.if %47 {
      %cst_99 = arith.constant 0.000000e+00 : bf16
      %121 = vector.broadcast %cst_99 : bf16 to vector<10x128xbf16>
      %c0_100 = arith.constant 0 : index
      %c0_101 = arith.constant 0 : index
      %c0_102 = arith.constant 0 : index
      %122 = vector.load %arg10[%c0_100, %c0_101, %c0_102] : memref<4x10x128xbf16, #tpu.memory_space<vmem>>, vector<1x10x128xbf16>
      %123 = vector.shape_cast %122 : vector<1x10x128xbf16> to vector<10x128xbf16>
      %124 = vector.shape_cast %121 : vector<10x128xbf16> to vector<1x10x128xbf16>
      tpu.vector_store %arg10[%c0_100, %c0_101, %c0_102], %124 {strides = array<i32>} : memref<4x10x128xbf16, #tpu.memory_space<vmem>>, vector<1x10x128xbf16>,
    } else {
    }
    %c3_i32 = arith.constant 3 : i32
    %48 = arith.cmpi eq, %arg1, %c3_i32 : i32
    %49 = arith.extui %48 : i1 to i32
    %c0_i32_28 = arith.constant 0 : i32
    %50 = arith.cmpi ne, %49, %c0_i32_28 : i32
    scf.if %50 {
      %cst_99 = arith.constant 0.000000e+00 : bf16
      %121 = vector.broadcast %cst_99 : bf16 to vector<10x128xbf16>
      %c3_100 = arith.constant 3 : index
      %c0_101 = arith.constant 0 : index
      %c0_102 = arith.constant 0 : index
      %122 = vector.load %arg10[%c3_100, %c0_101, %c0_102] : memref<4x10x128xbf16, #tpu.memory_space<vmem>>, vector<1x10x128xbf16>
      %123 = vector.shape_cast %122 : vector<1x10x128xbf16> to vector<10x128xbf16>
      %124 = vector.shape_cast %121 : vector<10x128xbf16> to vector<1x10x128xbf16>
      tpu.vector_store %arg10[%c3_100, %c0_101, %c0_102], %124 {strides = array<i32>} : memref<4x10x128xbf16, #tpu.memory_space<vmem>>, vector<1x10x128xbf16>,
    } else {
    }
    %c0_29 = arith.constant 0 : index
    %c0_30 = arith.constant 0 : index
    %c0_31 = arith.constant 0 : index
    %51 = vector.load %arg10[%c0_29, %c0_30, %c0_31] : memref<4x10x128xbf16, #tpu.memory_space<vmem>>, vector<2x8x128xbf16>
    %52 = vector.shape_cast %51 : vector<2x8x128xbf16> to vector<16x128xbf16>
    %c0_32 = arith.constant 0 : index
    %c0_33 = arith.constant 0 : index
    %c0_34 = arith.constant 0 : index
    %53 = vector.load %arg5[%c0_32, %c0_33, %c0_34] : memref<9x128x128xbf16, #tpu.memory_space<vmem>>, vector<1x128x128xbf16>
    %54 = vector.shape_cast %53 : vector<1x128x128xbf16> to vector<128x128xbf16>
    %cst_35 = arith.constant dense<0.000000e+00> : vector<16x128xf32>
    %55 = tpu.matmul %52, %54, %cst_35 {dimension_numbers = #tpu.dot_dimension_numbers<[1], [0], [0], [1], [0, 0, 1, 1], [], []>} : vector<16x128xbf16>, vector<128x128xbf16>, vector<16x128xf32> -> vector<16x128xf32>
    %c0_36 = arith.constant 0 : index
    %c1_37 = arith.constant 1 : index
    %c0_38 = arith.constant 0 : index
    %56 = vector.load %arg10[%c0_36, %c1_37, %c0_38] : memref<4x10x128xbf16, #tpu.memory_space<vmem>>, vector<2x8x128xbf16>
    %57 = vector.shape_cast %56 : vector<2x8x128xbf16> to vector<16x128xbf16>
    %c1_39 = arith.constant 1 : index
    %c0_40 = arith.constant 0 : index
    %c0_41 = arith.constant 0 : index
    %58 = vector.load %arg5[%c1_39, %c0_40, %c0_41] : memref<9x128x128xbf16, #tpu.memory_space<vmem>>, vector<1x128x128xbf16>
    %59 = vector.shape_cast %58 : vector<1x128x128xbf16> to vector<128x128xbf16>
    %cst_42 = arith.constant dense<0.000000e+00> : vector<16x128xf32>
    %60 = tpu.matmul %57, %59, %cst_42 {dimension_numbers = #tpu.dot_dimension_numbers<[1], [0], [0], [1], [0, 0, 1, 1], [], []>} : vector<16x128xbf16>, vector<128x128xbf16>, vector<16x128xf32> -> vector<16x128xf32>
    %61 = arith.addf %55, %60 : vector<16x128xf32>
    %c0_43 = arith.constant 0 : index
    %c2_44 = arith.constant 2 : index
    %c0_45 = arith.constant 0 : index
    %62 = vector.load %arg10[%c0_43, %c2_44, %c0_45] : memref<4x10x128xbf16, #tpu.memory_space<vmem>>, vector<2x8x128xbf16>
    %63 = vector.shape_cast %62 : vector<2x8x128xbf16> to vector<16x128xbf16>
    %c2_46 = arith.constant 2 : index
    %c0_47 = arith.constant 0 : index
    %c0_48 = arith.constant 0 : index
    %64 = vector.load %arg5[%c2_46, %c0_47, %c0_48] : memref<9x128x128xbf16, #tpu.memory_space<vmem>>, vector<1x128x128xbf16>
    %65 = vector.shape_cast %64 : vector<1x128x128xbf16> to vector<128x128xbf16>
    %cst_49 = arith.constant dense<0.000000e+00> : vector<16x128xf32>
    %66 = tpu.matmul %63, %65, %cst_49 {dimension_numbers = #tpu.dot_dimension_numbers<[1], [0], [0], [1], [0, 0, 1, 1], [], []>} : vector<16x128xbf16>, vector<128x128xbf16>, vector<16x128xf32> -> vector<16x128xf32>
    %67 = arith.addf %61, %66 : vector<16x128xf32>
    %c1_50 = arith.constant 1 : index
    %c0_51 = arith.constant 0 : index
    %c0_52 = arith.constant 0 : index
    %68 = vector.load %arg10[%c1_50, %c0_51, %c0_52] : memref<4x10x128xbf16, #tpu.memory_space<vmem>>, vector<2x8x128xbf16>
    %69 = vector.shape_cast %68 : vector<2x8x128xbf16> to vector<16x128xbf16>
    %c3_53 = arith.constant 3 : index
    %c0_54 = arith.constant 0 : index
    %c0_55 = arith.constant 0 : index
    %70 = vector.load %arg5[%c3_53, %c0_54, %c0_55] : memref<9x128x128xbf16, #tpu.memory_space<vmem>>, vector<1x128x128xbf16>
    %71 = vector.shape_cast %70 : vector<1x128x128xbf16> to vector<128x128xbf16>
    %cst_56 = arith.constant dense<0.000000e+00> : vector<16x128xf32>
    %72 = tpu.matmul %69, %71, %cst_56 {dimension_numbers = #tpu.dot_dimension_numbers<[1], [0], [0], [1], [0, 0, 1, 1], [], []>} : vector<16x128xbf16>, vector<128x128xbf16>, vector<16x128xf32> -> vector<16x128xf32>
    %73 = arith.addf %67, %72 : vector<16x128xf32>
    %c1_57 = arith.constant 1 : index
    %c1_58 = arith.constant 1 : index
    %c0_59 = arith.constant 0 : index
    %74 = vector.load %arg10[%c1_57, %c1_58, %c0_59] : memref<4x10x128xbf16, #tpu.memory_space<vmem>>, vector<2x8x128xbf16>
    %75 = vector.shape_cast %74 : vector<2x8x128xbf16> to vector<16x128xbf16>
    %c4 = arith.constant 4 : index
    %c0_60 = arith.constant 0 : index
    %c0_61 = arith.constant 0 : index
    %76 = vector.load %arg5[%c4, %c0_60, %c0_61] : memref<9x128x128xbf16, #tpu.memory_space<vmem>>, vector<1x128x128xbf16>
    %77 = vector.shape_cast %76 : vector<1x128x128xbf16> to vector<128x128xbf16>
    %cst_62 = arith.constant dense<0.000000e+00> : vector<16x128xf32>
    %78 = tpu.matmul %75, %77, %cst_62 {dimension_numbers = #tpu.dot_dimension_numbers<[1], [0], [0], [1], [0, 0, 1, 1], [], []>} : vector<16x128xbf16>, vector<128x128xbf16>, vector<16x128xf32> -> vector<16x128xf32>
    %79 = arith.addf %73, %78 : vector<16x128xf32>
    %c1_63 = arith.constant 1 : index
    %c2_64 = arith.constant 2 : index
    %c0_65 = arith.constant 0 : index
    %80 = vector.load %arg10[%c1_63, %c2_64, %c0_65] : memref<4x10x128xbf16, #tpu.memory_space<vmem>>, vector<2x8x128xbf16>
    %81 = vector.shape_cast %80 : vector<2x8x128xbf16> to vector<16x128xbf16>
    %c5 = arith.constant 5 : index
    %c0_66 = arith.constant 0 : index
    %c0_67 = arith.constant 0 : index
    %82 = vector.load %arg5[%c5, %c0_66, %c0_67] : memref<9x128x128xbf16, #tpu.memory_space<vmem>>, vector<1x128x128xbf16>
    %83 = vector.shape_cast %82 : vector<1x128x128xbf16> to vector<128x128xbf16>
    %cst_68 = arith.constant dense<0.000000e+00> : vector<16x128xf32>
    %84 = tpu.matmul %81, %83, %cst_68 {dimension_numbers = #tpu.dot_dimension_numbers<[1], [0], [0], [1], [0, 0, 1, 1], [], []>} : vector<16x128xbf16>, vector<128x128xbf16>, vector<16x128xf32> -> vector<16x128xf32>
    %85 = arith.addf %79, %84 : vector<16x128xf32>
    %c2_69 = arith.constant 2 : index
    %c0_70 = arith.constant 0 : index
    %c0_71 = arith.constant 0 : index
    %86 = vector.load %arg10[%c2_69, %c0_70, %c0_71] : memref<4x10x128xbf16, #tpu.memory_space<vmem>>, vector<2x8x128xbf16>
    %87 = vector.shape_cast %86 : vector<2x8x128xbf16> to vector<16x128xbf16>
    %c6 = arith.constant 6 : index
    %c0_72 = arith.constant 0 : index
    %c0_73 = arith.constant 0 : index
    %88 = vector.load %arg5[%c6, %c0_72, %c0_73] : memref<9x128x128xbf16, #tpu.memory_space<vmem>>, vector<1x128x128xbf16>
    %89 = vector.shape_cast %88 : vector<1x128x128xbf16> to vector<128x128xbf16>
    %cst_74 = arith.constant dense<0.000000e+00> : vector<16x128xf32>
    %90 = tpu.matmul %87, %89, %cst_74 {dimension_numbers = #tpu.dot_dimension_numbers<[1], [0], [0], [1], [0, 0, 1, 1], [], []>} : vector<16x128xbf16>, vector<128x128xbf16>, vector<16x128xf32> -> vector<16x128xf32>
    %91 = arith.addf %85, %90 : vector<16x128xf32>
    %c2_75 = arith.constant 2 : index
    %c1_76 = arith.constant 1 : index
    %c0_77 = arith.constant 0 : index
    %92 = vector.load %arg10[%c2_75, %c1_76, %c0_77] : memref<4x10x128xbf16, #tpu.memory_space<vmem>>, vector<2x8x128xbf16>
    %93 = vector.shape_cast %92 : vector<2x8x128xbf16> to vector<16x128xbf16>
    %c7 = arith.constant 7 : index
    %c0_78 = arith.constant 0 : index
    %c0_79 = arith.constant 0 : index
    %94 = vector.load %arg5[%c7, %c0_78, %c0_79] : memref<9x128x128xbf16, #tpu.memory_space<vmem>>, vector<1x128x128xbf16>
    %95 = vector.shape_cast %94 : vector<1x128x128xbf16> to vector<128x128xbf16>
    %cst_80 = arith.constant dense<0.000000e+00> : vector<16x128xf32>
    %96 = tpu.matmul %93, %95, %cst_80 {dimension_numbers = #tpu.dot_dimension_numbers<[1], [0], [0], [1], [0, 0, 1, 1], [], []>} : vector<16x128xbf16>, vector<128x128xbf16>, vector<16x128xf32> -> vector<16x128xf32>
    %97 = arith.addf %91, %96 : vector<16x128xf32>
    %c2_81 = arith.constant 2 : index
    %c2_82 = arith.constant 2 : index
    %c0_83 = arith.constant 0 : index
    %98 = vector.load %arg10[%c2_81, %c2_82, %c0_83] : memref<4x10x128xbf16, #tpu.memory_space<vmem>>, vector<2x8x128xbf16>
    %99 = vector.shape_cast %98 : vector<2x8x128xbf16> to vector<16x128xbf16>
    %c8 = arith.constant 8 : index
    %c0_84 = arith.constant 0 : index
    %c0_85 = arith.constant 0 : index
    %100 = vector.load %arg5[%c8, %c0_84, %c0_85] : memref<9x128x128xbf16, #tpu.memory_space<vmem>>, vector<1x128x128xbf16>
    %101 = vector.shape_cast %100 : vector<1x128x128xbf16> to vector<128x128xbf16>
    %cst_86 = arith.constant dense<0.000000e+00> : vector<16x128xf32>
    %102 = tpu.matmul %99, %101, %cst_86 {dimension_numbers = #tpu.dot_dimension_numbers<[1], [0], [0], [1], [0, 0, 1, 1], [], []>} : vector<16x128xbf16>, vector<128x128xbf16>, vector<16x128xf32> -> vector<16x128xf32>
    %103 = arith.addf %97, %102 : vector<16x128xf32>
    %c0_87 = arith.constant 0 : index
    %c0_88 = arith.constant 0 : index
    %104 = vector.load %arg6[%c0_87, %c0_88] : memref<1x128xf32, #tpu.memory_space<vmem>>, vector<1x128xf32>
    %105 = vector.broadcast %104 : vector<1x128xf32> to vector<16x128xf32>
    %106 = arith.addf %103, %105 : vector<16x128xf32>
    %107 = vector.extract_strided_slice %5 {offsets = [2, 1, 0], sizes = [2, 8, 128], strides = [1, 1, 1]} : vector<5x9x128xbf16> to vector<2x8x128xbf16>
    %108 = vector.shape_cast %107 : vector<2x8x128xbf16> to vector<16x128xbf16>
    %c0_89 = arith.constant 0 : index
    %c0_90 = arith.constant 0 : index
    %109 = vector.load %arg7[%c0_89, %c0_90] : memref<128x128xbf16, #tpu.memory_space<vmem>>, vector<128x128xbf16>
    %cst_91 = arith.constant dense<0.000000e+00> : vector<16x128xf32>
    %110 = tpu.matmul %108, %109, %cst_91 {dimension_numbers = #tpu.dot_dimension_numbers<[1], [0], [0], [1], [0, 0, 1, 1], [], []>} : vector<16x128xbf16>, vector<128x128xbf16>, vector<16x128xf32> -> vector<16x128xf32>
    %c0_92 = arith.constant 0 : index
    %c0_93 = arith.constant 0 : index
    %111 = vector.load %arg8[%c0_92, %c0_93] : memref<1x128xf32, #tpu.memory_space<vmem>>, vector<1x128xf32>
    %112 = vector.broadcast %111 : vector<1x128xf32> to vector<16x128xf32>
    %113 = arith.addf %110, %112 : vector<16x128xf32>
    %114 = arith.addf %106, %113 : vector<16x128xf32>
    %cst_94 = arith.constant 0.000000e+00 : f32
    %115 = vector.broadcast %cst_94 : f32 to vector<16x128xf32>
    %116 = arith.maximumf %114, %115 : vector<16x128xf32>
    %117 = vector.shape_cast %116 : vector<16x128xf32> to vector<2x8x128xf32>
    %c0_95 = arith.constant 0 : index
    %c0_96 = arith.constant 0 : index
    %c0_97 = arith.constant 0 : index
    %c0_98 = arith.constant 0 : index
    %118 = vector.load %arg9[%c0_95, %c0_96, %c0_97, %c0_98] : memref<1x2x8x128xf32, #tpu.memory_space<vmem>>, vector<1x2x8x128xf32>
    %119 = vector.shape_cast %118 : vector<1x2x8x128xf32> to vector<2x8x128xf32>
    %120 = vector.shape_cast %117 : vector<2x8x128xf32> to vector<1x2x8x128xf32>
    tpu.vector_store %arg9[%c0_95, %c0_96, %c0_97, %c0_98], %120 {strides = array<i32>} : memref<1x2x8x128xf32, #tpu.memory_space<vmem>>, vector<1x2x8x128xf32>,
    return
  }
  func.func @transform_0(%arg0: i32, %arg1: i32) -> (i32, i32, i32, i32) {
    %c0_i32 = arith.constant 0 : i32
    %c0_i32_0 = arith.constant 0 : i32
    %c0_i32_1 = arith.constant 0 : i32
    %c0_i32_2 = arith.constant 0 : i32
    return %arg0, %c0_i32, %c0_i32_0, %c0_i32_1 : i32, i32, i32, i32
  }
  func.func @transform_1(%arg0: i32, %arg1: i32) -> (i32, i32, i32) {
    %c0_i32 = arith.constant 0 : i32
    %c0_i32_0 = arith.constant 0 : i32
    %c0_i32_1 = arith.constant 0 : i32
    %c0_i32_2 = arith.constant 0 : i32
    return %c0_i32, %c0_i32_0, %c0_i32_1 : i32, i32, i32
  }
  func.func @transform_2(%arg0: i32, %arg1: i32) -> (i32, i32) {
    %c0_i32 = arith.constant 0 : i32
    %c0_i32_0 = arith.constant 0 : i32
    %c0_i32_1 = arith.constant 0 : i32
    return %c0_i32, %c0_i32_0 : i32, i32
  }
  func.func @transform_3(%arg0: i32, %arg1: i32) -> (i32, i32, i32) {
    %c0_i32 = arith.constant 0 : i32
    %c0_i32_0 = arith.constant 0 : i32
    %c0_i32_1 = arith.constant 0 : i32
    %c0_i32_2 = arith.constant 0 : i32
    return %c0_i32, %c0_i32_0, %c0_i32_1 : i32, i32, i32
  }
  func.func @transform_4(%arg0: i32, %arg1: i32) -> (i32, i32) {
    %c0_i32 = arith.constant 0 : i32
    %c0_i32_0 = arith.constant 0 : i32
    %c0_i32_1 = arith.constant 0 : i32
    return %c0_i32, %c0_i32_0 : i32, i32
  }
  func.func @transform_5(%arg0: i32, %arg1: i32) -> (i32, i32) {
    %c0_i32 = arith.constant 0 : i32
    %c0_i32_0 = arith.constant 0 : i32
    %c0_i32_1 = arith.constant 0 : i32
    return %c0_i32, %c0_i32_0 : i32, i32
  }
  func.func @transform_6(%arg0: i32, %arg1: i32) -> (i32, i32) {
    %c0_i32 = arith.constant 0 : i32
    %c0_i32_0 = arith.constant 0 : i32
    %c0_i32_1 = arith.constant 0 : i32
    return %c0_i32, %c0_i32_0 : i32, i32
  }
  func.func @transform_7(%arg0: i32, %arg1: i32) -> (i32, i32, i32, i32) {
    %c0_i32 = arith.constant 0 : i32
    %c0_i32_0 = arith.constant 0 : i32
    %c0_i32_1 = arith.constant 0 : i32
    return %arg0, %arg1, %c0_i32, %c0_i32_0 : i32, i32, i32, i32
  }
}

module attributes {stable_mosaic.version = 11 : i64} {
  func.func @_standard_unit_kernel(%arg0: i32, %arg1: i32, %arg2: memref<1x11x9x128xf32, #tpu.memory_space<vmem>>, %arg3: memref<4x128x128xbf16, #tpu.memory_space<vmem>>, %arg4: memref<1x128xf32, #tpu.memory_space<vmem>>, %arg5: memref<9x128x128xbf16, #tpu.memory_space<vmem>>, %arg6: memref<1x128xf32, #tpu.memory_space<vmem>>, %arg7: memref<128x128xbf16, #tpu.memory_space<vmem>>, %arg8: memref<1x128xf32, #tpu.memory_space<vmem>>, %arg9: memref<1x2x8x128xf32, #tpu.memory_space<vmem>>, %arg10: memref<4x10x128xbf16, #tpu.memory_space<vmem>>) attributes {dimension_semantics = [#tpu.dimension_semantics<parallel>, #tpu.dimension_semantics<parallel>], iteration_bounds = array<i64: 2, 4>, scalar_prefetch = 0 : i64, scratch_operands = 1 : i64, tpu.core_type = #tpu.core_type<tc>, window_params = [{transform_indices = @transform_0, window_bounds = array<i64: 1, 11, 9, 128>}, {pipeline_mode = #tpu.pipeline_mode<synchronous>, transform_indices = @transform_1, window_bounds = array<i64: 4, 128, 128>}, {pipeline_mode = #tpu.pipeline_mode<synchronous>, transform_indices = @transform_2, window_bounds = array<i64: 1, 128>}, {pipeline_mode = #tpu.pipeline_mode<synchronous>, transform_indices = @transform_3, window_bounds = array<i64: 9, 128, 128>}, {pipeline_mode = #tpu.pipeline_mode<synchronous>, transform_indices = @transform_4, window_bounds = array<i64: 1, 128>}, {pipeline_mode = #tpu.pipeline_mode<synchronous>, transform_indices = @transform_5, window_bounds = array<i64: 128, 128>}, {pipeline_mode = #tpu.pipeline_mode<synchronous>, transform_indices = @transform_6, window_bounds = array<i64: 1, 128>}, {transform_indices = @transform_7, window_bounds = array<i64: 1, 2, 8, 128>}]} {
    %c2_i32 = arith.constant 2 : i32
    %0 = arith.muli %arg1, %c2_i32 : i32
    %1 = tpu.assume_multiple %0, 2 : i32
    %c0 = arith.constant 0 : index
    %2 = arith.index_cast %1 : i32 to index
    %c0_0 = arith.constant 0 : index
    %c0_1 = arith.constant 0 : index
    %3 = vector.load %arg2[%c0, %2, %c0_0, %c0_1] : memref<1x11x9x128xf32, #tpu.memory_space<vmem>>, vector<1x5x9x128xf32>
    %4 = vector.shape_cast %3 : vector<1x5x9x128xf32> to vector<5x9x128xf32>
    %5 = arith.truncf %4 : vector<5x9x128xf32> to vector<5x9x128xbf16>
    %6 = vector.extract_strided_slice %5 {offsets = [0, 0, 0], sizes = [4, 8, 128], strides = [1, 1, 1]} : vector<5x9x128xbf16> to vector<4x8x128xbf16>
    %7 = vector.shape_cast %6 : vector<4x8x128xbf16> to vector<32x128xbf16>
    %c0_2 = arith.constant 0 : index
    %c0_3 = arith.constant 0 : index
    %c0_4 = arith.constant 0 : index
    %8 = vector.load %arg3[%c0_2, %c0_3, %c0_4] : memref<4x128x128xbf16, #tpu.memory_space<vmem>>, vector<1x128x128xbf16>
    %9 = vector.shape_cast %8 : vector<1x128x128xbf16> to vector<128x128xbf16>
    %cst = arith.constant dense<0.000000e+00> : vector<32x128xf32>
    %10 = tpu.matmul %7, %9, %cst {dimension_numbers = #tpu.dot_dimension_numbers<[1], [0], [0], [1], [0, 0, 1, 1], [], []>} : vector<32x128xbf16>, vector<128x128xbf16>, vector<32x128xf32> -> vector<32x128xf32>
    %11 = vector.extract_strided_slice %5 {offsets = [0, 1, 0], sizes = [4, 8, 128], strides = [1, 1, 1]} : vector<5x9x128xbf16> to vector<4x8x128xbf16>
    %12 = vector.shape_cast %11 : vector<4x8x128xbf16> to vector<32x128xbf16>
    %c1 = arith.constant 1 : index
    %c0_5 = arith.constant 0 : index
    %c0_6 = arith.constant 0 : index
    %13 = vector.load %arg3[%c1, %c0_5, %c0_6] : memref<4x128x128xbf16, #tpu.memory_space<vmem>>, vector<1x128x128xbf16>
    %14 = vector.shape_cast %13 : vector<1x128x128xbf16> to vector<128x128xbf16>
    %cst_7 = arith.constant dense<0.000000e+00> : vector<32x128xf32>
    %15 = tpu.matmul %12, %14, %cst_7 {dimension_numbers = #tpu.dot_dimension_numbers<[1], [0], [0], [1], [0, 0, 1, 1], [], []>} : vector<32x128xbf16>, vector<128x128xbf16>, vector<32x128xf32> -> vector<32x128xf32>
    %16 = arith.addf %10, %15 : vector<32x128xf32>
    %17 = vector.extract_strided_slice %5 {offsets = [1, 0, 0], sizes = [4, 8, 128], strides = [1, 1, 1]} : vector<5x9x128xbf16> to vector<4x8x128xbf16>
    %18 = vector.shape_cast %17 : vector<4x8x128xbf16> to vector<32x128xbf16>
    %c2 = arith.constant 2 : index
    %c0_8 = arith.constant 0 : index
    %c0_9 = arith.constant 0 : index
    %19 = vector.load %arg3[%c2, %c0_8, %c0_9] : memref<4x128x128xbf16, #tpu.memory_space<vmem>>, vector<1x128x128xbf16>
    %20 = vector.shape_cast %19 : vector<1x128x128xbf16> to vector<128x128xbf16>
    %cst_10 = arith.constant dense<0.000000e+00> : vector<32x128xf32>
    %21 = tpu.matmul %18, %20, %cst_10 {dimension_numbers = #tpu.dot_dimension_numbers<[1], [0], [0], [1], [0, 0, 1, 1], [], []>} : vector<32x128xbf16>, vector<128x128xbf16>, vector<32x128xf32> -> vector<32x128xf32>
    %22 = arith.addf %16, %21 : vector<32x128xf32>
    %23 = vector.extract_strided_slice %5 {offsets = [1, 1, 0], sizes = [4, 8, 128], strides = [1, 1, 1]} : vector<5x9x128xbf16> to vector<4x8x128xbf16>
    %24 = vector.shape_cast %23 : vector<4x8x128xbf16> to vector<32x128xbf16>
    %c3 = arith.constant 3 : index
    %c0_11 = arith.constant 0 : index
    %c0_12 = arith.constant 0 : index
    %25 = vector.load %arg3[%c3, %c0_11, %c0_12] : memref<4x128x128xbf16, #tpu.memory_space<vmem>>, vector<1x128x128xbf16>
    %26 = vector.shape_cast %25 : vector<1x128x128xbf16> to vector<128x128xbf16>
    %cst_13 = arith.constant dense<0.000000e+00> : vector<32x128xf32>
    %27 = tpu.matmul %24, %26, %cst_13 {dimension_numbers = #tpu.dot_dimension_numbers<[1], [0], [0], [1], [0, 0, 1, 1], [], []>} : vector<32x128xbf16>, vector<128x128xbf16>, vector<32x128xf32> -> vector<32x128xf32>
    %28 = arith.addf %22, %27 : vector<32x128xf32>
    %c0_14 = arith.constant 0 : index
    %c0_15 = arith.constant 0 : index
    %29 = vector.load %arg4[%c0_14, %c0_15] : memref<1x128xf32, #tpu.memory_space<vmem>>, vector<1x128xf32>
    %30 = vector.broadcast %29 : vector<1x128xf32> to vector<32x128xf32>
    %31 = arith.addf %28, %30 : vector<32x128xf32>
    %cst_16 = arith.constant 0.000000e+00 : f32
    %32 = vector.broadcast %cst_16 : f32 to vector<32x128xf32>
    %33 = arith.maximumf %31, %32 : vector<32x128xf32>
    %34 = arith.truncf %33 : vector<32x128xf32> to vector<32x128xbf16>
    %35 = vector.shape_cast %34 : vector<32x128xbf16> to vector<4x8x128xbf16>
    %cst_17 = arith.constant 0.000000e+00 : bf16
    %36 = vector.broadcast %cst_17 : bf16 to vector<4x128xbf16>
    %c0_18 = arith.constant 0 : index
    %c0_19 = arith.constant 0 : index
    %c0_20 = arith.constant 0 : index
    %37 = vector.load %arg10[%c0_18, %c0_19, %c0_20] : memref<4x10x128xbf16, #tpu.memory_space<vmem>>, vector<4x1x128xbf16>
    %38 = vector.shape_cast %37 : vector<4x1x128xbf16> to vector<4x128xbf16>
    %39 = vector.shape_cast %36 : vector<4x128xbf16> to vector<4x1x128xbf16>
    tpu.vector_store %arg10[%c0_18, %c0_19, %c0_20], %39 {strides = array<i32>} : memref<4x10x128xbf16, #tpu.memory_space<vmem>>, vector<4x1x128xbf16>,
    %cst_21 = arith.constant 0.000000e+00 : bf16
    %40 = vector.broadcast %cst_21 : bf16 to vector<4x128xbf16>
    %c0_22 = arith.constant 0 : index
    %c9 = arith.constant 9 : index
    %c0_23 = arith.constant 0 : index
    %41 = vector.load %arg10[%c0_22, %c9, %c0_23] : memref<4x10x128xbf16, #tpu.memory_space<vmem>>, vector<4x1x128xbf16>
    %42 = vector.shape_cast %41 : vector<4x1x128xbf16> to vector<4x128xbf16>
    %43 = vector.shape_cast %40 : vector<4x128xbf16> to vector<4x1x128xbf16>
    tpu.vector_store %arg10[%c0_22, %c9, %c0_23], %43 {strides = array<i32>} : memref<4x10x128xbf16, #tpu.memory_space<vmem>>, vector<4x1x128xbf16>,
    %c0_24 = arith.constant 0 : index
    %c1_25 = arith.constant 1 : index
    %c0_26 = arith.constant 0 : index
    %44 = vector.load %arg10[%c0_24, %c1_25, %c0_26] : memref<4x10x128xbf16, #tpu.memory_space<vmem>>, vector<4x8x128xbf16>
    tpu.vector_store %arg10[%c0_24, %c1_25, %c0_26], %35 {strides = array<i32>} : memref<4x10x128xbf16, #tpu.memory_space<vmem>>, vector<4x8x128xbf16>,
    %c0_i32 = arith.constant 0 : i32
    %45 = arith.cmpi eq, %arg1, %c0_i32 : i32
    %46 = arith.extui %45 : i1 to i32
    %c0_i32_27 = arith.constant 0 : i32
    %47 = arith.cmpi ne, %46, %c0_i32_27 : i32
    scf.if %47 {
      %cst_99 = arith.constant 0.000000e+00 : bf16
      %121 = vector.broadcast %cst_99 : bf16 to vector<10x128xbf16>
      %c0_100 = arith.constant 0 : index
      %c0_101 = arith.constant 0 : index
      %c0_102 = arith.constant 0 : index
      %122 = vector.load %arg10[%c0_100, %c0_101, %c0_102] : memref<4x10x128xbf16, #tpu.memory_space<vmem>>, vector<1x10x128xbf16>
      %123 = vector.shape_cast %122 : vector<1x10x128xbf16> to vector<10x128xbf16>
      %124 = vector.shape_cast %121 : vector<10x128xbf16> to vector<1x10x128xbf16>
      tpu.vector_store %arg10[%c0_100, %c0_101, %c0_102], %124 {strides = array<i32>} : memref<4x10x128xbf16, #tpu.memory_space<vmem>>, vector<1x10x128xbf16>,
    } else {
    }
    %c3_i32 = arith.constant 3 : i32
    %48 = arith.cmpi eq, %arg1, %c3_i32 : i32
    %49 = arith.extui %48 : i1 to i32
    %c0_i32_28 = arith.constant 0 : i32
    %50 = arith.cmpi ne, %49, %c0_i32_28 : i32
    scf.if %50 {
      %cst_99 = arith.constant 0.000000e+00 : bf16
      %121 = vector.broadcast %cst_99 : bf16 to vector<10x128xbf16>
      %c3_100 = arith.constant 3 : index
      %c0_101 = arith.constant 0 : index
      %c0_102 = arith.constant 0 : index
      %122 = vector.load %arg10[%c3_100, %c0_101, %c0_102] : memref<4x10x128xbf16, #tpu.memory_space<vmem>>, vector<1x10x128xbf16>
      %123 = vector.shape_cast %122 : vector<1x10x128xbf16> to vector<10x128xbf16>
      %124 = vector.shape_cast %121 : vector<10x128xbf16> to vector<1x10x128xbf16>
      tpu.vector_store %arg10[%c3_100, %c0_101, %c0_102], %124 {strides = array<i32>} : memref<4x10x128xbf16, #tpu.memory_space<vmem>>, vector<1x10x128xbf16>,
    } else {
    }
    %c0_29 = arith.constant 0 : index
    %c0_30 = arith.constant 0 : index
    %c0_31 = arith.constant 0 : index
    %51 = vector.load %arg10[%c0_29, %c0_30, %c0_31] : memref<4x10x128xbf16, #tpu.memory_space<vmem>>, vector<2x8x128xbf16>
    %52 = vector.shape_cast %51 : vector<2x8x128xbf16> to vector<16x128xbf16>
    %c0_32 = arith.constant 0 : index
    %c0_33 = arith.constant 0 : index
    %c0_34 = arith.constant 0 : index
    %53 = vector.load %arg5[%c0_32, %c0_33, %c0_34] : memref<9x128x128xbf16, #tpu.memory_space<vmem>>, vector<1x128x128xbf16>
    %54 = vector.shape_cast %53 : vector<1x128x128xbf16> to vector<128x128xbf16>
    %cst_35 = arith.constant dense<0.000000e+00> : vector<16x128xf32>
    %55 = tpu.matmul %52, %54, %cst_35 {dimension_numbers = #tpu.dot_dimension_numbers<[1], [0], [0], [1], [0, 0, 1, 1], [], []>} : vector<16x128xbf16>, vector<128x128xbf16>, vector<16x128xf32> -> vector<16x128xf32>
    %c0_36 = arith.constant 0 : index
    %c1_37 = arith.constant 1 : index
    %c0_38 = arith.constant 0 : index
    %56 = vector.load %arg10[%c0_36, %c1_37, %c0_38] : memref<4x10x128xbf16, #tpu.memory_space<vmem>>, vector<2x8x128xbf16>
    %57 = vector.shape_cast %56 : vector<2x8x128xbf16> to vector<16x128xbf16>
    %c1_39 = arith.constant 1 : index
    %c0_40 = arith.constant 0 : index
    %c0_41 = arith.constant 0 : index
    %58 = vector.load %arg5[%c1_39, %c0_40, %c0_41] : memref<9x128x128xbf16, #tpu.memory_space<vmem>>, vector<1x128x128xbf16>
    %59 = vector.shape_cast %58 : vector<1x128x128xbf16> to vector<128x128xbf16>
    %cst_42 = arith.constant dense<0.000000e+00> : vector<16x128xf32>
    %60 = tpu.matmul %57, %59, %cst_42 {dimension_numbers = #tpu.dot_dimension_numbers<[1], [0], [0], [1], [0, 0, 1, 1], [], []>} : vector<16x128xbf16>, vector<128x128xbf16>, vector<16x128xf32> -> vector<16x128xf32>
    %61 = arith.addf %55, %60 : vector<16x128xf32>
    %c0_43 = arith.constant 0 : index
    %c2_44 = arith.constant 2 : index
    %c0_45 = arith.constant 0 : index
    %62 = vector.load %arg10[%c0_43, %c2_44, %c0_45] : memref<4x10x128xbf16, #tpu.memory_space<vmem>>, vector<2x8x128xbf16>
    %63 = vector.shape_cast %62 : vector<2x8x128xbf16> to vector<16x128xbf16>
    %c2_46 = arith.constant 2 : index
    %c0_47 = arith.constant 0 : index
    %c0_48 = arith.constant 0 : index
    %64 = vector.load %arg5[%c2_46, %c0_47, %c0_48] : memref<9x128x128xbf16, #tpu.memory_space<vmem>>, vector<1x128x128xbf16>
    %65 = vector.shape_cast %64 : vector<1x128x128xbf16> to vector<128x128xbf16>
    %cst_49 = arith.constant dense<0.000000e+00> : vector<16x128xf32>
    %66 = tpu.matmul %63, %65, %cst_49 {dimension_numbers = #tpu.dot_dimension_numbers<[1], [0], [0], [1], [0, 0, 1, 1], [], []>} : vector<16x128xbf16>, vector<128x128xbf16>, vector<16x128xf32> -> vector<16x128xf32>
    %67 = arith.addf %61, %66 : vector<16x128xf32>
    %c1_50 = arith.constant 1 : index
    %c0_51 = arith.constant 0 : index
    %c0_52 = arith.constant 0 : index
    %68 = vector.load %arg10[%c1_50, %c0_51, %c0_52] : memref<4x10x128xbf16, #tpu.memory_space<vmem>>, vector<2x8x128xbf16>
    %69 = vector.shape_cast %68 : vector<2x8x128xbf16> to vector<16x128xbf16>
    %c3_53 = arith.constant 3 : index
    %c0_54 = arith.constant 0 : index
    %c0_55 = arith.constant 0 : index
    %70 = vector.load %arg5[%c3_53, %c0_54, %c0_55] : memref<9x128x128xbf16, #tpu.memory_space<vmem>>, vector<1x128x128xbf16>
    %71 = vector.shape_cast %70 : vector<1x128x128xbf16> to vector<128x128xbf16>
    %cst_56 = arith.constant dense<0.000000e+00> : vector<16x128xf32>
    %72 = tpu.matmul %69, %71, %cst_56 {dimension_numbers = #tpu.dot_dimension_numbers<[1], [0], [0], [1], [0, 0, 1, 1], [], []>} : vector<16x128xbf16>, vector<128x128xbf16>, vector<16x128xf32> -> vector<16x128xf32>
    %73 = arith.addf %67, %72 : vector<16x128xf32>
    %c1_57 = arith.constant 1 : index
    %c1_58 = arith.constant 1 : index
    %c0_59 = arith.constant 0 : index
    %74 = vector.load %arg10[%c1_57, %c1_58, %c0_59] : memref<4x10x128xbf16, #tpu.memory_space<vmem>>, vector<2x8x128xbf16>
    %75 = vector.shape_cast %74 : vector<2x8x128xbf16> to vector<16x128xbf16>
    %c4 = arith.constant 4 : index
    %c0_60 = arith.constant 0 : index
    %c0_61 = arith.constant 0 : index
    %76 = vector.load %arg5[%c4, %c0_60, %c0_61] : memref<9x128x128xbf16, #tpu.memory_space<vmem>>, vector<1x128x128xbf16>
    %77 = vector.shape_cast %76 : vector<1x128x128xbf16> to vector<128x128xbf16>
    %cst_62 = arith.constant dense<0.000000e+00> : vector<16x128xf32>
    %78 = tpu.matmul %75, %77, %cst_62 {dimension_numbers = #tpu.dot_dimension_numbers<[1], [0], [0], [1], [0, 0, 1, 1], [], []>} : vector<16x128xbf16>, vector<128x128xbf16>, vector<16x128xf32> -> vector<16x128xf32>
    %79 = arith.addf %73, %78 : vector<16x128xf32>
    %c1_63 = arith.constant 1 : index
    %c2_64 = arith.constant 2 : index
    %c0_65 = arith.constant 0 : index
    %80 = vector.load %arg10[%c1_63, %c2_64, %c0_65] : memref<4x10x128xbf16, #tpu.memory_space<vmem>>, vector<2x8x128xbf16>
    %81 = vector.shape_cast %80 : vector<2x8x128xbf16> to vector<16x128xbf16>
    %c5 = arith.constant 5 : index
    %c0_66 = arith.constant 0 : index
    %c0_67 = arith.constant 0 : index
    %82 = vector.load %arg5[%c5, %c0_66, %c0_67] : memref<9x128x128xbf16, #tpu.memory_space<vmem>>, vector<1x128x128xbf16>
    %83 = vector.shape_cast %82 : vector<1x128x128xbf16> to vector<128x128xbf16>
    %cst_68 = arith.constant dense<0.000000e+00> : vector<16x128xf32>
    %84 = tpu.matmul %81, %83, %cst_68 {dimension_numbers = #tpu.dot_dimension_numbers<[1], [0], [0], [1], [0, 0, 1, 1], [], []>} : vector<16x128xbf16>, vector<128x128xbf16>, vector<16x128xf32> -> vector<16x128xf32>
    %85 = arith.addf %79, %84 : vector<16x128xf32>
    %c2_69 = arith.constant 2 : index
    %c0_70 = arith.constant 0 : index
    %c0_71 = arith.constant 0 : index
    %86 = vector.load %arg10[%c2_69, %c0_70, %c0_71] : memref<4x10x128xbf16, #tpu.memory_space<vmem>>, vector<2x8x128xbf16>
    %87 = vector.shape_cast %86 : vector<2x8x128xbf16> to vector<16x128xbf16>
    %c6 = arith.constant 6 : index
    %c0_72 = arith.constant 0 : index
    %c0_73 = arith.constant 0 : index
    %88 = vector.load %arg5[%c6, %c0_72, %c0_73] : memref<9x128x128xbf16, #tpu.memory_space<vmem>>, vector<1x128x128xbf16>
    %89 = vector.shape_cast %88 : vector<1x128x128xbf16> to vector<128x128xbf16>
    %cst_74 = arith.constant dense<0.000000e+00> : vector<16x128xf32>
    %90 = tpu.matmul %87, %89, %cst_74 {dimension_numbers = #tpu.dot_dimension_numbers<[1], [0], [0], [1], [0, 0, 1, 1], [], []>} : vector<16x128xbf16>, vector<128x128xbf16>, vector<16x128xf32> -> vector<16x128xf32>
    %91 = arith.addf %85, %90 : vector<16x128xf32>
    %c2_75 = arith.constant 2 : index
    %c1_76 = arith.constant 1 : index
    %c0_77 = arith.constant 0 : index
    %92 = vector.load %arg10[%c2_75, %c1_76, %c0_77] : memref<4x10x128xbf16, #tpu.memory_space<vmem>>, vector<2x8x128xbf16>
    %93 = vector.shape_cast %92 : vector<2x8x128xbf16> to vector<16x128xbf16>
    %c7 = arith.constant 7 : index
    %c0_78 = arith.constant 0 : index
    %c0_79 = arith.constant 0 : index
    %94 = vector.load %arg5[%c7, %c0_78, %c0_79] : memref<9x128x128xbf16, #tpu.memory_space<vmem>>, vector<1x128x128xbf16>
    %95 = vector.shape_cast %94 : vector<1x128x128xbf16> to vector<128x128xbf16>
    %cst_80 = arith.constant dense<0.000000e+00> : vector<16x128xf32>
    %96 = tpu.matmul %93, %95, %cst_80 {dimension_numbers = #tpu.dot_dimension_numbers<[1], [0], [0], [1], [0, 0, 1, 1], [], []>} : vector<16x128xbf16>, vector<128x128xbf16>, vector<16x128xf32> -> vector<16x128xf32>
    %97 = arith.addf %91, %96 : vector<16x128xf32>
    %c2_81 = arith.constant 2 : index
    %c2_82 = arith.constant 2 : index
    %c0_83 = arith.constant 0 : index
    %98 = vector.load %arg10[%c2_81, %c2_82, %c0_83] : memref<4x10x128xbf16, #tpu.memory_space<vmem>>, vector<2x8x128xbf16>
    %99 = vector.shape_cast %98 : vector<2x8x128xbf16> to vector<16x128xbf16>
    %c8 = arith.constant 8 : index
    %c0_84 = arith.constant 0 : index
    %c0_85 = arith.constant 0 : index
    %100 = vector.load %arg5[%c8, %c0_84, %c0_85] : memref<9x128x128xbf16, #tpu.memory_space<vmem>>, vector<1x128x128xbf16>
    %101 = vector.shape_cast %100 : vector<1x128x128xbf16> to vector<128x128xbf16>
    %cst_86 = arith.constant dense<0.000000e+00> : vector<16x128xf32>
    %102 = tpu.matmul %99, %101, %cst_86 {dimension_numbers = #tpu.dot_dimension_numbers<[1], [0], [0], [1], [0, 0, 1, 1], [], []>} : vector<16x128xbf16>, vector<128x128xbf16>, vector<16x128xf32> -> vector<16x128xf32>
    %103 = arith.addf %97, %102 : vector<16x128xf32>
    %c0_87 = arith.constant 0 : index
    %c0_88 = arith.constant 0 : index
    %104 = vector.load %arg6[%c0_87, %c0_88] : memref<1x128xf32, #tpu.memory_space<vmem>>, vector<1x128xf32>
    %105 = vector.broadcast %104 : vector<1x128xf32> to vector<16x128xf32>
    %106 = arith.addf %103, %105 : vector<16x128xf32>
    %107 = vector.extract_strided_slice %5 {offsets = [2, 1, 0], sizes = [2, 8, 128], strides = [1, 1, 1]} : vector<5x9x128xbf16> to vector<2x8x128xbf16>
    %108 = vector.shape_cast %107 : vector<2x8x128xbf16> to vector<16x128xbf16>
    %c0_89 = arith.constant 0 : index
    %c0_90 = arith.constant 0 : index
    %109 = vector.load %arg7[%c0_89, %c0_90] : memref<128x128xbf16, #tpu.memory_space<vmem>>, vector<128x128xbf16>
    %cst_91 = arith.constant dense<0.000000e+00> : vector<16x128xf32>
    %110 = tpu.matmul %108, %109, %cst_91 {dimension_numbers = #tpu.dot_dimension_numbers<[1], [0], [0], [1], [0, 0, 1, 1], [], []>} : vector<16x128xbf16>, vector<128x128xbf16>, vector<16x128xf32> -> vector<16x128xf32>
    %c0_92 = arith.constant 0 : index
    %c0_93 = arith.constant 0 : index
    %111 = vector.load %arg8[%c0_92, %c0_93] : memref<1x128xf32, #tpu.memory_space<vmem>>, vector<1x128xf32>
    %112 = vector.broadcast %111 : vector<1x128xf32> to vector<16x128xf32>
    %113 = arith.addf %110, %112 : vector<16x128xf32>
    %114 = arith.addf %106, %113 : vector<16x128xf32>
    %cst_94 = arith.constant 0.000000e+00 : f32
    %115 = vector.broadcast %cst_94 : f32 to vector<16x128xf32>
    %116 = arith.maximumf %114, %115 : vector<16x128xf32>
    %117 = vector.shape_cast %116 : vector<16x128xf32> to vector<2x8x128xf32>
    %c0_95 = arith.constant 0 : index
    %c0_96 = arith.constant 0 : index
    %c0_97 = arith.constant 0 : index
    %c0_98 = arith.constant 0 : index
    %118 = vector.load %arg9[%c0_95, %c0_96, %c0_97, %c0_98] : memref<1x2x8x128xf32, #tpu.memory_space<vmem>>, vector<1x2x8x128xf32>
    %119 = vector.shape_cast %118 : vector<1x2x8x128xf32> to vector<2x8x128xf32>
    %120 = vector.shape_cast %117 : vector<2x8x128xf32> to vector<1x2x8x128xf32>
    tpu.vector_store %arg9[%c0_95, %c0_96, %c0_97, %c0_98], %120 {strides = array<i32>} : memref<1x2x8x128xf32, #tpu.memory_space<vmem>>, vector<1x2x8x128xf32>,
    return
  }
  func.func @transform_0(%arg0: i32, %arg1: i32) -> (i32, i32, i32, i32) {
    %c0_i32 = arith.constant 0 : i32
    %c0_i32_0 = arith.constant 0 : i32
    %c0_i32_1 = arith.constant 0 : i32
    %c0_i32_2 = arith.constant 0 : i32
    return %arg0, %c0_i32, %c0_i32_0, %c0_i32_1 : i32, i32, i32, i32
  }
  func.func @transform_1(%arg0: i32, %arg1: i32) -> (i32, i32, i32) {
    %c0_i32 = arith.constant 0 : i32
    %c0_i32_0 = arith.constant 0 : i32
    %c0_i32_1 = arith.constant 0 : i32
    %c0_i32_2 = arith.constant 0 : i32
    return %c0_i32, %c0_i32_0, %c0_i32_1 : i32, i32, i32
  }
  func.func @transform_2(%arg0: i32, %arg1: i32) -> (i32, i32) {
    %c0_i32 = arith.constant 0 : i32
    %c0_i32_0 = arith.constant 0 : i32
    %c0_i32_1 = arith.constant 0 : i32
    return %c0_i32, %c0_i32_0 : i32, i32
  }
  func.func @transform_3(%arg0: i32, %arg1: i32) -> (i32, i32, i32) {
    %c0_i32 = arith.constant 0 : i32
    %c0_i32_0 = arith.constant 0 : i32
    %c0_i32_1 = arith.constant 0 : i32
    %c0_i32_2 = arith.constant 0 : i32
    return %c0_i32, %c0_i32_0, %c0_i32_1 : i32, i32, i32
  }
  func.func @transform_4(%arg0: i32, %arg1: i32) -> (i32, i32) {
    %c0_i32 = arith.constant 0 : i32
    %c0_i32_0 = arith.constant 0 : i32
    %c0_i32_1 = arith.constant 0 : i32
    return %c0_i32, %c0_i32_0 : i32, i32
  }
  func.func @transform_5(%arg0: i32, %arg1: i32) -> (i32, i32) {
    %c0_i32 = arith.constant 0 : i32
    %c0_i32_0 = arith.constant 0 : i32
    %c0_i32_1 = arith.constant 0 : i32
    return %c0_i32, %c0_i32_0 : i32, i32
  }
  func.func @transform_6(%arg0: i32, %arg1: i32) -> (i32, i32) {
    %c0_i32 = arith.constant 0 : i32
    %c0_i32_0 = arith.constant 0 : i32
    %c0_i32_1 = arith.constant 0 : i32
    return %c0_i32, %c0_i32_0 : i32, i32
  }
  func.func @transform_7(%arg0: i32, %arg1: i32) -> (i32, i32, i32, i32) {
    %c0_i32 = arith.constant 0 : i32
    %c0_i32_0 = arith.constant 0 : i32
    %c0_i32_1 = arith.constant 0 : i32
    return %arg0, %arg1, %c0_i32, %c0_i32_0 : i32, i32, i32, i32
  }
}

</mosaic_0001>

<llo_original>
// kernel: tpu_custom_call.1
$region0: #{tpu_custom_call.1}
  #allocation0 [shape = 'u32[]', space=smem, size = 0x4, offset = 0x4, fixed_abs, tag = 'smem constant byte address 0x4 - core index']
  #allocation1 [shape = 'u32[72,128]{1,0:T(1,128)}', space=vmem, size = 0x9000, scoped, tag = 'internal scratch']
  #allocation2 [shape = 'bf16[4,10,128]{2,1,0:T(8,128)(2,1)}', space=vmem, size = 0x4000, scoped, tag = 'scratch operand']
  %s0 = inlined_call_operand.vmem [shape: f32[2,11,9,128], index: 0, kind: input, shape index: {}]
  %s1 = inlined_call_operand.vmem [shape: bf16[4,128,128], index: 1, kind: input, shape index: {}]
  %s2 = inlined_call_operand.vmem [shape: f32[1,128], index: 2, kind: input, shape index: {}]
  %s3 = inlined_call_operand.hbm [shape: bf16[9,128,128], index: 3, kind: input, shape index: {}]
  %s4 = inlined_call_operand.vmem [shape: f32[1,128], index: 4, kind: input, shape index: {}]
  %s5 = inlined_call_operand.vmem [shape: bf16[128,128], index: 5, kind: input, shape index: {}]
  %s6 = inlined_call_operand.vmem [shape: f32[1,128], index: 6, kind: input, shape index: {}]
  %s7 = inlined_call_operand.hbm [shape: f32[2,8,8,128], index: 7, kind: output, shape index: {}]
  %s8 = sld [smem:[#allocation0]]
  $region73: #{tpu_custom_call.1} parent=0
    _
  %s10 = ssub.s32 1, %s8
  %s11 = scalar_select 0, %s10, %s8
  $region1: #{tpu_custom_call.1} parent=0
    #allocation3 [shape = 'u8[294912]{0}', space=vmem, size = 0x48000, scoped, tag = 'input window, operand 3, single buffered']
    #allocation4 [shape = 's32[2]{0}', space=sflag, size = 0x8, scoped, tag = 'scoped memory for tpu_custom_call.1']
    #allocation5 [shape = 's32[2]{0}', space=sflag, size = 0x8, scoped, tag = 'scoped memory for tpu_custom_call.1']
    #allocation6 [shape = 'u8[16384]{0}', space=vmem, size = 0x4000, scoped, tag = 'output window, operand 0']
    %12 = vsyncpa [#allocation4], 0
    %13 = vsyncpa [#allocation5], 0
    %s14 = scalar_lea.sflag [#allocation5], 1
    %15 = vsyncpa %s14, 0
    loop: start=0, step=1, limit=10
    $region2: #{tpu_custom_call.1} parent=1 // loop_pre_header
      _
    $region3: #{tpu_custom_call.1} parent=1 // loop_header
      %s17 = sphi 0, %s21
      %p18 = scmp.ge.s32.totalorder %s17, 10
      %s24 = sphi 0, %s36
      %s25 = sphi 0, %s32
      %s26 = sphi 0, %s24
      %s27 = sphi 0, %s25
      %s28 = sphi 0, %s26
      %s29 = sphi 0, %s27
      %s39 = sphi 0, %s41
      %s42 = sphi 0, %s39
      %s43 = sphi 0, %s42
      %s59 = sphi 0, %s43
      %s63 = sphi 0, %s63
      %s65 = sphi 0, %s63
      %s66 = sphi 0, %s65
      %s80 = sphi 0, %s66
      %s84 = sphi 0, %s84
      %s86 = sphi 0, %s84
      %s87 = sphi 0, %s86
      %s101 = sphi 0, %s87
      %s105 = sphi 0, %s105
      %s107 = sphi 0, %s105
      %s108 = sphi 0, %s107
      %s122 = sphi 0, %s108
      %s126 = sphi 0, %s126
      %s128 = sphi 0, %s126
      %s129 = sphi 0, %s128
      %s143 = sphi 0, %s129
      %s147 = sphi 0, %s147
      %s149 = sphi 0, %s147
      %s150 = sphi 0, %s149
      %s164 = sphi 0, %s150
      %s168 = sphi 0, %s168
      %s170 = sphi 0, %s168
      %s171 = sphi 0, %s170
      %s185 = sphi 0, %s171
      %s193 = sphi 0, %s195
      %s196 = sphi 0, %s193
      %s197 = sphi 0, %s196
      %s213 = sphi 0, %s197
    $region4: #{tpu_custom_call.1} parent=1 // loop_header_branch
      %20 = sbr.rel (%p18) target = $region8
    $region5: #{tpu_custom_call.1} parent=1 // loop_body
      %s22 = ssub.s32 %s17, 1
      %s23 = ssub.s32 %s17, 2
      %s30 = sadd.s32 1, %s25
      %p31 = scmp.ge.s32.totalorder %s30, 4
      %s32 = scalar_select %p31, 0, %s30
      %s33 = sadd.s32 1, %s24
      %s34 = scalar_select %p31, %s33, %s24
      %p35 = scmp.ge.s32.totalorder %s34, 2
      %s36 = scalar_select %p35, 0, %s34
      %s37 = ssub.s32 %s24, %s36
      %p38 = scmp.eq.s32.totalorder %s37, 0
      %s40 = sadd.s32 %s39, 1
      %s41 = scalar_select %p38, %s39, %s40
      %p44 = pneg %p38
      %p45 = scmp.eq.s32.totalorder %s17, 7
      %p46 = por %p44, %p45
      %p47 = scmp.ne.s32.totalorder %s39, %s42
      %p48 = scmp.eq.s32.totalorder %s17, 0
      %p49 = por %p47, %p48
      %p50 = scmp.ne.s32.totalorder %s39, %s42
      %p51 = scmp.eq.s32.totalorder %s22, 7
      %p52 = por %p50, %p51
      %p53 = scmp.ne.s32.totalorder %s42, %s43
      %p54 = scmp.eq.s32.totalorder %s22, 0
      %p55 = por %p53, %p54
      %p56 = scmp.ne.s32.totalorder %s42, %s43
      %p57 = scmp.eq.s32.totalorder %s23, 7
      %p58 = por %p56, %p57
      %p60 = scmp.ne.s32.totalorder %s43, %s59
      %p61 = scmp.eq.s32.totalorder %s23, 0
      %p62 = por %p60, %p61
      %s64 = sadd.s32 %s63, 1
      %p67 = scmp.eq.s32.totalorder %s17, 7
      %p68 = scmp.ne.s32.totalorder %s63, %s65
      %p69 = scmp.eq.s32.totalorder %s17, 0
      %p70 = por %p68, %p69
      %p71 = scmp.ne.s32.totalorder %s63, %s65
      %p72 = scmp.eq.s32.totalorder %s22, 7
      %p73 = por %p71, %p72
      %p74 = scmp.ne.s32.totalorder %s65, %s66
      %p75 = scmp.eq.s32.totalorder %s22, 0
      %p76 = por %p74, %p75
      %p77 = scmp.ne.s32.totalorder %s65, %s66
      %p78 = scmp.eq.s32.totalorder %s23, 7
      %p79 = por %p77, %p78
      %p81 = scmp.ne.s32.totalorder %s66, %s80
      %p82 = scmp.eq.s32.totalorder %s23, 0
      %p83 = por %p81, %p82
      %s85 = sadd.s32 %s84, 1
      %p88 = scmp.eq.s32.totalorder %s17, 7
      %p89 = scmp.ne.s32.totalorder %s84, %s86
      %p90 = scmp.eq.s32.totalorder %s17, 0
      %p91 = por %p89, %p90
      %p92 = scmp.ne.s32.totalorder %s84, %s86
      %p93 = scmp.eq.s32.totalorder %s22, 7
      %p94 = por %p92, %p93
      %p95 = scmp.ne.s32.totalorder %s86, %s87
      %p96 = scmp.eq.s32.totalorder %s22, 0
      %p97 = por %p95, %p96
      %p98 = scmp.ne.s32.totalorder %s86, %s87
      %p99 = scmp.eq.s32.totalorder %s23, 7
      %p100 = por %p98, %p99
      %p102 = scmp.ne.s32.totalorder %s87, %s101
      %p103 = scmp.eq.s32.totalorder %s23, 0
      %p104 = por %p102, %p103
      %s106 = sadd.s32 %s105, 1
      %p109 = scmp.eq.s32.totalorder %s17, 7
      %p110 = scmp.ne.s32.totalorder %s105, %s107
      %p111 = scmp.eq.s32.totalorder %s17, 0
      %p112 = por %p110, %p111
      %p113 = scmp.ne.s32.totalorder %s105, %s107
      %p114 = scmp.eq.s32.totalorder %s22, 7
      %p115 = por %p113, %p114
      %p116 = scmp.ne.s32.totalorder %s107, %s108
      %p117 = scmp.eq.s32.totalorder %s22, 0
      %p118 = por %p116, %p117
      %p119 = scmp.ne.s32.totalorder %s107, %s108
      %p120 = scmp.eq.s32.totalorder %s23, 7
      %p121 = por %p119, %p120
      %p123 = scmp.ne.s32.totalorder %s108, %s122
      %p124 = scmp.eq.s32.totalorder %s23, 0
      %p125 = por %p123, %p124
      %s127 = sadd.s32 %s126, 1
      %p130 = scmp.eq.s32.totalorder %s17, 7
      %p131 = scmp.ne.s32.totalorder %s126, %s128
      %p132 = scmp.eq.s32.totalorder %s17, 0
      %p133 = por %p131, %p132
      %p134 = scmp.ne.s32.totalorder %s126, %s128
      %p135 = scmp.eq.s32.totalorder %s22, 7
      %p136 = por %p134, %p135
      %p137 = scmp.ne.s32.totalorder %s128, %s129
      %p138 = scmp.eq.s32.totalorder %s22, 0
      %p139 = por %p137, %p138
      %p140 = scmp.ne.s32.totalorder %s128, %s129
      %p141 = scmp.eq.s32.totalorder %s23, 7
      %p142 = por %p140, %p141
      %p144 = scmp.ne.s32.totalorder %s129, %s143
      %p145 = scmp.eq.s32.totalorder %s23, 0
      %p146 = por %p144, %p145
      %s148 = sadd.s32 %s147, 1
      %p151 = scmp.eq.s32.totalorder %s17, 7
      %p152 = scmp.ne.s32.totalorder %s147, %s149
      %p153 = scmp.eq.s32.totalorder %s17, 0
      %p154 = por %p152, %p153
      %p155 = scmp.ne.s32.totalorder %s147, %s149
      %p156 = scmp.eq.s32.totalorder %s22, 7
      %p157 = por %p155, %p156
      %p158 = scmp.ne.s32.totalorder %s149, %s150
      %p159 = scmp.eq.s32.totalorder %s22, 0
      %p160 = por %p158, %p159
      %p161 = scmp.ne.s32.totalorder %s149, %s150
      %p162 = scmp.eq.s32.totalorder %s23, 7
      %p163 = por %p161, %p162
      %p165 = scmp.ne.s32.totalorder %s150, %s164
      %p166 = scmp.eq.s32.totalorder %s23, 0
      %p167 = por %p165, %p166
      %s169 = sadd.s32 %s168, 1
      %p172 = scmp.eq.s32.totalorder %s17, 7
      %p173 = scmp.ne.s32.totalorder %s168, %s170
      %p174 = scmp.eq.s32.totalorder %s17, 0
      %p175 = por %p173, %p174
      %p176 = scmp.ne.s32.totalorder %s168, %s170
      %p177 = scmp.eq.s32.totalorder %s22, 7
      %p178 = por %p176, %p177
      %p179 = scmp.ne.s32.totalorder %s170, %s171
      %p180 = scmp.eq.s32.totalorder %s22, 0
      %p181 = por %p179, %p180
      %p182 = scmp.ne.s32.totalorder %s170, %s171
      %p183 = scmp.eq.s32.totalorder %s23, 7
      %p184 = por %p182, %p183
      %p186 = scmp.ne.s32.totalorder %s171, %s185
      %p187 = scmp.eq.s32.totalorder %s23, 0
      %p188 = por %p186, %p187
      %s189 = ssub.s32 %s24, %s36
      %s190 = ssub.s32 %s25, %s32
      %s191 = sor.u32 %s189, %s190
      %p192 = scmp.eq.s32.totalorder %s191, 0
      %s194 = sadd.s32 %s193, 1
      %s195 = scalar_select %p192, %s193, %s194
      %p198 = pneg %p192
      %p199 = scmp.eq.s32.totalorder %s17, 7
      %p200 = por %p198, %p199
      %p201 = scmp.ne.s32.totalorder %s193, %s196
      %p202 = scmp.eq.s32.totalorder %s17, 0
      %p203 = por %p201, %p202
      %p204 = scmp.ne.s32.totalorder %s193, %s196
      %p205 = scmp.eq.s32.totalorder %s22, 7
      %p206 = por %p204, %p205
      %p207 = scmp.ne.s32.totalorder %s196, %s197
      %p208 = scmp.eq.s32.totalorder %s22, 0
      %p209 = por %p207, %p208
      %p210 = scmp.ne.s32.totalorder %s196, %s197
      %p211 = scmp.eq.s32.totalorder %s23, 7
      %p212 = por %p210, %p211
      %p214 = scmp.ne.s32.totalorder %s197, %s213
      %p215 = scmp.eq.s32.totalorder %s23, 0
      %p216 = por %p214, %p215
      %p217 = scmp.le.s32.totalorder 1, %s17
      %p218 = scmp.lt.s32.totalorder %s17, 9
      %p219 = pnand %p217, %p218
      %p220 = pneg %p219
      // Predicated region
      $region9: #{tpu_custom_call.1} parent=5 // pred_check
        _
      $region10: #{tpu_custom_call.1} parent=5 // pred_check_branch
        %222 = sbr.rel (%p219) target = $region12
      $region11: #{tpu_custom_call.1} parent=5 // pred_region
        %s223 = ssub.s32 %s17, 1
        // Predicated region
        $region13: #{tpu_custom_call.1} parent=11 // pred_check
          %p224 = pneg %p76
        $region14: #{tpu_custom_call.1} parent=11 // pred_check_branch
          %226 = sbr.rel (%p224) target = $region16
        $region15: #{tpu_custom_call.1} parent=11 // pred_region
          _
        $region16: #{tpu_custom_call.1} parent=11 // pred_fallthru
          _
        // Predicated region
        $region17: #{tpu_custom_call.1} parent=11 // pred_check
          %p227 = pneg %p97
        $region18: #{tpu_custom_call.1} parent=11 // pred_check_branch
          %229 = sbr.rel (%p227) target = $region20
        $region19: #{tpu_custom_call.1} parent=11 // pred_region
          _
        $region20: #{tpu_custom_call.1} parent=11 // pred_fallthru
          _
        // Predicated region
        $region21: #{tpu_custom_call.1} parent=11 // pred_check
          %p230 = pneg %p118
        $region22: #{tpu_custom_call.1} parent=11 // pred_check_branch
          %232 = sbr.rel (%p230) target = $region24
        $region23: #{tpu_custom_call.1} parent=11 // pred_region
          %234 = vsyncadd [#allocation4], 0
          %s235 = sshll.u32 %s3, 4
          %s236 = int_to_ptr.hbm [resolvable:$true] %s235
          %s237 = sshll.u32 [#allocation3], 4
          %s238 = int_to_ptr.vmem [resolvable:$true] %s237
          %243 = dma.hbm_to_vmem [thread:$0]  %s236, 9216, %s238, [#allocation4], 64, 64, 4
        $region24: #{tpu_custom_call.1} parent=11 // pred_fallthru
          _
        // Predicated region
        $region25: #{tpu_custom_call.1} parent=11 // pred_check
          %p244 = pneg %p139
        $region26: #{tpu_custom_call.1} parent=11 // pred_check_branch
          %246 = sbr.rel (%p244) target = $region28
        $region27: #{tpu_custom_call.1} parent=11 // pred_region
          _
        $region28: #{tpu_custom_call.1} parent=11 // pred_fallthru
          _
        // Predicated region
        $region29: #{tpu_custom_call.1} parent=11 // pred_check
          %p247 = pneg %p160
        $region30: #{tpu_custom_call.1} parent=11 // pred_check_branch
          %249 = sbr.rel (%p247) target = $region32
        $region31: #{tpu_custom_call.1} parent=11 // pred_region
          _
        $region32: #{tpu_custom_call.1} parent=11 // pred_fallthru
          _
        // Predicated region
        $region33: #{tpu_custom_call.1} parent=11 // pred_check
          %p250 = pneg %p181
        $region34: #{tpu_custom_call.1} parent=11 // pred_check_branch
          %252 = sbr.rel (%p250) target = $region36
        $region35: #{tpu_custom_call.1} parent=11 // pred_region
          _
        $region36: #{tpu_custom_call.1} parent=11 // pred_fallthru
          _
      $region12: #{tpu_custom_call.1} parent=5 // pred_fallthru
        _
      %p253 = scmp.lt.s32.totalorder %s17, 8
      // Predicated region
      $region37: #{tpu_custom_call.1} parent=5 // pred_check
        %p254 = pneg %p253
      $region38: #{tpu_custom_call.1} parent=5 // pred_check_branch
        %256 = sbr.rel (%p254) target = $region40
      $region39: #{tpu_custom_call.1} parent=5 // pred_region
        // Predicated region
        $region41: #{tpu_custom_call.1} parent=39 // pred_check
          %p257 = pneg %p49
        $region42: #{tpu_custom_call.1} parent=39 // pred_check_branch
          %259 = sbr.rel (%p257) target = $region44
        $region43: #{tpu_custom_call.1} parent=39 // pred_region
          %p260 = scmp.lt.s32.totalorder %s24, 1
          %s261 = scalar_select %p260, %s24, 1
          %s262 = smul.addr %s261, 22
          %s263 = smul.addr %s262, 8
          %s264 = scalar_lea.vmem %s0, %s263
        $region44: #{tpu_custom_call.1} parent=39 // pred_fallthru
          _
      $region40: #{tpu_custom_call.1} parent=5 // pred_fallthru
        _
      %p265 = scmp.le.s32.totalorder 1, %s17
      %p266 = scmp.lt.s32.totalorder %s17, 9
      %p267 = pnand %p265, %p266
      %p268 = pneg %p267
      // Predicated region
      $region45: #{tpu_custom_call.1} parent=5 // pred_check
        _
      $region46: #{tpu_custom_call.1} parent=5 // pred_check_branch
        %270 = sbr.rel (%p267) target = $region48
      $region47: #{tpu_custom_call.1} parent=5 // pred_region
        %s271 = ssub.s32 %s17, 1
        // Predicated region
        $region49: #{tpu_custom_call.1} parent=47 // pred_check
          %p272 = pneg %p118
        $region50: #{tpu_custom_call.1} parent=47 // pred_check_branch
          %274 = sbr.rel (%p272) target = $region52
        $region51: #{tpu_custom_call.1} parent=47 // pred_region
          %276 = dma.done [#allocation4], 9216
        $region52: #{tpu_custom_call.1} parent=47 // pred_fallthru
          _
        %p277 = scmp.lt.s32.totalorder %s26, 1
        %s278 = scalar_select %p277, %s26, 1
        %s279 = smul.addr %s278, 22
        %s280 = smul.addr %s279, 8
        %s281 = scalar_lea.vmem %s0, %s280
        %p282 = pneg %p55
        %p283 = pneg %p52
        %p284 = pneg %p76
        %p285 = pneg %p73
        %p286 = pneg %p97
        %p287 = pneg %p94
        %p288 = pneg %p118
        %p289 = pneg %p115
        %p290 = pneg %p139
        %p291 = pneg %p136
        %p292 = pneg %p160
        %p293 = pneg %p157
        %p294 = pneg %p181
        %p295 = pneg %p178
        %p296 = pneg %p209
        %p297 = pneg %p206
        %s298 = sand.u32 %s196, 1
        %s299 = scalar_lea.sflag [#allocation5], %s298
        %s300 = sand.u32 %s196, 1
        %s301 = smul.addr %s300, 16
        %s302 = scalar_lea.vmem [#allocation6], %s301
        %p303 = scmp.lt.s32.totalorder %s26, 1
        %s304 = scalar_select %p303, %s26, 1
        %s305 = smul.addr %s304, 22
        %s306 = smul.addr %s305, 8
        %s307 = scalar_lea.vmem %s0, %s306
        %s308 = smul.u32 2, %s27
        %s310 = smul.u32 %s27, 2
        %s311 = smul.u32 %s310, 16
        %s312 = scalar_lea.vmem %s307, %s311
        %v313 = vld [vmem:[%s312] sm:$0xff]
        %v314 = vld [vmem:[%s312 + $0x8] sm:$0x1]
        %v315 = vld [vmem:[%s312 + $0x10] sm:$0xff]
        %v316 = vld [vmem:[%s312 + $0x18] sm:$0x1]
        %v317 = vld [vmem:[%s312 + $0x20] sm:$0xff]
        %v318 = vld [vmem:[%s312 + $0x28] sm:$0x1]
        %v319 = vld [vmem:[%s312 + $0x30] sm:$0xff]
        %v320 = vld [vmem:[%s312 + $0x38] sm:$0x1]
        %v321 = vld [vmem:[%s312 + $0x40] sm:$0xff]
        %v322 = vld [vmem:[%s312 + $0x48] sm:$0x1]
        %v323 = vpack.c.bf16 %v313, %v313
        %v324 = vpack.c.bf16 %v314, %v314
        %v325 = vpack.c.bf16 %v315, %v315
        %v326 = vpack.c.bf16 %v316, %v316
        %v327 = vpack.c.bf16 %v317, %v317
        %v328 = vpack.c.bf16 %v318, %v318
        %v329 = vpack.c.bf16 %v319, %v319
        %v330 = vpack.c.bf16 %v320, %v320
        %v331 = vpack.c.bf16 %v321, %v321
        %v332 = vpack.c.bf16 %v322, %v322
        %v333 = vld [vmem:[%s1] sm:$0xf]
        %v334 = vld [vmem:[%s1 + $0x4] sm:$0xf]
        %v335 = vld [vmem:[%s1 + $0x8] sm:$0xf]
        %v336 = vld [vmem:[%s1 + $0xc] sm:$0xf]
        %v337 = vld [vmem:[%s1 + $0x10] sm:$0xf]
        %v338 = vld [vmem:[%s1 + $0x14] sm:$0xf]
        %v339 = vld [vmem:[%s1 + $0x18] sm:$0xf]
        %v340 = vld [vmem:[%s1 + $0x1c] sm:$0xf]
        %v341 = vld [vmem:[%s1 + $0x20] sm:$0xf]
        %v342 = vld [vmem:[%s1 + $0x24] sm:$0xf]
        %v343 = vld [vmem:[%s1 + $0x28] sm:$0xf]
        %v344 = vld [vmem:[%s1 + $0x2c] sm:$0xf]
        %v345 = vld [vmem:[%s1 + $0x30] sm:$0xf]
        %v346 = vld [vmem:[%s1 + $0x34] sm:$0xf]
        %v347 = vld [vmem:[%s1 + $0x38] sm:$0xf]
        %v348 = vld [vmem:[%s1 + $0x3c] sm:$0xf]
        %vm349 = vsmask.f32 3328
        %vm350 = vsmask.f32 7440
        %vm351 = vmor %vm349, %vm350
        %v353 = vshrl.u32 %v323, 16
        %v355 = vrot.slane %v353, 4
        %v356 = vshll.u32 %v323, 16
        %v358 = vrot.slane %v356, 5
        %v359 = vor.u32 %v355, %v358
        %v360 = vrot.slane %v359, 4
        %v362 = vshll.u32 %v324, 16
        %v364 = vrot.slane %v362, 5
        %v365 = vsel %vm351, %v360, %v364
        %v367 = vshrl.u32 %v325, 16
        %v369 = vrot.slane %v367, 4
        %v370 = vshll.u32 %v325, 16
        %v372 = vrot.slane %v370, 5
        %v373 = vor.u32 %v369, %v372
        %v374 = vrot.slane %v373, 4
        %v376 = vshll.u32 %v326, 16
        %v378 = vrot.slane %v376, 5
        %v379 = vsel %vm351, %v374, %v378
        %v381 = vshrl.u32 %v327, 16
        %v383 = vrot.slane %v381, 4
        %v384 = vshll.u32 %v327, 16
        %v386 = vrot.slane %v384, 5
        %v387 = vor.u32 %v383, %v386
        %v388 = vrot.slane %v387, 4
        %v390 = vshll.u32 %v328, 16
        %v392 = vrot.slane %v390, 5
        %v393 = vsel %vm351, %v388, %v392
        %v395 = vshrl.u32 %v329, 16
        %v397 = vrot.slane %v395, 4
        %v398 = vshll.u32 %v329, 16
        %v400 = vrot.slane %v398, 5
        %v401 = vor.u32 %v397, %v400
        %v402 = vrot.slane %v401, 4
        %v404 = vshll.u32 %v330, 16
        %v406 = vrot.slane %v404, 5
        %v407 = vsel %vm351, %v402, %v406
        %s408 = scalar_lea.vmem %s1, 64
        %v409 = vld [vmem:[%s408] sm:$0xf]
        %v410 = vld [vmem:[%s408 + $0x4] sm:$0xf]
        %v411 = vld [vmem:[%s408 + $0x8] sm:$0xf]
        %v412 = vld [vmem:[%s408 + $0xc] sm:$0xf]
        %v413 = vld [vmem:[%s408 + $0x10] sm:$0xf]
        %v414 = vld [vmem:[%s408 + $0x14] sm:$0xf]
        %v415 = vld [vmem:[%s408 + $0x18] sm:$0xf]
        %v416 = vld [vmem:[%s408 + $0x1c] sm:$0xf]
        %v417 = vld [vmem:[%s408 + $0x20] sm:$0xf]
        %v418 = vld [vmem:[%s408 + $0x24] sm:$0xf]
        %v419 = vld [vmem:[%s408 + $0x28] sm:$0xf]
        %v420 = vld [vmem:[%s408 + $0x2c] sm:$0xf]
        %v421 = vld [vmem:[%s408 + $0x30] sm:$0xf]
        %v422 = vld [vmem:[%s408 + $0x34] sm:$0xf]
        %v423 = vld [vmem:[%s408 + $0x38] sm:$0xf]
        %v424 = vld [vmem:[%s408 + $0x3c] sm:$0xf]
        %v425 = vunpack.c.l.b16 %v365
        %v426 = vunpack.c.l.b16 %v379
        %v427 = vunpack.c.l.b16 %v393
        %v428 = vunpack.c.l.b16 %v407
        %v429 = vpack.c.b16 %v426, %v425
        %v430 = vpack.c.b16 %v428, %v427
        %v449 = vunpack.c.l.b16 %v409
        %v450 = vunpack.c.l.b16 %v410
        %v451 = vunpack.c.l.b16 %v411
        %v452 = vunpack.c.l.b16 %v412
        %v453 = vunpack.c.l.b16 %v413
        %v454 = vunpack.c.l.b16 %v414
        %v455 = vunpack.c.l.b16 %v415
        %v456 = vunpack.c.l.b16 %v416
        %v457 = vunpack.c.l.b16 %v417
        %v458 = vunpack.c.l.b16 %v418
        %v459 = vunpack.c.l.b16 %v419
        %v460 = vunpack.c.l.b16 %v420
        %v461 = vunpack.c.l.b16 %v421
        %v462 = vunpack.c.l.b16 %v422
        %v463 = vunpack.c.l.b16 %v423
        %v464 = vunpack.c.l.b16 %v424
        %v465 = vpack.c.b16 %v450, %v449
        %v466 = vpack.c.b16 %v452, %v451
        %v467 = vpack.c.b16 %v454, %v453
        %v468 = vpack.c.b16 %v456, %v455
        %v469 = vpack.c.b16 %v458, %v457
        %v470 = vpack.c.b16 %v460, %v459
        %v471 = vpack.c.b16 %v462, %v461
        %v472 = vpack.c.b16 %v464, %v463
        %481 = vmatpush.bf16.msra.mxu0 %v472
        %482 = vmatpush.bf16.msra.mxu0 %v471
        %483 = vmatpush.bf16.msra.mxu0 %v470
        %484 = vmatpush.bf16.msra.mxu0 %v469
        %485 = vmatpush.bf16.msra.mxu0 %v468
        %486 = vmatpush.bf16.msra.mxu0 %v467
        %487 = vmatpush.bf16.msra.mxu0 %v466
        %488 = vmatpush.bf16.msra.mxu0 %v465
        %489 = vmatmul.bf16.gmra.mxu0 %v429
        %v490 = vpop.f32.mrf.mxu0
        %v491 = vadd.f32 0.0, %v490
        %v492 = vpop.f32.mrf.mxu0
        %v493 = vadd.f32 0.0, %v492
        %494 = vmatmul.bf16.gmra.mxu0 %v430
        %v495 = vpop.f32.mrf.mxu0
        %v496 = vadd.f32 0.0, %v495
        %v497 = vpop.f32.mrf.mxu0
        %v498 = vadd.f32 0.0, %v497
        %499 = vdwg.mxu0
        %v504 = vunpack.c.l.b16 %v323
        %v505 = vunpack.c.l.b16 %v325
        %v506 = vunpack.c.l.b16 %v327
        %v507 = vunpack.c.l.b16 %v329
        %v508 = vpack.c.b16 %v505, %v504
        %v509 = vpack.c.b16 %v507, %v506
        %v528 = vunpack.c.l.b16 %v333
        %v529 = vunpack.c.l.b16 %v334
        %v530 = vunpack.c.l.b16 %v335
        %v531 = vunpack.c.l.b16 %v336
        %v532 = vunpack.c.l.b16 %v337
        %v533 = vunpack.c.l.b16 %v338
        %v534 = vunpack.c.l.b16 %v339
        %v535 = vunpack.c.l.b16 %v340
        %v536 = vunpack.c.l.b16 %v341
        %v537 = vunpack.c.l.b16 %v342
        %v538 = vunpack.c.l.b16 %v343
        %v539 = vunpack.c.l.b16 %v344
        %v540 = vunpack.c.l.b16 %v345
        %v541 = vunpack.c.l.b16 %v346
        %v542 = vunpack.c.l.b16 %v347
        %v543 = vunpack.c.l.b16 %v348
        %v544 = vpack.c.b16 %v529, %v528
        %v545 = vpack.c.b16 %v531, %v530
        %v546 = vpack.c.b16 %v533, %v532
        %v547 = vpack.c.b16 %v535, %v534
        %v548 = vpack.c.b16 %v537, %v536
        %v549 = vpack.c.b16 %v539, %v538
        %v550 = vpack.c.b16 %v541, %v540
        %v551 = vpack.c.b16 %v543, %v542
        %560 = vmatpush.bf16.msra.mxu0 %v551
        %561 = vmatpush.bf16.msra.mxu0 %v550
        %562 = vmatpush.bf16.msra.mxu0 %v549
        %563 = vmatpush.bf16.msra.mxu0 %v548
        %564 = vmatpush.bf16.msra.mxu0 %v547
        %565 = vmatpush.bf16.msra.mxu0 %v546
        %566 = vmatpush.bf16.msra.mxu0 %v545
        %567 = vmatpush.bf16.msra.mxu0 %v544
        %568 = vmatmul.bf16.gmra.mxu0 %v508
        %v569 = vpop.f32.mrf.mxu0
        %v570 = vadd.f32 %v491, %v569
        %v571 = vpop.f32.mrf.mxu0
        %v572 = vadd.f32 %v493, %v571
        %573 = vmatmul.bf16.gmra.mxu0 %v509
        %v574 = vpop.f32.mrf.mxu0
        %v575 = vadd.f32 %v496, %v574
        %v576 = vpop.f32.mrf.mxu0
        %v577 = vadd.f32 %v498, %v576
        %578 = vdwg.mxu0
        %s579 = scalar_lea.vmem %s1, 128
        %v580 = vld [vmem:[%s579] sm:$0xf]
        %v581 = vld [vmem:[%s579 + $0x4] sm:$0xf]
        %v582 = vld [vmem:[%s579 + $0x8] sm:$0xf]
        %v583 = vld [vmem:[%s579 + $0xc] sm:$0xf]
        %v584 = vld [vmem:[%s579 + $0x10] sm:$0xf]
        %v585 = vld [vmem:[%s579 + $0x14] sm:$0xf]
        %v586 = vld [vmem:[%s579 + $0x18] sm:$0xf]
        %v587 = vld [vmem:[%s579 + $0x1c] sm:$0xf]
        %v588 = vld [vmem:[%s579 + $0x20] sm:$0xf]
        %v589 = vld [vmem:[%s579 + $0x24] sm:$0xf]
        %v590 = vld [vmem:[%s579 + $0x28] sm:$0xf]
        %v591 = vld [vmem:[%s579 + $0x2c] sm:$0xf]
        %v592 = vld [vmem:[%s579 + $0x30] sm:$0xf]
        %v593 = vld [vmem:[%s579 + $0x34] sm:$0xf]
        %v594 = vld [vmem:[%s579 + $0x38] sm:$0xf]
        %v595 = vld [vmem:[%s579 + $0x3c] sm:$0xf]
        %v597 = vunpack.c.l.b16 %v331
        %v598 = vpack.c.b16 %v506, %v505
        %v599 = vpack.c.b16 %v597, %v507
        %v618 = vunpack.c.l.b16 %v580
        %v619 = vunpack.c.l.b16 %v581
        %v620 = vunpack.c.l.b16 %v582
        %v621 = vunpack.c.l.b16 %v583
        %v622 = vunpack.c.l.b16 %v584
        %v623 = vunpack.c.l.b16 %v585
        %v624 = vunpack.c.l.b16 %v586
        %v625 = vunpack.c.l.b16 %v587
        %v626 = vunpack.c.l.b16 %v588
        %v627 = vunpack.c.l.b16 %v589
        %v628 = vunpack.c.l.b16 %v590
        %v629 = vunpack.c.l.b16 %v591
        %v630 = vunpack.c.l.b16 %v592
        %v631 = vunpack.c.l.b16 %v593
        %v632 = vunpack.c.l.b16 %v594
        %v633 = vunpack.c.l.b16 %v595
        %v634 = vpack.c.b16 %v619, %v618
        %v635 = vpack.c.b16 %v621, %v620
        %v636 = vpack.c.b16 %v623, %v622
        %v637 = vpack.c.b16 %v625, %v624
        %v638 = vpack.c.b16 %v627, %v626
        %v639 = vpack.c.b16 %v629, %v628
        %v640 = vpack.c.b16 %v631, %v630
        %v641 = vpack.c.b16 %v633, %v632
        %650 = vmatpush.bf16.msra.mxu0 %v641
        %651 = vmatpush.bf16.msra.mxu0 %v640
        %652 = vmatpush.bf16.msra.mxu0 %v639
        %653 = vmatpush.bf16.msra.mxu0 %v638
        %654 = vmatpush.bf16.msra.mxu0 %v637
        %655 = vmatpush.bf16.msra.mxu0 %v636
        %656 = vmatpush.bf16.msra.mxu0 %v635
        %657 = vmatpush.bf16.msra.mxu0 %v634
        %658 = vmatmul.bf16.gmra.mxu0 %v598
        %v659 = vpop.f32.mrf.mxu0
        %v660 = vadd.f32 0.0, %v659
        %v661 = vpop.f32.mrf.mxu0
        %v662 = vadd.f32 0.0, %v661
        %663 = vmatmul.bf16.gmra.mxu0 %v599
        %v664 = vpop.f32.mrf.mxu0
        %v665 = vadd.f32 0.0, %v664
        %v666 = vpop.f32.mrf.mxu0
        %v667 = vadd.f32 0.0, %v666
        %668 = vdwg.mxu0
        %v669 = vadd.f32 %v570, %v660
        %v670 = vadd.f32 %v572, %v662
        %v671 = vadd.f32 %v575, %v665
        %v672 = vadd.f32 %v577, %v667
        %v674 = vshrl.u32 %v331, 16
        %v676 = vrot.slane %v674, 4
        %v677 = vshll.u32 %v331, 16
        %v679 = vrot.slane %v677, 5
        %v680 = vor.u32 %v676, %v679
        %v681 = vrot.slane %v680, 4
        %v683 = vshll.u32 %v332, 16
        %v685 = vrot.slane %v683, 5
        %v686 = vsel %vm351, %v681, %v685
        %s687 = scalar_lea.vmem %s1, 192
        %v688 = vld [vmem:[%s687] sm:$0xf]
        %v689 = vld [vmem:[%s687 + $0x4] sm:$0xf]
        %v690 = vld [vmem:[%s687 + $0x8] sm:$0xf]
        %v691 = vld [vmem:[%s687 + $0xc] sm:$0xf]
        %v692 = vld [vmem:[%s687 + $0x10] sm:$0xf]
        %v693 = vld [vmem:[%s687 + $0x14] sm:$0xf]
        %v694 = vld [vmem:[%s687 + $0x18] sm:$0xf]
        %v695 = vld [vmem:[%s687 + $0x1c] sm:$0xf]
        %v696 = vld [vmem:[%s687 + $0x20] sm:$0xf]
        %v697 = vld [vmem:[%s687 + $0x24] sm:$0xf]
        %v698 = vld [vmem:[%s687 + $0x28] sm:$0xf]
        %v699 = vld [vmem:[%s687 + $0x2c] sm:$0xf]
        %v700 = vld [vmem:[%s687 + $0x30] sm:$0xf]
        %v701 = vld [vmem:[%s687 + $0x34] sm:$0xf]
        %v702 = vld [vmem:[%s687 + $0x38] sm:$0xf]
        %v703 = vld [vmem:[%s687 + $0x3c] sm:$0xf]
        %v704 = vunpack.c.l.b16 %v686
        %v705 = vpack.c.b16 %v427, %v426
        %v706 = vpack.c.b16 %v704, %v428
        %v725 = vunpack.c.l.b16 %v688
        %v726 = vunpack.c.l.b16 %v689
        %v727 = vunpack.c.l.b16 %v690
        %v728 = vunpack.c.l.b16 %v691
        %v729 = vunpack.c.l.b16 %v692
        %v730 = vunpack.c.l.b16 %v693
        %v731 = vunpack.c.l.b16 %v694
        %v732 = vunpack.c.l.b16 %v695
        %v733 = vunpack.c.l.b16 %v696
        %v734 = vunpack.c.l.b16 %v697
        %v735 = vunpack.c.l.b16 %v698
        %v736 = vunpack.c.l.b16 %v699
        %v737 = vunpack.c.l.b16 %v700
        %v738 = vunpack.c.l.b16 %v701
        %v739 = vunpack.c.l.b16 %v702
        %v740 = vunpack.c.l.b16 %v703
        %v741 = vpack.c.b16 %v726, %v725
        %v742 = vpack.c.b16 %v728, %v727
        %v743 = vpack.c.b16 %v730, %v729
        %v744 = vpack.c.b16 %v732, %v731
        %v745 = vpack.c.b16 %v734, %v733
        %v746 = vpack.c.b16 %v736, %v735
        %v747 = vpack.c.b16 %v738, %v737
        %v748 = vpack.c.b16 %v740, %v739
        %757 = vmatpush.bf16.msra.mxu0 %v748
        %758 = vmatpush.bf16.msra.mxu0 %v747
        %759 = vmatpush.bf16.msra.mxu0 %v746
        %760 = vmatpush.bf16.msra.mxu0 %v745
        %761 = vmatpush.bf16.msra.mxu0 %v744
        %762 = vmatpush.bf16.msra.mxu0 %v743
        %763 = vmatpush.bf16.msra.mxu0 %v742
        %764 = vmatpush.bf16.msra.mxu0 %v741
        %765 = vmatmul.bf16.gmra.mxu0 %v705
        %v766 = vpop.f32.mrf.mxu0
        %v767 = vadd.f32 0.0, %v766
        %v768 = vpop.f32.mrf.mxu0
        %v769 = vadd.f32 0.0, %v768
        %770 = vmatmul.bf16.gmra.mxu0 %v706
        %v771 = vpop.f32.mrf.mxu0
        %v772 = vadd.f32 0.0, %v771
        %v773 = vpop.f32.mrf.mxu0
        %v774 = vadd.f32 0.0, %v773
        %775 = vdwg.mxu0
        %v776 = vadd.f32 %v669, %v767
        %v777 = vadd.f32 %v670, %v769
        %v778 = vadd.f32 %v671, %v772
        %v779 = vadd.f32 %v672, %v774
        %v780 = vld [vmem:[%s2] sm:$0x1]
        %v782 = vperm.slane %v780, 0
        %v784 = vadd.f32 %v776, %v782
        %v785 = vadd.f32 %v777, %v782
        %v786 = vadd.f32 %v778, %v782
        %v787 = vadd.f32 %v779, %v782
        %v788 = vmax.f32 %v784, 0.0
        %v789 = vmax.f32 %v785, 0.0
        %v790 = vmax.f32 %v786, 0.0
        %v791 = vmax.f32 %v787, 0.0
        %v792 = vpack.c.bf16 %v788, %v788
        %v793 = vpack.c.bf16 %v789, %v789
        %v794 = vpack.c.bf16 %v790, %v790
        %v795 = vpack.c.bf16 %v791, %v791
        %vm796 = vcmask 1040384
        %vm797 = vsmask.f32 256
        %vm798 = vmand %vm796, %vm797
        %v799 = vld [vmem:[#allocation2] sm:$0x1]
        %v800 = vsel %vm798, 0, %v799
        %801 = vst [vmem:[#allocation2] sm:$0x1] %v800
        %v802 = vld [vmem:[#allocation2 + $0x8] sm:$0x1]
        %v803 = vsel %vm798, 0, %v802
        %804 = vst [vmem:[#allocation2 + $0x8] sm:$0x1] %v803
        %v805 = vld [vmem:[#allocation2 + $0x10] sm:$0x1]
        %v806 = vsel %vm798, 0, %v805
        %807 = vst [vmem:[#allocation2 + $0x10] sm:$0x1] %v806
        %v808 = vld [vmem:[#allocation2 + $0x18] sm:$0x1]
        %v809 = vsel %vm798, 0, %v808
        %810 = vst [vmem:[#allocation2 + $0x18] sm:$0x1] %v809
        %vm811 = vsmask.f32 7938
        %vm812 = vmand %vm796, %vm811
        %v813 = vld [vmem:[#allocation2 + $0x4] sm:$0x1]
        %v814 = vsel %vm812, 0, %v813
        %815 = vst [vmem:[#allocation2 + $0x4] sm:$0x1] %v814
        %v816 = vld [vmem:[#allocation2 + $0xc] sm:$0x1]
        %v817 = vsel %vm812, 0, %v816
        %818 = vst [vmem:[#allocation2 + $0xc] sm:$0x1] %v817
        %v819 = vld [vmem:[#allocation2 + $0x14] sm:$0x1]
        %v820 = vsel %vm812, 0, %v819
        %821 = vst [vmem:[#allocation2 + $0x14] sm:$0x1] %v820
        %v822 = vld [vmem:[#allocation2 + $0x1c] sm:$0x1]
        %v823 = vsel %vm812, 0, %v822
        %824 = vst [vmem:[#allocation2 + $0x1c] sm:$0x1] %v823
        %v826 = vshrl.u32 %v792, 16
        %v828 = vrot.slane %v826, 7
        %v829 = vshll.u32 %v792, 16
        %v831 = vor.u32 %v828, %v829
        %v832 = vrot.slane %v828, 4
        %v834 = vshrl.u32 %v793, 16
        %v836 = vrot.slane %v834, 7
        %v837 = vshll.u32 %v793, 16
        %v839 = vor.u32 %v836, %v837
        %v840 = vrot.slane %v836, 4
        %v842 = vshrl.u32 %v794, 16
        %v844 = vrot.slane %v842, 7
        %v845 = vshll.u32 %v794, 16
        %v847 = vor.u32 %v844, %v845
        %v848 = vrot.slane %v844, 4
        %v850 = vshrl.u32 %v795, 16
        %v852 = vrot.slane %v850, 7
        %v853 = vshll.u32 %v795, 16
        %v855 = vor.u32 %v852, %v853
        %v856 = vrot.slane %v852, 4
        %vm865 = vcmask 1043456
        %vm866 = vmand %vm865, %vm811
        %v867 = vld [vmem:[#allocation2] sm:$0xf]
        %v868 = vsel %vm866, %v831, %v867
        %869 = vst [vmem:[#allocation2] sm:$0xf] %v868
        %v870 = vld [vmem:[#allocation2 + $0x4] sm:$0x1]
        %v871 = vsel %vm798, %v832, %v870
        %872 = vst [vmem:[#allocation2 + $0x4] sm:$0x1] %v871
        %v873 = vld [vmem:[#allocation2 + $0x8] sm:$0xf]
        %v874 = vsel %vm866, %v839, %v873
        %875 = vst [vmem:[#allocation2 + $0x8] sm:$0xf] %v874
        %v876 = vld [vmem:[#allocation2 + $0xc] sm:$0x1]
        %v877 = vsel %vm798, %v840, %v876
        %878 = vst [vmem:[#allocation2 + $0xc] sm:$0x1] %v877
        %v879 = vld [vmem:[#allocation2 + $0x10] sm:$0xf]
        %v880 = vsel %vm866, %v847, %v879
        %881 = vst [vmem:[#allocation2 + $0x10] sm:$0xf] %v880
        %v882 = vld [vmem:[#allocation2 + $0x14] sm:$0x1]
        %v883 = vsel %vm798, %v848, %v882
        %884 = vst [vmem:[#allocation2 + $0x14] sm:$0x1] %v883
        %v885 = vld [vmem:[#allocation2 + $0x18] sm:$0xf]
        %v886 = vsel %vm866, %v855, %v885
        %887 = vst [vmem:[#allocation2 + $0x18] sm:$0xf] %v886
        %v888 = vld [vmem:[#allocation2 + $0x1c] sm:$0x1]
        %v889 = vsel %vm798, %v856, %v888
        %890 = vst [vmem:[#allocation2 + $0x1c] sm:$0x1] %v889
        %p891 = scmp.eq.s32.totalorder %s27, 0
        // Predicated region
        $region53: #{tpu_custom_call.1} parent=47 // pred_check
          %p892 = pneg %p891
        $region54: #{tpu_custom_call.1} parent=47 // pred_check_branch
          %894 = sbr.rel (%p892) target = $region56
        $region55: #{tpu_custom_call.1} parent=47 // pred_region
          %895 = vst [vmem:[#allocation2] sm:$0xf] 0
          %896 = vst [vmem:[#allocation2 + $0x4] sm:$0x1] 0
        $region56: #{tpu_custom_call.1} parent=47 // pred_fallthru
          _
        %p897 = scmp.eq.s32.totalorder %s27, 3
        // Predicated region
        $region57: #{tpu_custom_call.1} parent=47 // pred_check
          %p898 = pneg %p897
        $region58: #{tpu_custom_call.1} parent=47 // pred_check_branch
          %900 = sbr.rel (%p898) target = $region60
        $region59: #{tpu_custom_call.1} parent=47 // pred_region
          %s901 = scalar_lea.vmem [#allocation2], 24
          %902 = vst [vmem:[%s901] sm:$0xf] 0
          %903 = vst [vmem:[%s901 + $0x4] sm:$0x1] 0
        $region60: #{tpu_custom_call.1} parent=47 // pred_fallthru
          _
        %v904 = vld [vmem:[#allocation2] sm:$0xf]
        %v905 = vld [vmem:[#allocation2 + $0x8] sm:$0xf]
        %v906 = vld [vmem:[#allocation3] sm:$0xf]
        %v907 = vld [vmem:[#allocation3 + $0x4] sm:$0xf]
        %v908 = vld [vmem:[#allocation3 + $0x8] sm:$0xf]
        %v909 = vld [vmem:[#allocation3 + $0xc] sm:$0xf]
        %v910 = vld [vmem:[#allocation3 + $0x10] sm:$0xf]
        %v911 = vld [vmem:[#allocation3 + $0x14] sm:$0xf]
        %v912 = vld [vmem:[#allocation3 + $0x18] sm:$0xf]
        %v913 = vld [vmem:[#allocation3 + $0x1c] sm:$0xf]
        %v914 = vld [vmem:[#allocation3 + $0x20] sm:$0xf]
        %v915 = vld [vmem:[#allocation3 + $0x24] sm:$0xf]
        %v916 = vld [vmem:[#allocation3 + $0x28] sm:$0xf]
        %v917 = vld [vmem:[#allocation3 + $0x2c] sm:$0xf]
        %v918 = vld [vmem:[#allocation3 + $0x30] sm:$0xf]
        %v919 = vld [vmem:[#allocation3 + $0x34] sm:$0xf]
        %v920 = vld [vmem:[#allocation3 + $0x38] sm:$0xf]
        %v921 = vld [vmem:[#allocation3 + $0x3c] sm:$0xf]
        %v922 = vld [vmem:[#allocation2 + $0x4] sm:$0x1]
        %v923 = vld [vmem:[#allocation2 + $0xc] sm:$0x1]
        %v925 = vshrl.u32 %v904, 16
        %v927 = vrot.slane %v925, 4
        %v928 = vshll.u32 %v904, 16
        %v930 = vrot.slane %v928, 5
        %v931 = vor.u32 %v927, %v930
        %v932 = vrot.slane %v931, 4
        %v934 = vshll.u32 %v922, 16
        %v936 = vrot.slane %v934, 5
        %v937 = vsel %vm351, %v932, %v936
        %v939 = vshrl.u32 %v905, 16
        %v941 = vrot.slane %v939, 4
        %v942 = vshll.u32 %v905, 16
        %v944 = vrot.slane %v942, 5
        %v945 = vor.u32 %v941, %v944
        %v946 = vrot.slane %v945, 4
        %v948 = vshll.u32 %v923, 16
        %v950 = vrot.slane %v948, 5
        %v951 = vsel %vm351, %v946, %v950
        %s952 = scalar_lea.vmem [#allocation3], 64
        %v953 = vld [vmem:[%s952] sm:$0xf]
        %v954 = vld [vmem:[%s952 + $0x4] sm:$0xf]
        %v955 = vld [vmem:[%s952 + $0x8] sm:$0xf]
        %v956 = vld [vmem:[%s952 + $0xc] sm:$0xf]
        %v957 = vld [vmem:[%s952 + $0x10] sm:$0xf]
        %v958 = vld [vmem:[%s952 + $0x14] sm:$0xf]
        %v959 = vld [vmem:[%s952 + $0x18] sm:$0xf]
        %v960 = vld [vmem:[%s952 + $0x1c] sm:$0xf]
        %v961 = vld [vmem:[%s952 + $0x20] sm:$0xf]
        %v962 = vld [vmem:[%s952 + $0x24] sm:$0xf]
        %v963 = vld [vmem:[%s952 + $0x28] sm:$0xf]
        %v964 = vld [vmem:[%s952 + $0x2c] sm:$0xf]
        %v965 = vld [vmem:[%s952 + $0x30] sm:$0xf]
        %v966 = vld [vmem:[%s952 + $0x34] sm:$0xf]
        %v967 = vld [vmem:[%s952 + $0x38] sm:$0xf]
        %v968 = vld [vmem:[%s952 + $0x3c] sm:$0xf]
        %v969 = vunpack.c.l.b16 %v937
        %v970 = vunpack.c.l.b16 %v951
        %v971 = vpack.c.b16 %v970, %v969
        %v989 = vunpack.c.l.b16 %v953
        %v990 = vunpack.c.l.b16 %v954
        %v991 = vunpack.c.l.b16 %v955
        %v992 = vunpack.c.l.b16 %v956
        %v993 = vunpack.c.l.b16 %v957
        %v994 = vunpack.c.l.b16 %v958
        %v995 = vunpack.c.l.b16 %v959
        %v996 = vunpack.c.l.b16 %v960
        %v997 = vunpack.c.l.b16 %v961
        %v998 = vunpack.c.l.b16 %v962
        %v999 = vunpack.c.l.b16 %v963
        %v1000 = vunpack.c.l.b16 %v964
        %v1001 = vunpack.c.l.b16 %v965
        %v1002 = vunpack.c.l.b16 %v966
        %v1003 = vunpack.c.l.b16 %v967
        %v1004 = vunpack.c.l.b16 %v968
        %v1005 = vpack.c.b16 %v990, %v989
        %v1006 = vpack.c.b16 %v992, %v991
        %v1007 = vpack.c.b16 %v994, %v993
        %v1008 = vpack.c.b16 %v996, %v995
        %v1009 = vpack.c.b16 %v998, %v997
        %v1010 = vpack.c.b16 %v1000, %v999
        %v1011 = vpack.c.b16 %v1002, %v1001
        %v1012 = vpack.c.b16 %v1004, %v1003
        %1021 = vmatpush.bf16.msra.mxu0 %v1012
        %1022 = vmatpush.bf16.msra.mxu0 %v1011
        %1023 = vmatpush.bf16.msra.mxu0 %v1010
        %1024 = vmatpush.bf16.msra.mxu0 %v1009
        %1025 = vmatpush.bf16.msra.mxu0 %v1008
        %1026 = vmatpush.bf16.msra.mxu0 %v1007
        %1027 = vmatpush.bf16.msra.mxu0 %v1006
        %1028 = vmatpush.bf16.msra.mxu0 %v1005
        %1029 = vmatmul.bf16.gmra.mxu0 %v971
        %v1030 = vpop.f32.mrf.mxu0
        %v1031 = vadd.f32 0.0, %v1030
        %v1032 = vpop.f32.mrf.mxu0
        %v1033 = vadd.f32 0.0, %v1032
        %1034 = vdwg.mxu0
        %v1037 = vunpack.c.l.b16 %v904
        %v1038 = vunpack.c.l.b16 %v905
        %v1039 = vpack.c.b16 %v1038, %v1037
        %v1057 = vunpack.c.l.b16 %v906
        %v1058 = vunpack.c.l.b16 %v907
        %v1059 = vunpack.c.l.b16 %v908
        %v1060 = vunpack.c.l.b16 %v909
        %v1061 = vunpack.c.l.b16 %v910
        %v1062 = vunpack.c.l.b16 %v911
        %v1063 = vunpack.c.l.b16 %v912
        %v1064 = vunpack.c.l.b16 %v913
        %v1065 = vunpack.c.l.b16 %v914
        %v1066 = vunpack.c.l.b16 %v915
        %v1067 = vunpack.c.l.b16 %v916
        %v1068 = vunpack.c.l.b16 %v917
        %v1069 = vunpack.c.l.b16 %v918
        %v1070 = vunpack.c.l.b16 %v919
        %v1071 = vunpack.c.l.b16 %v920
        %v1072 = vunpack.c.l.b16 %v921
        %v1073 = vpack.c.b16 %v1058, %v1057
        %v1074 = vpack.c.b16 %v1060, %v1059
        %v1075 = vpack.c.b16 %v1062, %v1061
        %v1076 = vpack.c.b16 %v1064, %v1063
        %v1077 = vpack.c.b16 %v1066, %v1065
        %v1078 = vpack.c.b16 %v1068, %v1067
        %v1079 = vpack.c.b16 %v1070, %v1069
        %v1080 = vpack.c.b16 %v1072, %v1071
        %1089 = vmatpush.bf16.msra.mxu0 %v1080
        %1090 = vmatpush.bf16.msra.mxu0 %v1079
        %1091 = vmatpush.bf16.msra.mxu0 %v1078
        %1092 = vmatpush.bf16.msra.mxu0 %v1077
        %1093 = vmatpush.bf16.msra.mxu0 %v1076
        %1094 = vmatpush.bf16.msra.mxu0 %v1075
        %1095 = vmatpush.bf16.msra.mxu0 %v1074
        %1096 = vmatpush.bf16.msra.mxu0 %v1073
        %1097 = vmatmul.bf16.gmra.mxu0 %v1039
        %v1098 = vpop.f32.mrf.mxu0
        %v1099 = vadd.f32 %v1031, %v1098
        %v1100 = vpop.f32.mrf.mxu0
        %v1101 = vadd.f32 %v1033, %v1100
        %1102 = vdwg.mxu0
        %v1103 = vld [vmem:[#allocation2] sm:$0xe]
        %v1104 = vld [vmem:[#allocation2 + $0x8] sm:$0xe]
        %vm1109 = vcmask 1042432
        %vm1110 = vcmask 1046532
        %vm1111 = vmor %vm1109, %vm1110
        %v1112 = vrot.slane %v1103, 5
        %v1113 = vrot.slane %v1112, 4
        %v1114 = vrot.slane %v922, 5
        %v1115 = vsel %vm1111, %v1113, %v1114
        %v1116 = vrot.slane %v1104, 5
        %v1117 = vrot.slane %v1116, 4
        %v1118 = vrot.slane %v923, 5
        %v1119 = vsel %vm1111, %v1117, %v1118
        %s1120 = scalar_lea.vmem [#allocation3], 128
        %v1121 = vld [vmem:[%s1120] sm:$0xf]
        %v1122 = vld [vmem:[%s1120 + $0x4] sm:$0xf]
        %v1123 = vld [vmem:[%s1120 + $0x8] sm:$0xf]
        %v1124 = vld [vmem:[%s1120 + $0xc] sm:$0xf]
        %v1125 = vld [vmem:[%s1120 + $0x10] sm:$0xf]
        %v1126 = vld [vmem:[%s1120 + $0x14] sm:$0xf]
        %v1127 = vld [vmem:[%s1120 + $0x18] sm:$0xf]
        %v1128 = vld [vmem:[%s1120 + $0x1c] sm:$0xf]
        %v1129 = vld [vmem:[%s1120 + $0x20] sm:$0xf]
        %v1130 = vld [vmem:[%s1120 + $0x24] sm:$0xf]
        %v1131 = vld [vmem:[%s1120 + $0x28] sm:$0xf]
        %v1132 = vld [vmem:[%s1120 + $0x2c] sm:$0xf]
        %v1133 = vld [vmem:[%s1120 + $0x30] sm:$0xf]
        %v1134 = vld [vmem:[%s1120 + $0x34] sm:$0xf]
        %v1135 = vld [vmem:[%s1120 + $0x38] sm:$0xf]
        %v1136 = vld [vmem:[%s1120 + $0x3c] sm:$0xf]
        %v1137 = vunpack.c.l.b16 %v1115
        %v1138 = vunpack.c.l.b16 %v1119
        %v1139 = vpack.c.b16 %v1138, %v1137
        %v1157 = vunpack.c.l.b16 %v1121
        %v1158 = vunpack.c.l.b16 %v1122
        %v1159 = vunpack.c.l.b16 %v1123
        %v1160 = vunpack.c.l.b16 %v1124
        %v1161 = vunpack.c.l.b16 %v1125
        %v1162 = vunpack.c.l.b16 %v1126
        %v1163 = vunpack.c.l.b16 %v1127
        %v1164 = vunpack.c.l.b16 %v1128
        %v1165 = vunpack.c.l.b16 %v1129
        %v1166 = vunpack.c.l.b16 %v1130
        %v1167 = vunpack.c.l.b16 %v1131
        %v1168 = vunpack.c.l.b16 %v1132
        %v1169 = vunpack.c.l.b16 %v1133
        %v1170 = vunpack.c.l.b16 %v1134
        %v1171 = vunpack.c.l.b16 %v1135
        %v1172 = vunpack.c.l.b16 %v1136
        %v1173 = vpack.c.b16 %v1158, %v1157
        %v1174 = vpack.c.b16 %v1160, %v1159
        %v1175 = vpack.c.b16 %v1162, %v1161
        %v1176 = vpack.c.b16 %v1164, %v1163
        %v1177 = vpack.c.b16 %v1166, %v1165
        %v1178 = vpack.c.b16 %v1168, %v1167
        %v1179 = vpack.c.b16 %v1170, %v1169
        %v1180 = vpack.c.b16 %v1172, %v1171
        %1189 = vmatpush.bf16.msra.mxu0 %v1180
        %1190 = vmatpush.bf16.msra.mxu0 %v1179
        %1191 = vmatpush.bf16.msra.mxu0 %v1178
        %1192 = vmatpush.bf16.msra.mxu0 %v1177
        %1193 = vmatpush.bf16.msra.mxu0 %v1176
        %1194 = vmatpush.bf16.msra.mxu0 %v1175
        %1195 = vmatpush.bf16.msra.mxu0 %v1174
        %1196 = vmatpush.bf16.msra.mxu0 %v1173
        %1197 = vmatmul.bf16.gmra.mxu0 %v1139
        %v1198 = vpop.f32.mrf.mxu0
        %v1199 = vadd.f32 0.0, %v1198
        %v1200 = vpop.f32.mrf.mxu0
        %v1201 = vadd.f32 0.0, %v1200
        %1202 = vdwg.mxu0
        %v1203 = vadd.f32 %v1099, %v1199
        %v1204 = vadd.f32 %v1101, %v1201
        %s1205 = scalar_lea.vmem [#allocation2], 8
        %v1206 = vld [vmem:[%s1205] sm:$0xf]
        %v1207 = vld [vmem:[%s1205 + $0x8] sm:$0xf]
        %s1208 = scalar_lea.vmem [#allocation3], 192
        %v1209 = vld [vmem:[%s1208] sm:$0xf]
        %v1210 = vld [vmem:[%s1208 + $0x4] sm:$0xf]
        %v1211 = vld [vmem:[%s1208 + $0x8] sm:$0xf]
        %v1212 = vld [vmem:[%s1208 + $0xc] sm:$0xf]
        %v1213 = vld [vmem:[%s1208 + $0x10] sm:$0xf]
        %v1214 = vld [vmem:[%s1208 + $0x14] sm:$0xf]
        %v1215 = vld [vmem:[%s1208 + $0x18] sm:$0xf]
        %v1216 = vld [vmem:[%s1208 + $0x1c] sm:$0xf]
        %v1217 = vld [vmem:[%s1208 + $0x20] sm:$0xf]
        %v1218 = vld [vmem:[%s1208 + $0x24] sm:$0xf]
        %v1219 = vld [vmem:[%s1208 + $0x28] sm:$0xf]
        %v1220 = vld [vmem:[%s1208 + $0x2c] sm:$0xf]
        %v1221 = vld [vmem:[%s1208 + $0x30] sm:$0xf]
        %v1222 = vld [vmem:[%s1208 + $0x34] sm:$0xf]
        %v1223 = vld [vmem:[%s1208 + $0x38] sm:$0xf]
        %v1224 = vld [vmem:[%s1208 + $0x3c] sm:$0xf]
        %v1227 = vunpack.c.l.b16 %v1206
        %v1228 = vunpack.c.l.b16 %v1207
        %v1229 = vpack.c.b16 %v1228, %v1227
        %v1247 = vunpack.c.l.b16 %v1209
        %v1248 = vunpack.c.l.b16 %v1210
        %v1249 = vunpack.c.l.b16 %v1211
        %v1250 = vunpack.c.l.b16 %v1212
        %v1251 = vunpack.c.l.b16 %v1213
        %v1252 = vunpack.c.l.b16 %v1214
        %v1253 = vunpack.c.l.b16 %v1215
        %v1254 = vunpack.c.l.b16 %v1216
        %v1255 = vunpack.c.l.b16 %v1217
        %v1256 = vunpack.c.l.b16 %v1218
        %v1257 = vunpack.c.l.b16 %v1219
        %v1258 = vunpack.c.l.b16 %v1220
        %v1259 = vunpack.c.l.b16 %v1221
        %v1260 = vunpack.c.l.b16 %v1222
        %v1261 = vunpack.c.l.b16 %v1223
        %v1262 = vunpack.c.l.b16 %v1224
        %v1263 = vpack.c.b16 %v1248, %v1247
        %v1264 = vpack.c.b16 %v1250, %v1249
        %v1265 = vpack.c.b16 %v1252, %v1251
        %v1266 = vpack.c.b16 %v1254, %v1253
        %v1267 = vpack.c.b16 %v1256, %v1255
        %v1268 = vpack.c.b16 %v1258, %v1257
        %v1269 = vpack.c.b16 %v1260, %v1259
        %v1270 = vpack.c.b16 %v1262, %v1261
        %1279 = vmatpush.bf16.msra.mxu0 %v1270
        %1280 = vmatpush.bf16.msra.mxu0 %v1269
        %1281 = vmatpush.bf16.msra.mxu0 %v1268
        %1282 = vmatpush.bf16.msra.mxu0 %v1267
        %1283 = vmatpush.bf16.msra.mxu0 %v1266
        %1284 = vmatpush.bf16.msra.mxu0 %v1265
        %1285 = vmatpush.bf16.msra.mxu0 %v1264
        %1286 = vmatpush.bf16.msra.mxu0 %v1263
        %1287 = vmatmul.bf16.gmra.mxu0 %v1229
        %v1288 = vpop.f32.mrf.mxu0
        %v1289 = vadd.f32 0.0, %v1288
        %v1290 = vpop.f32.mrf.mxu0
        %v1291 = vadd.f32 0.0, %v1290
        %1292 = vdwg.mxu0
        %v1293 = vadd.f32 %v1203, %v1289
        %v1294 = vadd.f32 %v1204, %v1291
        %v1295 = vld [vmem:[%s1205] sm:$0xf]
        %v1296 = vld [vmem:[%s1205 + $0x4] sm:$0x1]
        %v1297 = vld [vmem:[%s1205 + $0x8] sm:$0xf]
        %v1298 = vld [vmem:[%s1205 + $0xc] sm:$0x1]
        %v1300 = vshrl.u32 %v1295, 16
        %v1302 = vrot.slane %v1300, 4
        %v1303 = vshll.u32 %v1295, 16
        %v1305 = vrot.slane %v1303, 5
        %v1306 = vor.u32 %v1302, %v1305
        %v1307 = vrot.slane %v1306, 4
        %v1309 = vshll.u32 %v1296, 16
        %v1311 = vrot.slane %v1309, 5
        %v1312 = vsel %vm351, %v1307, %v1311
        %v1314 = vshrl.u32 %v1297, 16
        %v1316 = vrot.slane %v1314, 4
        %v1317 = vshll.u32 %v1297, 16
        %v1319 = vrot.slane %v1317, 5
        %v1320 = vor.u32 %v1316, %v1319
        %v1321 = vrot.slane %v1320, 4
        %v1323 = vshll.u32 %v1298, 16
        %v1325 = vrot.slane %v1323, 5
        %v1326 = vsel %vm351, %v1321, %v1325
        %s1327 = scalar_lea.vmem [#allocation3], 256
        %v1328 = vld [vmem:[%s1327] sm:$0xf]
        %v1329 = vld [vmem:[%s1327 + $0x4] sm:$0xf]
        %v1330 = vld [vmem:[%s1327 + $0x8] sm:$0xf]
        %v1331 = vld [vmem:[%s1327 + $0xc] sm:$0xf]
        %v1332 = vld [vmem:[%s1327 + $0x10] sm:$0xf]
        %v1333 = vld [vmem:[%s1327 + $0x14] sm:$0xf]
        %v1334 = vld [vmem:[%s1327 + $0x18] sm:$0xf]
        %v1335 = vld [vmem:[%s1327 + $0x1c] sm:$0xf]
        %v1336 = vld [vmem:[%s1327 + $0x20] sm:$0xf]
        %v1337 = vld [vmem:[%s1327 + $0x24] sm:$0xf]
        %v1338 = vld [vmem:[%s1327 + $0x28] sm:$0xf]
        %v1339 = vld [vmem:[%s1327 + $0x2c] sm:$0xf]
        %v1340 = vld [vmem:[%s1327 + $0x30] sm:$0xf]
        %v1341 = vld [vmem:[%s1327 + $0x34] sm:$0xf]
        %v1342 = vld [vmem:[%s1327 + $0x38] sm:$0xf]
        %v1343 = vld [vmem:[%s1327 + $0x3c] sm:$0xf]
        %v1344 = vunpack.c.l.b16 %v1312
        %v1345 = vunpack.c.l.b16 %v1326
        %v1346 = vpack.c.b16 %v1345, %v1344
        %v1364 = vunpack.c.l.b16 %v1328
        %v1365 = vunpack.c.l.b16 %v1329
        %v1366 = vunpack.c.l.b16 %v1330
        %v1367 = vunpack.c.l.b16 %v1331
        %v1368 = vunpack.c.l.b16 %v1332
        %v1369 = vunpack.c.l.b16 %v1333
        %v1370 = vunpack.c.l.b16 %v1334
        %v1371 = vunpack.c.l.b16 %v1335
        %v1372 = vunpack.c.l.b16 %v1336
        %v1373 = vunpack.c.l.b16 %v1337
        %v1374 = vunpack.c.l.b16 %v1338
        %v1375 = vunpack.c.l.b16 %v1339
        %v1376 = vunpack.c.l.b16 %v1340
        %v1377 = vunpack.c.l.b16 %v1341
        %v1378 = vunpack.c.l.b16 %v1342
        %v1379 = vunpack.c.l.b16 %v1343
        %v1380 = vpack.c.b16 %v1365, %v1364
        %v1381 = vpack.c.b16 %v1367, %v1366
        %v1382 = vpack.c.b16 %v1369, %v1368
        %v1383 = vpack.c.b16 %v1371, %v1370
        %v1384 = vpack.c.b16 %v1373, %v1372
        %v1385 = vpack.c.b16 %v1375, %v1374
        %v1386 = vpack.c.b16 %v1377, %v1376
        %v1387 = vpack.c.b16 %v1379, %v1378
        %1396 = vmatpush.bf16.msra.mxu0 %v1387
        %1397 = vmatpush.bf16.msra.mxu0 %v1386
        %1398 = vmatpush.bf16.msra.mxu0 %v1385
        %1399 = vmatpush.bf16.msra.mxu0 %v1384
        %1400 = vmatpush.bf16.msra.mxu0 %v1383
        %1401 = vmatpush.bf16.msra.mxu0 %v1382
        %1402 = vmatpush.bf16.msra.mxu0 %v1381
        %1403 = vmatpush.bf16.msra.mxu0 %v1380
        %1404 = vmatmul.bf16.gmra.mxu0 %v1346
        %v1405 = vpop.f32.mrf.mxu0
        %v1406 = vadd.f32 0.0, %v1405
        %v1407 = vpop.f32.mrf.mxu0
        %v1408 = vadd.f32 0.0, %v1407
        %1409 = vdwg.mxu0
        %v1410 = vadd.f32 %v1293, %v1406
        %v1411 = vadd.f32 %v1294, %v1408
        %v1412 = vld [vmem:[%s1205] sm:$0xe]
        %v1413 = vld [vmem:[%s1205 + $0x8] sm:$0xe]
        %v1418 = vrot.slane %v1412, 5
        %v1419 = vrot.slane %v1418, 4
        %v1420 = vrot.slane %v1296, 5
        %v1421 = vsel %vm1111, %v1419, %v1420
        %v1422 = vrot.slane %v1413, 5
        %v1423 = vrot.slane %v1422, 4
        %v1424 = vrot.slane %v1298, 5
        %v1425 = vsel %vm1111, %v1423, %v1424
        %s1426 = scalar_lea.vmem [#allocation3], 320
        %v1427 = vld [vmem:[%s1426] sm:$0xf]
        %v1428 = vld [vmem:[%s1426 + $0x4] sm:$0xf]
        %v1429 = vld [vmem:[%s1426 + $0x8] sm:$0xf]
        %v1430 = vld [vmem:[%s1426 + $0xc] sm:$0xf]
        %v1431 = vld [vmem:[%s1426 + $0x10] sm:$0xf]
        %v1432 = vld [vmem:[%s1426 + $0x14] sm:$0xf]
        %v1433 = vld [vmem:[%s1426 + $0x18] sm:$0xf]
        %v1434 = vld [vmem:[%s1426 + $0x1c] sm:$0xf]
        %v1435 = vld [vmem:[%s1426 + $0x20] sm:$0xf]
        %v1436 = vld [vmem:[%s1426 + $0x24] sm:$0xf]
        %v1437 = vld [vmem:[%s1426 + $0x28] sm:$0xf]
        %v1438 = vld [vmem:[%s1426 + $0x2c] sm:$0xf]
        %v1439 = vld [vmem:[%s1426 + $0x30] sm:$0xf]
        %v1440 = vld [vmem:[%s1426 + $0x34] sm:$0xf]
        %v1441 = vld [vmem:[%s1426 + $0x38] sm:$0xf]
        %v1442 = vld [vmem:[%s1426 + $0x3c] sm:$0xf]
        %v1443 = vunpack.c.l.b16 %v1421
        %v1444 = vunpack.c.l.b16 %v1425
        %v1445 = vpack.c.b16 %v1444, %v1443
        %v1463 = vunpack.c.l.b16 %v1427
        %v1464 = vunpack.c.l.b16 %v1428
        %v1465 = vunpack.c.l.b16 %v1429
        %v1466 = vunpack.c.l.b16 %v1430
        %v1467 = vunpack.c.l.b16 %v1431
        %v1468 = vunpack.c.l.b16 %v1432
        %v1469 = vunpack.c.l.b16 %v1433
        %v1470 = vunpack.c.l.b16 %v1434
        %v1471 = vunpack.c.l.b16 %v1435
        %v1472 = vunpack.c.l.b16 %v1436
        %v1473 = vunpack.c.l.b16 %v1437
        %v1474 = vunpack.c.l.b16 %v1438
        %v1475 = vunpack.c.l.b16 %v1439
        %v1476 = vunpack.c.l.b16 %v1440
        %v1477 = vunpack.c.l.b16 %v1441
        %v1478 = vunpack.c.l.b16 %v1442
        %v1479 = vpack.c.b16 %v1464, %v1463
        %v1480 = vpack.c.b16 %v1466, %v1465
        %v1481 = vpack.c.b16 %v1468, %v1467
        %v1482 = vpack.c.b16 %v1470, %v1469
        %v1483 = vpack.c.b16 %v1472, %v1471
        %v1484 = vpack.c.b16 %v1474, %v1473
        %v1485 = vpack.c.b16 %v1476, %v1475
        %v1486 = vpack.c.b16 %v1478, %v1477
        %1495 = vmatpush.bf16.msra.mxu0 %v1486
        %1496 = vmatpush.bf16.msra.mxu0 %v1485
        %1497 = vmatpush.bf16.msra.mxu0 %v1484
        %1498 = vmatpush.bf16.msra.mxu0 %v1483
        %1499 = vmatpush.bf16.msra.mxu0 %v1482
        %1500 = vmatpush.bf16.msra.mxu0 %v1481
        %1501 = vmatpush.bf16.msra.mxu0 %v1480
        %1502 = vmatpush.bf16.msra.mxu0 %v1479
        %1503 = vmatmul.bf16.gmra.mxu0 %v1445
        %v1504 = vpop.f32.mrf.mxu0
        %v1505 = vadd.f32 0.0, %v1504
        %v1506 = vpop.f32.mrf.mxu0
        %v1507 = vadd.f32 0.0, %v1506
        %1508 = vdwg.mxu0
        %v1509 = vadd.f32 %v1410, %v1505
        %v1510 = vadd.f32 %v1411, %v1507
        %s1511 = scalar_lea.vmem [#allocation2], 16
        %v1512 = vld [vmem:[%s1511] sm:$0xf]
        %v1513 = vld [vmem:[%s1511 + $0x8] sm:$0xf]
        %s1514 = scalar_lea.vmem [#allocation3], 384
        %v1515 = vld [vmem:[%s1514] sm:$0xf]
        %v1516 = vld [vmem:[%s1514 + $0x4] sm:$0xf]
        %v1517 = vld [vmem:[%s1514 + $0x8] sm:$0xf]
        %v1518 = vld [vmem:[%s1514 + $0xc] sm:$0xf]
        %v1519 = vld [vmem:[%s1514 + $0x10] sm:$0xf]
        %v1520 = vld [vmem:[%s1514 + $0x14] sm:$0xf]
        %v1521 = vld [vmem:[%s1514 + $0x18] sm:$0xf]
        %v1522 = vld [vmem:[%s1514 + $0x1c] sm:$0xf]
        %v1523 = vld [vmem:[%s1514 + $0x20] sm:$0xf]
        %v1524 = vld [vmem:[%s1514 + $0x24] sm:$0xf]
        %v1525 = vld [vmem:[%s1514 + $0x28] sm:$0xf]
        %v1526 = vld [vmem:[%s1514 + $0x2c] sm:$0xf]
        %v1527 = vld [vmem:[%s1514 + $0x30] sm:$0xf]
        %v1528 = vld [vmem:[%s1514 + $0x34] sm:$0xf]
        %v1529 = vld [vmem:[%s1514 + $0x38] sm:$0xf]
        %v1530 = vld [vmem:[%s1514 + $0x3c] sm:$0xf]
        %v1533 = vunpack.c.l.b16 %v1512
        %v1534 = vunpack.c.l.b16 %v1513
        %v1535 = vpack.c.b16 %v1534, %v1533
        %v1553 = vunpack.c.l.b16 %v1515
        %v1554 = vunpack.c.l.b16 %v1516
        %v1555 = vunpack.c.l.b16 %v1517
        %v1556 = vunpack.c.l.b16 %v1518
        %v1557 = vunpack.c.l.b16 %v1519
        %v1558 = vunpack.c.l.b16 %v1520
        %v1559 = vunpack.c.l.b16 %v1521
        %v1560 = vunpack.c.l.b16 %v1522
        %v1561 = vunpack.c.l.b16 %v1523
        %v1562 = vunpack.c.l.b16 %v1524
        %v1563 = vunpack.c.l.b16 %v1525
        %v1564 = vunpack.c.l.b16 %v1526
        %v1565 = vunpack.c.l.b16 %v1527
        %v1566 = vunpack.c.l.b16 %v1528
        %v1567 = vunpack.c.l.b16 %v1529
        %v1568 = vunpack.c.l.b16 %v1530
        %v1569 = vpack.c.b16 %v1554, %v1553
        %v1570 = vpack.c.b16 %v1556, %v1555
        %v1571 = vpack.c.b16 %v1558, %v1557
        %v1572 = vpack.c.b16 %v1560, %v1559
        %v1573 = vpack.c.b16 %v1562, %v1561
        %v1574 = vpack.c.b16 %v1564, %v1563
        %v1575 = vpack.c.b16 %v1566, %v1565
        %v1576 = vpack.c.b16 %v1568, %v1567
        %1585 = vmatpush.bf16.msra.mxu0 %v1576
        %1586 = vmatpush.bf16.msra.mxu0 %v1575
        %1587 = vmatpush.bf16.msra.mxu0 %v1574
        %1588 = vmatpush.bf16.msra.mxu0 %v1573
        %1589 = vmatpush.bf16.msra.mxu0 %v1572
        %1590 = vmatpush.bf16.msra.mxu0 %v1571
        %1591 = vmatpush.bf16.msra.mxu0 %v1570
        %1592 = vmatpush.bf16.msra.mxu0 %v1569
        %1593 = vmatmul.bf16.gmra.mxu0 %v1535
        %v1594 = vpop.f32.mrf.mxu0
        %v1595 = vadd.f32 0.0, %v1594
        %v1596 = vpop.f32.mrf.mxu0
        %v1597 = vadd.f32 0.0, %v1596
        %1598 = vdwg.mxu0
        %v1599 = vadd.f32 %v1509, %v1595
        %v1600 = vadd.f32 %v1510, %v1597
        %v1601 = vld [vmem:[%s1511] sm:$0xf]
        %v1602 = vld [vmem:[%s1511 + $0x4] sm:$0x1]
        %v1603 = vld [vmem:[%s1511 + $0x8] sm:$0xf]
        %v1604 = vld [vmem:[%s1511 + $0xc] sm:$0x1]
        %v1606 = vshrl.u32 %v1601, 16
        %v1608 = vrot.slane %v1606, 4
        %v1609 = vshll.u32 %v1601, 16
        %v1611 = vrot.slane %v1609, 5
        %v1612 = vor.u32 %v1608, %v1611
        %v1613 = vrot.slane %v1612, 4
        %v1615 = vshll.u32 %v1602, 16
        %v1617 = vrot.slane %v1615, 5
        %v1618 = vsel %vm351, %v1613, %v1617
        %v1620 = vshrl.u32 %v1603, 16
        %v1622 = vrot.slane %v1620, 4
        %v1623 = vshll.u32 %v1603, 16
        %v1625 = vrot.slane %v1623, 5
        %v1626 = vor.u32 %v1622, %v1625
        %v1627 = vrot.slane %v1626, 4
        %v1629 = vshll.u32 %v1604, 16
        %v1631 = vrot.slane %v1629, 5
        %v1632 = vsel %vm351, %v1627, %v1631
        %s1633 = scalar_lea.vmem [#allocation3], 448
        %v1634 = vld [vmem:[%s1633] sm:$0xf]
        %v1635 = vld [vmem:[%s1633 + $0x4] sm:$0xf]
        %v1636 = vld [vmem:[%s1633 + $0x8] sm:$0xf]
        %v1637 = vld [vmem:[%s1633 + $0xc] sm:$0xf]
        %v1638 = vld [vmem:[%s1633 + $0x10] sm:$0xf]
        %v1639 = vld [vmem:[%s1633 + $0x14] sm:$0xf]
        %v1640 = vld [vmem:[%s1633 + $0x18] sm:$0xf]
        %v1641 = vld [vmem:[%s1633 + $0x1c] sm:$0xf]
        %v1642 = vld [vmem:[%s1633 + $0x20] sm:$0xf]
        %v1643 = vld [vmem:[%s1633 + $0x24] sm:$0xf]
        %v1644 = vld [vmem:[%s1633 + $0x28] sm:$0xf]
        %v1645 = vld [vmem:[%s1633 + $0x2c] sm:$0xf]
        %v1646 = vld [vmem:[%s1633 + $0x30] sm:$0xf]
        %v1647 = vld [vmem:[%s1633 + $0x34] sm:$0xf]
        %v1648 = vld [vmem:[%s1633 + $0x38] sm:$0xf]
        %v1649 = vld [vmem:[%s1633 + $0x3c] sm:$0xf]
        %v1650 = vunpack.c.l.b16 %v1618
        %v1651 = vunpack.c.l.b16 %v1632
        %v1652 = vpack.c.b16 %v1651, %v1650
        %v1670 = vunpack.c.l.b16 %v1634
        %v1671 = vunpack.c.l.b16 %v1635
        %v1672 = vunpack.c.l.b16 %v1636
        %v1673 = vunpack.c.l.b16 %v1637
        %v1674 = vunpack.c.l.b16 %v1638
        %v1675 = vunpack.c.l.b16 %v1639
        %v1676 = vunpack.c.l.b16 %v1640
        %v1677 = vunpack.c.l.b16 %v1641
        %v1678 = vunpack.c.l.b16 %v1642
        %v1679 = vunpack.c.l.b16 %v1643
        %v1680 = vunpack.c.l.b16 %v1644
        %v1681 = vunpack.c.l.b16 %v1645
        %v1682 = vunpack.c.l.b16 %v1646
        %v1683 = vunpack.c.l.b16 %v1647
        %v1684 = vunpack.c.l.b16 %v1648
        %v1685 = vunpack.c.l.b16 %v1649
        %v1686 = vpack.c.b16 %v1671, %v1670
        %v1687 = vpack.c.b16 %v1673, %v1672
        %v1688 = vpack.c.b16 %v1675, %v1674
        %v1689 = vpack.c.b16 %v1677, %v1676
        %v1690 = vpack.c.b16 %v1679, %v1678
        %v1691 = vpack.c.b16 %v1681, %v1680
        %v1692 = vpack.c.b16 %v1683, %v1682
        %v1693 = vpack.c.b16 %v1685, %v1684
        %1702 = vmatpush.bf16.msra.mxu0 %v1693
        %1703 = vmatpush.bf16.msra.mxu0 %v1692
        %1704 = vmatpush.bf16.msra.mxu0 %v1691
        %1705 = vmatpush.bf16.msra.mxu0 %v1690
        %1706 = vmatpush.bf16.msra.mxu0 %v1689
        %1707 = vmatpush.bf16.msra.mxu0 %v1688
        %1708 = vmatpush.bf16.msra.mxu0 %v1687
        %1709 = vmatpush.bf16.msra.mxu0 %v1686
        %1710 = vmatmul.bf16.gmra.mxu0 %v1652
        %v1711 = vpop.f32.mrf.mxu0
        %v1712 = vadd.f32 0.0, %v1711
        %v1713 = vpop.f32.mrf.mxu0
        %v1714 = vadd.f32 0.0, %v1713
        %1715 = vdwg.mxu0
        %v1716 = vadd.f32 %v1599, %v1712
        %v1717 = vadd.f32 %v1600, %v1714
        %v1718 = vld [vmem:[%s1511] sm:$0xe]
        %v1719 = vld [vmem:[%s1511 + $0x8] sm:$0xe]
        %v1724 = vrot.slane %v1718, 5
        %v1725 = vrot.slane %v1724, 4
        %v1726 = vrot.slane %v1602, 5
        %v1727 = vsel %vm1111, %v1725, %v1726
        %v1728 = vrot.slane %v1719, 5
        %v1729 = vrot.slane %v1728, 4
        %v1730 = vrot.slane %v1604, 5
        %v1731 = vsel %vm1111, %v1729, %v1730
        %s1732 = scalar_lea.vmem [#allocation3], 512
        %v1733 = vld [vmem:[%s1732] sm:$0xf]
        %v1734 = vld [vmem:[%s1732 + $0x4] sm:$0xf]
        %v1735 = vld [vmem:[%s1732 + $0x8] sm:$0xf]
        %v1736 = vld [vmem:[%s1732 + $0xc] sm:$0xf]
        %v1737 = vld [vmem:[%s1732 + $0x10] sm:$0xf]
        %v1738 = vld [vmem:[%s1732 + $0x14] sm:$0xf]
        %v1739 = vld [vmem:[%s1732 + $0x18] sm:$0xf]
        %v1740 = vld [vmem:[%s1732 + $0x1c] sm:$0xf]
        %v1741 = vld [vmem:[%s1732 + $0x20] sm:$0xf]
        %v1742 = vld [vmem:[%s1732 + $0x24] sm:$0xf]
        %v1743 = vld [vmem:[%s1732 + $0x28] sm:$0xf]
        %v1744 = vld [vmem:[%s1732 + $0x2c] sm:$0xf]
        %v1745 = vld [vmem:[%s1732 + $0x30] sm:$0xf]
        %v1746 = vld [vmem:[%s1732 + $0x34] sm:$0xf]
        %v1747 = vld [vmem:[%s1732 + $0x38] sm:$0xf]
        %v1748 = vld [vmem:[%s1732 + $0x3c] sm:$0xf]
        %v1749 = vunpack.c.l.b16 %v1727
        %v1750 = vunpack.c.l.b16 %v1731
        %v1751 = vpack.c.b16 %v1750, %v1749
        %v1769 = vunpack.c.l.b16 %v1733
        %v1770 = vunpack.c.l.b16 %v1734
        %v1771 = vunpack.c.l.b16 %v1735
        %v1772 = vunpack.c.l.b16 %v1736
        %v1773 = vunpack.c.l.b16 %v1737
        %v1774 = vunpack.c.l.b16 %v1738
        %v1775 = vunpack.c.l.b16 %v1739
        %v1776 = vunpack.c.l.b16 %v1740
        %v1777 = vunpack.c.l.b16 %v1741
        %v1778 = vunpack.c.l.b16 %v1742
        %v1779 = vunpack.c.l.b16 %v1743
        %v1780 = vunpack.c.l.b16 %v1744
        %v1781 = vunpack.c.l.b16 %v1745
        %v1782 = vunpack.c.l.b16 %v1746
        %v1783 = vunpack.c.l.b16 %v1747
        %v1784 = vunpack.c.l.b16 %v1748
        %v1785 = vpack.c.b16 %v1770, %v1769
        %v1786 = vpack.c.b16 %v1772, %v1771
        %v1787 = vpack.c.b16 %v1774, %v1773
        %v1788 = vpack.c.b16 %v1776, %v1775
        %v1789 = vpack.c.b16 %v1778, %v1777
        %v1790 = vpack.c.b16 %v1780, %v1779
        %v1791 = vpack.c.b16 %v1782, %v1781
        %v1792 = vpack.c.b16 %v1784, %v1783
        %1801 = vmatpush.bf16.msra.mxu0 %v1792
        %1802 = vmatpush.bf16.msra.mxu0 %v1791
        %1803 = vmatpush.bf16.msra.mxu0 %v1790
        %1804 = vmatpush.bf16.msra.mxu0 %v1789
        %1805 = vmatpush.bf16.msra.mxu0 %v1788
        %1806 = vmatpush.bf16.msra.mxu0 %v1787
        %1807 = vmatpush.bf16.msra.mxu0 %v1786
        %1808 = vmatpush.bf16.msra.mxu0 %v1785
        %1809 = vmatmul.bf16.gmra.mxu0 %v1751
        %v1810 = vpop.f32.mrf.mxu0
        %v1811 = vadd.f32 0.0, %v1810
        %v1812 = vpop.f32.mrf.mxu0
        %v1813 = vadd.f32 0.0, %v1812
        %1814 = vdwg.mxu0
        %v1815 = vadd.f32 %v1716, %v1811
        %v1816 = vadd.f32 %v1717, %v1813
        %v1817 = vld [vmem:[%s4] sm:$0x1]
        %v1819 = vperm.slane %v1817, 0
        %v1821 = vadd.f32 %v1815, %v1819
        %v1822 = vadd.f32 %v1816, %v1819
        %v1823 = vld [vmem:[%s5] sm:$0xf]
        %v1824 = vld [vmem:[%s5 + $0x4] sm:$0xf]
        %v1825 = vld [vmem:[%s5 + $0x8] sm:$0xf]
        %v1826 = vld [vmem:[%s5 + $0xc] sm:$0xf]
        %v1827 = vld [vmem:[%s5 + $0x10] sm:$0xf]
        %v1828 = vld [vmem:[%s5 + $0x14] sm:$0xf]
        %v1829 = vld [vmem:[%s5 + $0x18] sm:$0xf]
        %v1830 = vld [vmem:[%s5 + $0x1c] sm:$0xf]
        %v1831 = vld [vmem:[%s5 + $0x20] sm:$0xf]
        %v1832 = vld [vmem:[%s5 + $0x24] sm:$0xf]
        %v1833 = vld [vmem:[%s5 + $0x28] sm:$0xf]
        %v1834 = vld [vmem:[%s5 + $0x2c] sm:$0xf]
        %v1835 = vld [vmem:[%s5 + $0x30] sm:$0xf]
        %v1836 = vld [vmem:[%s5 + $0x34] sm:$0xf]
        %v1837 = vld [vmem:[%s5 + $0x38] sm:$0xf]
        %v1838 = vld [vmem:[%s5 + $0x3c] sm:$0xf]
        %v1839 = vld [vmem:[%s6] sm:$0x1]
        %v1841 = vperm.slane %v1839, 0
        %v1859 = vunpack.c.l.b16 %v1823
        %v1860 = vunpack.c.l.b16 %v1824
        %v1861 = vunpack.c.l.b16 %v1825
        %v1862 = vunpack.c.l.b16 %v1826
        %v1863 = vunpack.c.l.b16 %v1827
        %v1864 = vunpack.c.l.b16 %v1828
        %v1865 = vunpack.c.l.b16 %v1829
        %v1866 = vunpack.c.l.b16 %v1830
        %v1867 = vunpack.c.l.b16 %v1831
        %v1868 = vunpack.c.l.b16 %v1832
        %v1869 = vunpack.c.l.b16 %v1833
        %v1870 = vunpack.c.l.b16 %v1834
        %v1871 = vunpack.c.l.b16 %v1835
        %v1872 = vunpack.c.l.b16 %v1836
        %v1873 = vunpack.c.l.b16 %v1837
        %v1874 = vunpack.c.l.b16 %v1838
        %v1875 = vpack.c.b16 %v1860, %v1859
        %v1876 = vpack.c.b16 %v1862, %v1861
        %v1877 = vpack.c.b16 %v1864, %v1863
        %v1878 = vpack.c.b16 %v1866, %v1865
        %v1879 = vpack.c.b16 %v1868, %v1867
        %v1880 = vpack.c.b16 %v1870, %v1869
        %v1881 = vpack.c.b16 %v1872, %v1871
        %v1882 = vpack.c.b16 %v1874, %v1873
        %1891 = vmatpush.bf16.msra.mxu0 %v1882
        %1892 = vmatpush.bf16.msra.mxu0 %v1881
        %1893 = vmatpush.bf16.msra.mxu0 %v1880
        %1894 = vmatpush.bf16.msra.mxu0 %v1879
        %1895 = vmatpush.bf16.msra.mxu0 %v1878
        %1896 = vmatpush.bf16.msra.mxu0 %v1877
        %1897 = vmatpush.bf16.msra.mxu0 %v1876
        %1898 = vmatpush.bf16.msra.mxu0 %v1875
        %1899 = vmatmul.bf16.gmra.mxu0 %v430
        %v1900 = vpop.f32.mrf.mxu0
        %v1901 = vadd.f32 %v1841, %v1900
        %v1902 = vpop.f32.mrf.mxu0
        %v1903 = vadd.f32 %v1841, %v1902
        %1904 = vdwg.mxu0
        %v1905 = vadd.f32 %v1821, %v1901
        %v1906 = vadd.f32 %v1822, %v1903
        %v1907 = vmax.f32 %v1905, 0.0
        %v1908 = vmax.f32 %v1906, 0.0
        %1909 = vst [vmem:[%s302] sm:$0xff] %v1907
        %1910 = vst [vmem:[%s302 + $0x8] sm:$0xff] %v1908
        %s1911 = sand.u32 %s196, 1
        %s1912 = scalar_lea.sflag [#allocation5], %s1911
        %s1913 = sand.u32 %s196, 1
        %s1914 = smul.addr %s1913, 16
        %s1915 = scalar_lea.vmem [#allocation6], %s1914
        // Predicated region
        $region61: #{tpu_custom_call.1} parent=47 // pred_check
          %p1916 = pneg %p206
        $region62: #{tpu_custom_call.1} parent=47 // pred_check_branch
          %1918 = sbr.rel (%p1916) target = $region64
        $region63: #{tpu_custom_call.1} parent=47 // pred_region
          %s1919 = smul.u32 2, %s27
          %1921 = vsyncadd %s1912, 0
          %s1922 = smul.addr %s26, 8
          %s1923 = sadd.s32 %s1919, %s1922
          %s1924 = smul.addr %s1923, 8
          %s1925 = scalar_lea.hbm %s7, %s1924
          %s1926 = sshll.u32 %s1915, 4
          %s1927 = int_to_ptr.vmem [resolvable:$true] %s1926
          %s1928 = sshll.u32 %s1925, 4
          %s1929 = int_to_ptr.hbm [resolvable:$true] %s1928
          %1934 = dma.vmem_to_hbm [thread:$0]  %s1927, 256, %s1929, %s1912, 128, 128, 8
        $region64: #{tpu_custom_call.1} parent=47 // pred_fallthru
          _
      $region48: #{tpu_custom_call.1} parent=5 // pred_fallthru
        _
      %p1935 = scmp.le.s32.totalorder 2, %s17
      // Predicated region
      $region65: #{tpu_custom_call.1} parent=5 // pred_check
        %p1936 = pneg %p1935
      $region66: #{tpu_custom_call.1} parent=5 // pred_check_branch
        %1938 = sbr.rel (%p1936) target = $region68
      $region67: #{tpu_custom_call.1} parent=5 // pred_region
        %s1939 = ssub.s32 %s17, 2
        // Predicated region
        $region69: #{tpu_custom_call.1} parent=67 // pred_check
          %p1940 = pneg %p212
        $region70: #{tpu_custom_call.1} parent=67 // pred_check_branch
          %1942 = sbr.rel (%p1940) target = $region72
        $region71: #{tpu_custom_call.1} parent=67 // pred_region
          %s1943 = sand.u32 %s197, 1
          %s1944 = scalar_lea.sflag [#allocation5], %s1943
          %s1945 = sand.u32 %s197, 1
          %s1946 = smul.addr %s1945, 16
          %s1947 = scalar_lea.vmem [#allocation6], %s1946
          %1949 = dma.done %s1944, 256
        $region72: #{tpu_custom_call.1} parent=67 // pred_fallthru
          _
      $region68: #{tpu_custom_call.1} parent=5 // pred_fallthru
        _
    $region6: #{tpu_custom_call.1} parent=1 // loop_footer
      %s21 = sadd.s32 1, %s17
    $region7: #{tpu_custom_call.1} parent=1 // loop_footer_branch
      %16 = sbr.rel target = $region3
    $region8: #{tpu_custom_call.1} parent=1 // loop_exit
      _
    %1950 = vsyncpa [#allocation4], 1
    %s1951 = scalar_lea.sflag [#allocation4], 1
    %1952 = vsyncpa %s1951, 1
    %1953 = vsyncpa [#allocation5], 1
    %s1954 = scalar_lea.sflag [#allocation5], 1
    %1955 = vsyncpa %s1954, 1

// kernel: tpu_custom_call.1
$region0: #{tpu_custom_call.1}
  #allocation0 [shape = 'u32[]', space=smem, size = 0x4, offset = 0x4, fixed_abs, tag = 'smem constant byte address 0x4 - core index']
  #allocation1 [shape = 'u32[72,128]{1,0:T(1,128)}', space=vmem, size = 0x9000, scoped, tag = 'internal scratch']
  #allocation2 [shape = 'bf16[4,10,128]{2,1,0:T(8,128)(2,1)}', space=vmem, size = 0x4000, scoped, tag = 'scratch operand']
  %s0 = inlined_call_operand.vmem [shape: f32[2,11,9,128], index: 0, kind: input, shape index: {}]
  %s1 = inlined_call_operand.vmem [shape: bf16[4,128,128], index: 1, kind: input, shape index: {}]
  %s2 = inlined_call_operand.vmem [shape: f32[1,128], index: 2, kind: input, shape index: {}]
  %s3 = inlined_call_operand.hbm [shape: bf16[9,128,128], index: 3, kind: input, shape index: {}]
  %s4 = inlined_call_operand.vmem [shape: f32[1,128], index: 4, kind: input, shape index: {}]
  %s5 = inlined_call_operand.vmem [shape: bf16[128,128], index: 5, kind: input, shape index: {}]
  %s6 = inlined_call_operand.vmem [shape: f32[1,128], index: 6, kind: input, shape index: {}]
  %s7 = inlined_call_operand.hbm [shape: f32[2,8,8,128], index: 7, kind: output, shape index: {}]
  %s8 = sld [smem:[#allocation0]]
  $region73: #{tpu_custom_call.1} parent=0
    _
  %s10 = ssub.s32 1, %s8
  %s11 = scalar_select 0, %s10, %s8
  $region1: #{tpu_custom_call.1} parent=0
    #allocation3 [shape = 'u8[294912]{0}', space=vmem, size = 0x48000, scoped, tag = 'input window, operand 3, single buffered']
    #allocation4 [shape = 's32[2]{0}', space=sflag, size = 0x8, scoped, tag = 'scoped memory for tpu_custom_call.1']
    #allocation5 [shape = 's32[2]{0}', space=sflag, size = 0x8, scoped, tag = 'scoped memory for tpu_custom_call.1']
    #allocation6 [shape = 'u8[16384]{0}', space=vmem, size = 0x4000, scoped, tag = 'output window, operand 0']
    %12 = vsyncpa [#allocation4], 0
    %13 = vsyncpa [#allocation5], 0
    %s14 = scalar_lea.sflag [#allocation5], 1
    %15 = vsyncpa %s14, 0
    loop: start=0, step=1, limit=10
    $region2: #{tpu_custom_call.1} parent=1 // loop_pre_header
      _
    $region3: #{tpu_custom_call.1} parent=1 // loop_header
      %s17 = sphi 0, %s21
      %p18 = scmp.ge.s32.totalorder %s17, 10
      %s24 = sphi 0, %s36
      %s25 = sphi 0, %s32
      %s26 = sphi 0, %s24
      %s27 = sphi 0, %s25
      %s28 = sphi 0, %s26
      %s29 = sphi 0, %s27
      %s39 = sphi 0, %s41
      %s42 = sphi 0, %s39
      %s43 = sphi 0, %s42
      %s59 = sphi 0, %s43
      %s63 = sphi 0, %s63
      %s65 = sphi 0, %s63
      %s66 = sphi 0, %s65
      %s80 = sphi 0, %s66
      %s84 = sphi 0, %s84
      %s86 = sphi 0, %s84
      %s87 = sphi 0, %s86
      %s101 = sphi 0, %s87
      %s105 = sphi 0, %s105
      %s107 = sphi 0, %s105
      %s108 = sphi 0, %s107
      %s122 = sphi 0, %s108
      %s126 = sphi 0, %s126
      %s128 = sphi 0, %s126
      %s129 = sphi 0, %s128
      %s143 = sphi 0, %s129
      %s147 = sphi 0, %s147
      %s149 = sphi 0, %s147
      %s150 = sphi 0, %s149
      %s164 = sphi 0, %s150
      %s168 = sphi 0, %s168
      %s170 = sphi 0, %s168
      %s171 = sphi 0, %s170
      %s185 = sphi 0, %s171
      %s193 = sphi 0, %s195
      %s196 = sphi 0, %s193
      %s197 = sphi 0, %s196
      %s213 = sphi 0, %s197
    $region4: #{tpu_custom_call.1} parent=1 // loop_header_branch
      %20 = sbr.rel (%p18) target = $region8
    $region5: #{tpu_custom_call.1} parent=1 // loop_body
      %s22 = ssub.s32 %s17, 1
      %s23 = ssub.s32 %s17, 2
      %s30 = sadd.s32 1, %s25
      %p31 = scmp.ge.s32.totalorder %s30, 4
      %s32 = scalar_select %p31, 0, %s30
      %s33 = sadd.s32 1, %s24
      %s34 = scalar_select %p31, %s33, %s24
      %p35 = scmp.ge.s32.totalorder %s34, 2
      %s36 = scalar_select %p35, 0, %s34
      %s37 = ssub.s32 %s24, %s36
      %p38 = scmp.eq.s32.totalorder %s37, 0
      %s40 = sadd.s32 %s39, 1
      %s41 = scalar_select %p38, %s39, %s40
      %p44 = pneg %p38
      %p45 = scmp.eq.s32.totalorder %s17, 7
      %p46 = por %p44, %p45
      %p47 = scmp.ne.s32.totalorder %s39, %s42
      %p48 = scmp.eq.s32.totalorder %s17, 0
      %p49 = por %p47, %p48
      %p50 = scmp.ne.s32.totalorder %s39, %s42
      %p51 = scmp.eq.s32.totalorder %s22, 7
      %p52 = por %p50, %p51
      %p53 = scmp.ne.s32.totalorder %s42, %s43
      %p54 = scmp.eq.s32.totalorder %s22, 0
      %p55 = por %p53, %p54
      %p56 = scmp.ne.s32.totalorder %s42, %s43
      %p57 = scmp.eq.s32.totalorder %s23, 7
      %p58 = por %p56, %p57
      %p60 = scmp.ne.s32.totalorder %s43, %s59
      %p61 = scmp.eq.s32.totalorder %s23, 0
      %p62 = por %p60, %p61
      %s64 = sadd.s32 %s63, 1
      %p67 = scmp.eq.s32.totalorder %s17, 7
      %p68 = scmp.ne.s32.totalorder %s63, %s65
      %p69 = scmp.eq.s32.totalorder %s17, 0
      %p70 = por %p68, %p69
      %p71 = scmp.ne.s32.totalorder %s63, %s65
      %p72 = scmp.eq.s32.totalorder %s22, 7
      %p73 = por %p71, %p72
      %p74 = scmp.ne.s32.totalorder %s65, %s66
      %p75 = scmp.eq.s32.totalorder %s22, 0
      %p76 = por %p74, %p75
      %p77 = scmp.ne.s32.totalorder %s65, %s66
      %p78 = scmp.eq.s32.totalorder %s23, 7
      %p79 = por %p77, %p78
      %p81 = scmp.ne.s32.totalorder %s66, %s80
      %p82 = scmp.eq.s32.totalorder %s23, 0
      %p83 = por %p81, %p82
      %s85 = sadd.s32 %s84, 1
      %p88 = scmp.eq.s32.totalorder %s17, 7
      %p89 = scmp.ne.s32.totalorder %s84, %s86
      %p90 = scmp.eq.s32.totalorder %s17, 0
      %p91 = por %p89, %p90
      %p92 = scmp.ne.s32.totalorder %s84, %s86
      %p93 = scmp.eq.s32.totalorder %s22, 7
      %p94 = por %p92, %p93
      %p95 = scmp.ne.s32.totalorder %s86, %s87
      %p96 = scmp.eq.s32.totalorder %s22, 0
      %p97 = por %p95, %p96
      %p98 = scmp.ne.s32.totalorder %s86, %s87
      %p99 = scmp.eq.s32.totalorder %s23, 7
      %p100 = por %p98, %p99
      %p102 = scmp.ne.s32.totalorder %s87, %s101
      %p103 = scmp.eq.s32.totalorder %s23, 0
      %p104 = por %p102, %p103
      %s106 = sadd.s32 %s105, 1
      %p109 = scmp.eq.s32.totalorder %s17, 7
      %p110 = scmp.ne.s32.totalorder %s105, %s107
      %p111 = scmp.eq.s32.totalorder %s17, 0
      %p112 = por %p110, %p111
      %p113 = scmp.ne.s32.totalorder %s105, %s107
      %p114 = scmp.eq.s32.totalorder %s22, 7
      %p115 = por %p113, %p114
      %p116 = scmp.ne.s32.totalorder %s107, %s108
      %p117 = scmp.eq.s32.totalorder %s22, 0
      %p118 = por %p116, %p117
      %p119 = scmp.ne.s32.totalorder %s107, %s108
      %p120 = scmp.eq.s32.totalorder %s23, 7
      %p121 = por %p119, %p120
      %p123 = scmp.ne.s32.totalorder %s108, %s122
      %p124 = scmp.eq.s32.totalorder %s23, 0
      %p125 = por %p123, %p124
      %s127 = sadd.s32 %s126, 1
      %p130 = scmp.eq.s32.totalorder %s17, 7
      %p131 = scmp.ne.s32.totalorder %s126, %s128
      %p132 = scmp.eq.s32.totalorder %s17, 0
      %p133 = por %p131, %p132
      %p134 = scmp.ne.s32.totalorder %s126, %s128
      %p135 = scmp.eq.s32.totalorder %s22, 7
      %p136 = por %p134, %p135
      %p137 = scmp.ne.s32.totalorder %s128, %s129
      %p138 = scmp.eq.s32.totalorder %s22, 0
      %p139 = por %p137, %p138
      %p140 = scmp.ne.s32.totalorder %s128, %s129
      %p141 = scmp.eq.s32.totalorder %s23, 7
      %p142 = por %p140, %p141
      %p144 = scmp.ne.s32.totalorder %s129, %s143
      %p145 = scmp.eq.s32.totalorder %s23, 0
      %p146 = por %p144, %p145
      %s148 = sadd.s32 %s147, 1
      %p151 = scmp.eq.s32.totalorder %s17, 7
      %p152 = scmp.ne.s32.totalorder %s147, %s149
      %p153 = scmp.eq.s32.totalorder %s17, 0
      %p154 = por %p152, %p153
      %p155 = scmp.ne.s32.totalorder %s147, %s149
      %p156 = scmp.eq.s32.totalorder %s22, 7
      %p157 = por %p155, %p156
      %p158 = scmp.ne.s32.totalorder %s149, %s150
      %p159 = scmp.eq.s32.totalorder %s22, 0
      %p160 = por %p158, %p159
      %p161 = scmp.ne.s32.totalorder %s149, %s150
      %p162 = scmp.eq.s32.totalorder %s23, 7
      %p163 = por %p161, %p162
      %p165 = scmp.ne.s32.totalorder %s150, %s164
      %p166 = scmp.eq.s32.totalorder %s23, 0
      %p167 = por %p165, %p166
      %s169 = sadd.s32 %s168, 1
      %p172 = scmp.eq.s32.totalorder %s17, 7
      %p173 = scmp.ne.s32.totalorder %s168, %s170
      %p174 = scmp.eq.s32.totalorder %s17, 0
      %p175 = por %p173, %p174
      %p176 = scmp.ne.s32.totalorder %s168, %s170
      %p177 = scmp.eq.s32.totalorder %s22, 7
      %p178 = por %p176, %p177
      %p179 = scmp.ne.s32.totalorder %s170, %s171
      %p180 = scmp.eq.s32.totalorder %s22, 0
      %p181 = por %p179, %p180
      %p182 = scmp.ne.s32.totalorder %s170, %s171
      %p183 = scmp.eq.s32.totalorder %s23, 7
      %p184 = por %p182, %p183
      %p186 = scmp.ne.s32.totalorder %s171, %s185
      %p187 = scmp.eq.s32.totalorder %s23, 0
      %p188 = por %p186, %p187
      %s189 = ssub.s32 %s24, %s36
      %s190 = ssub.s32 %s25, %s32
      %s191 = sor.u32 %s189, %s190
      %p192 = scmp.eq.s32.totalorder %s191, 0
      %s194 = sadd.s32 %s193, 1
      %s195 = scalar_select %p192, %s193, %s194
      %p198 = pneg %p192
      %p199 = scmp.eq.s32.totalorder %s17, 7
      %p200 = por %p198, %p199
      %p201 = scmp.ne.s32.totalorder %s193, %s196
      %p202 = scmp.eq.s32.totalorder %s17, 0
      %p203 = por %p201, %p202
      %p204 = scmp.ne.s32.totalorder %s193, %s196
      %p205 = scmp.eq.s32.totalorder %s22, 7
      %p206 = por %p204, %p205
      %p207 = scmp.ne.s32.totalorder %s196, %s197
      %p208 = scmp.eq.s32.totalorder %s22, 0
      %p209 = por %p207, %p208
      %p210 = scmp.ne.s32.totalorder %s196, %s197
      %p211 = scmp.eq.s32.totalorder %s23, 7
      %p212 = por %p210, %p211
      %p214 = scmp.ne.s32.totalorder %s197, %s213
      %p215 = scmp.eq.s32.totalorder %s23, 0
      %p216 = por %p214, %p215
      %p217 = scmp.le.s32.totalorder 1, %s17
      %p218 = scmp.lt.s32.totalorder %s17, 9
      %p219 = pnand %p217, %p218
      %p220 = pneg %p219
      // Predicated region
      $region9: #{tpu_custom_call.1} parent=5 // pred_check
        _
      $region10: #{tpu_custom_call.1} parent=5 // pred_check_branch
        %222 = sbr.rel (%p219) target = $region12
      $region11: #{tpu_custom_call.1} parent=5 // pred_region
        %s223 = ssub.s32 %s17, 1
        // Predicated region
        $region13: #{tpu_custom_call.1} parent=11 // pred_check
          %p224 = pneg %p76
        $region14: #{tpu_custom_call.1} parent=11 // pred_check_branch
          %226 = sbr.rel (%p224) target = $region16
        $region15: #{tpu_custom_call.1} parent=11 // pred_region
          _
        $region16: #{tpu_custom_call.1} parent=11 // pred_fallthru
          _
        // Predicated region
        $region17: #{tpu_custom_call.1} parent=11 // pred_check
          %p227 = pneg %p97
        $region18: #{tpu_custom_call.1} parent=11 // pred_check_branch
          %229 = sbr.rel (%p227) target = $region20
        $region19: #{tpu_custom_call.1} parent=11 // pred_region
          _
        $region20: #{tpu_custom_call.1} parent=11 // pred_fallthru
          _
        // Predicated region
        $region21: #{tpu_custom_call.1} parent=11 // pred_check
          %p230 = pneg %p118
        $region22: #{tpu_custom_call.1} parent=11 // pred_check_branch
          %232 = sbr.rel (%p230) target = $region24
        $region23: #{tpu_custom_call.1} parent=11 // pred_region
          %234 = vsyncadd [#allocation4], 0
          %s235 = sshll.u32 %s3, 4
          %s236 = int_to_ptr.hbm [resolvable:$true] %s235
          %s237 = sshll.u32 [#allocation3], 4
          %s238 = int_to_ptr.vmem [resolvable:$true] %s237
          %243 = dma.hbm_to_vmem [thread:$0]  %s236, 9216, %s238, [#allocation4], 64, 64, 4
        $region24: #{tpu_custom_call.1} parent=11 // pred_fallthru
          _
        // Predicated region
        $region25: #{tpu_custom_call.1} parent=11 // pred_check
          %p244 = pneg %p139
        $region26: #{tpu_custom_call.1} parent=11 // pred_check_branch
          %246 = sbr.rel (%p244) target = $region28
        $region27: #{tpu_custom_call.1} parent=11 // pred_region
          _
        $region28: #{tpu_custom_call.1} parent=11 // pred_fallthru
          _
        // Predicated region
        $region29: #{tpu_custom_call.1} parent=11 // pred_check
          %p247 = pneg %p160
        $region30: #{tpu_custom_call.1} parent=11 // pred_check_branch
          %249 = sbr.rel (%p247) target = $region32
        $region31: #{tpu_custom_call.1} parent=11 // pred_region
          _
        $region32: #{tpu_custom_call.1} parent=11 // pred_fallthru
          _
        // Predicated region
        $region33: #{tpu_custom_call.1} parent=11 // pred_check
          %p250 = pneg %p181
        $region34: #{tpu_custom_call.1} parent=11 // pred_check_branch
          %252 = sbr.rel (%p250) target = $region36
        $region35: #{tpu_custom_call.1} parent=11 // pred_region
          _
        $region36: #{tpu_custom_call.1} parent=11 // pred_fallthru
          _
      $region12: #{tpu_custom_call.1} parent=5 // pred_fallthru
        _
      %p253 = scmp.lt.s32.totalorder %s17, 8
      // Predicated region
      $region37: #{tpu_custom_call.1} parent=5 // pred_check
        %p254 = pneg %p253
      $region38: #{tpu_custom_call.1} parent=5 // pred_check_branch
        %256 = sbr.rel (%p254) target = $region40
      $region39: #{tpu_custom_call.1} parent=5 // pred_region
        // Predicated region
        $region41: #{tpu_custom_call.1} parent=39 // pred_check
          %p257 = pneg %p49
        $region42: #{tpu_custom_call.1} parent=39 // pred_check_branch
          %259 = sbr.rel (%p257) target = $region44
        $region43: #{tpu_custom_call.1} parent=39 // pred_region
          %p260 = scmp.lt.s32.totalorder %s24, 1
          %s261 = scalar_select %p260, %s24, 1
          %s262 = smul.addr %s261, 22
          %s263 = smul.addr %s262, 8
          %s264 = scalar_lea.vmem %s0, %s263
        $region44: #{tpu_custom_call.1} parent=39 // pred_fallthru
          _
      $region40: #{tpu_custom_call.1} parent=5 // pred_fallthru
        _
      %p265 = scmp.le.s32.totalorder 1, %s17
      %p266 = scmp.lt.s32.totalorder %s17, 9
      %p267 = pnand %p265, %p266
      %p268 = pneg %p267
      // Predicated region
      $region45: #{tpu_custom_call.1} parent=5 // pred_check
        _
      $region46: #{tpu_custom_call.1} parent=5 // pred_check_branch
        %270 = sbr.rel (%p267) target = $region48
      $region47: #{tpu_custom_call.1} parent=5 // pred_region
        %s271 = ssub.s32 %s17, 1
        // Predicated region
        $region49: #{tpu_custom_call.1} parent=47 // pred_check
          %p272 = pneg %p118
        $region50: #{tpu_custom_call.1} parent=47 // pred_check_branch
          %274 = sbr.rel (%p272) target = $region52
        $region51: #{tpu_custom_call.1} parent=47 // pred_region
          %276 = dma.done [#allocation4], 9216
        $region52: #{tpu_custom_call.1} parent=47 // pred_fallthru
          _
        %p277 = scmp.lt.s32.totalorder %s26, 1
        %s278 = scalar_select %p277, %s26, 1
        %s279 = smul.addr %s278, 22
        %s280 = smul.addr %s279, 8
        %s281 = scalar_lea.vmem %s0, %s280
        %p282 = pneg %p55
        %p283 = pneg %p52
        %p284 = pneg %p76
        %p285 = pneg %p73
        %p286 = pneg %p97
        %p287 = pneg %p94
        %p288 = pneg %p118
        %p289 = pneg %p115
        %p290 = pneg %p139
        %p291 = pneg %p136
        %p292 = pneg %p160
        %p293 = pneg %p157
        %p294 = pneg %p181
        %p295 = pneg %p178
        %p296 = pneg %p209
        %p297 = pneg %p206
        %s298 = sand.u32 %s196, 1
        %s299 = scalar_lea.sflag [#allocation5], %s298
        %s300 = sand.u32 %s196, 1
        %s301 = smul.addr %s300, 16
        %s302 = scalar_lea.vmem [#allocation6], %s301
        %p303 = scmp.lt.s32.totalorder %s26, 1
        %s304 = scalar_select %p303, %s26, 1
        %s305 = smul.addr %s304, 22
        %s306 = smul.addr %s305, 8
        %s307 = scalar_lea.vmem %s0, %s306
        %s308 = smul.u32 2, %s27
        %s310 = smul.u32 %s27, 2
        %s311 = smul.u32 %s310, 16
        %s312 = scalar_lea.vmem %s307, %s311
        %v313 = vld [vmem:[%s312] sm:$0xff]
        %v314 = vld [vmem:[%s312 + $0x8] sm:$0x1]
        %v315 = vld [vmem:[%s312 + $0x10] sm:$0xff]
        %v316 = vld [vmem:[%s312 + $0x18] sm:$0x1]
        %v317 = vld [vmem:[%s312 + $0x20] sm:$0xff]
        %v318 = vld [vmem:[%s312 + $0x28] sm:$0x1]
        %v319 = vld [vmem:[%s312 + $0x30] sm:$0xff]
        %v320 = vld [vmem:[%s312 + $0x38] sm:$0x1]
        %v321 = vld [vmem:[%s312 + $0x40] sm:$0xff]
        %v322 = vld [vmem:[%s312 + $0x48] sm:$0x1]
        %v323 = vpack.c.bf16 %v313, %v313
        %v324 = vpack.c.bf16 %v314, %v314
        %v325 = vpack.c.bf16 %v315, %v315
        %v326 = vpack.c.bf16 %v316, %v316
        %v327 = vpack.c.bf16 %v317, %v317
        %v328 = vpack.c.bf16 %v318, %v318
        %v329 = vpack.c.bf16 %v319, %v319
        %v330 = vpack.c.bf16 %v320, %v320
        %v331 = vpack.c.bf16 %v321, %v321
        %v332 = vpack.c.bf16 %v322, %v322
        %v333 = vld [vmem:[%s1] sm:$0xf]
        %v334 = vld [vmem:[%s1 + $0x4] sm:$0xf]
        %v335 = vld [vmem:[%s1 + $0x8] sm:$0xf]
        %v336 = vld [vmem:[%s1 + $0xc] sm:$0xf]
        %v337 = vld [vmem:[%s1 + $0x10] sm:$0xf]
        %v338 = vld [vmem:[%s1 + $0x14] sm:$0xf]
        %v339 = vld [vmem:[%s1 + $0x18] sm:$0xf]
        %v340 = vld [vmem:[%s1 + $0x1c] sm:$0xf]
        %v341 = vld [vmem:[%s1 + $0x20] sm:$0xf]
        %v342 = vld [vmem:[%s1 + $0x24] sm:$0xf]
        %v343 = vld [vmem:[%s1 + $0x28] sm:$0xf]
        %v344 = vld [vmem:[%s1 + $0x2c] sm:$0xf]
        %v345 = vld [vmem:[%s1 + $0x30] sm:$0xf]
        %v346 = vld [vmem:[%s1 + $0x34] sm:$0xf]
        %v347 = vld [vmem:[%s1 + $0x38] sm:$0xf]
        %v348 = vld [vmem:[%s1 + $0x3c] sm:$0xf]
        %vm349 = vsmask.f32 3328
        %vm350 = vsmask.f32 7440
        %vm351 = vmor %vm349, %vm350
        %v353 = vshrl.u32 %v323, 16
        %v355 = vrot.slane %v353, 4
        %v356 = vshll.u32 %v323, 16
        %v358 = vrot.slane %v356, 5
        %v359 = vor.u32 %v355, %v358
        %v360 = vrot.slane %v359, 4
        %v362 = vshll.u32 %v324, 16
        %v364 = vrot.slane %v362, 5
        %v365 = vsel %vm351, %v360, %v364
        %v367 = vshrl.u32 %v325, 16
        %v369 = vrot.slane %v367, 4
        %v370 = vshll.u32 %v325, 16
        %v372 = vrot.slane %v370, 5
        %v373 = vor.u32 %v369, %v372
        %v374 = vrot.slane %v373, 4
        %v376 = vshll.u32 %v326, 16
        %v378 = vrot.slane %v376, 5
        %v379 = vsel %vm351, %v374, %v378
        %v381 = vshrl.u32 %v327, 16
        %v383 = vrot.slane %v381, 4
        %v384 = vshll.u32 %v327, 16
        %v386 = vrot.slane %v384, 5
        %v387 = vor.u32 %v383, %v386
        %v388 = vrot.slane %v387, 4
        %v390 = vshll.u32 %v328, 16
        %v392 = vrot.slane %v390, 5
        %v393 = vsel %vm351, %v388, %v392
        %v395 = vshrl.u32 %v329, 16
        %v397 = vrot.slane %v395, 4
        %v398 = vshll.u32 %v329, 16
        %v400 = vrot.slane %v398, 5
        %v401 = vor.u32 %v397, %v400
        %v402 = vrot.slane %v401, 4
        %v404 = vshll.u32 %v330, 16
        %v406 = vrot.slane %v404, 5
        %v407 = vsel %vm351, %v402, %v406
        %s408 = scalar_lea.vmem %s1, 64
        %v409 = vld [vmem:[%s408] sm:$0xf]
        %v410 = vld [vmem:[%s408 + $0x4] sm:$0xf]
        %v411 = vld [vmem:[%s408 + $0x8] sm:$0xf]
        %v412 = vld [vmem:[%s408 + $0xc] sm:$0xf]
        %v413 = vld [vmem:[%s408 + $0x10] sm:$0xf]
        %v414 = vld [vmem:[%s408 + $0x14] sm:$0xf]
        %v415 = vld [vmem:[%s408 + $0x18] sm:$0xf]
        %v416 = vld [vmem:[%s408 + $0x1c] sm:$0xf]
        %v417 = vld [vmem:[%s408 + $0x20] sm:$0xf]
        %v418 = vld [vmem:[%s408 + $0x24] sm:$0xf]
        %v419 = vld [vmem:[%s408 + $0x28] sm:$0xf]
        %v420 = vld [vmem:[%s408 + $0x2c] sm:$0xf]
        %v421 = vld [vmem:[%s408 + $0x30] sm:$0xf]
        %v422 = vld [vmem:[%s408 + $0x34] sm:$0xf]
        %v423 = vld [vmem:[%s408 + $0x38] sm:$0xf]
        %v424 = vld [vmem:[%s408 + $0x3c] sm:$0xf]
        %v425 = vunpack.c.l.b16 %v365
        %v426 = vunpack.c.l.b16 %v379
        %v427 = vunpack.c.l.b16 %v393
        %v428 = vunpack.c.l.b16 %v407
        %v429 = vpack.c.b16 %v426, %v425
        %v430 = vpack.c.b16 %v428, %v427
        %v449 = vunpack.c.l.b16 %v409
        %v450 = vunpack.c.l.b16 %v410
        %v451 = vunpack.c.l.b16 %v411
        %v452 = vunpack.c.l.b16 %v412
        %v453 = vunpack.c.l.b16 %v413
        %v454 = vunpack.c.l.b16 %v414
        %v455 = vunpack.c.l.b16 %v415
        %v456 = vunpack.c.l.b16 %v416
        %v457 = vunpack.c.l.b16 %v417
        %v458 = vunpack.c.l.b16 %v418
        %v459 = vunpack.c.l.b16 %v419
        %v460 = vunpack.c.l.b16 %v420
        %v461 = vunpack.c.l.b16 %v421
        %v462 = vunpack.c.l.b16 %v422
        %v463 = vunpack.c.l.b16 %v423
        %v464 = vunpack.c.l.b16 %v424
        %v465 = vpack.c.b16 %v450, %v449
        %v466 = vpack.c.b16 %v452, %v451
        %v467 = vpack.c.b16 %v454, %v453
        %v468 = vpack.c.b16 %v456, %v455
        %v469 = vpack.c.b16 %v458, %v457
        %v470 = vpack.c.b16 %v460, %v459
        %v471 = vpack.c.b16 %v462, %v461
        %v472 = vpack.c.b16 %v464, %v463
        %481 = vmatpush.bf16.msra.mxu0 %v472
        %482 = vmatpush.bf16.msra.mxu0 %v471
        %483 = vmatpush.bf16.msra.mxu0 %v470
        %484 = vmatpush.bf16.msra.mxu0 %v469
        %485 = vmatpush.bf16.msra.mxu0 %v468
        %486 = vmatpush.bf16.msra.mxu0 %v467
        %487 = vmatpush.bf16.msra.mxu0 %v466
        %488 = vmatpush.bf16.msra.mxu0 %v465
        %489 = vmatmul.bf16.gmra.mxu0 %v429
        %v490 = vpop.f32.mrf.mxu0
        %v491 = vadd.f32 0.0, %v490
        %v492 = vpop.f32.mrf.mxu0
        %v493 = vadd.f32 0.0, %v492
        %494 = vmatmul.bf16.gmra.mxu0 %v430
        %v495 = vpop.f32.mrf.mxu0
        %v496 = vadd.f32 0.0, %v495
        %v497 = vpop.f32.mrf.mxu0
        %v498 = vadd.f32 0.0, %v497
        %499 = vdwg.mxu0
        %v504 = vunpack.c.l.b16 %v323
        %v505 = vunpack.c.l.b16 %v325
        %v506 = vunpack.c.l.b16 %v327
        %v507 = vunpack.c.l.b16 %v329
        %v508 = vpack.c.b16 %v505, %v504
        %v509 = vpack.c.b16 %v507, %v506
        %v528 = vunpack.c.l.b16 %v333
        %v529 = vunpack.c.l.b16 %v334
        %v530 = vunpack.c.l.b16 %v335
        %v531 = vunpack.c.l.b16 %v336
        %v532 = vunpack.c.l.b16 %v337
        %v533 = vunpack.c.l.b16 %v338
        %v534 = vunpack.c.l.b16 %v339
        %v535 = vunpack.c.l.b16 %v340
        %v536 = vunpack.c.l.b16 %v341
        %v537 = vunpack.c.l.b16 %v342
        %v538 = vunpack.c.l.b16 %v343
        %v539 = vunpack.c.l.b16 %v344
        %v540 = vunpack.c.l.b16 %v345
        %v541 = vunpack.c.l.b16 %v346
        %v542 = vunpack.c.l.b16 %v347
        %v543 = vunpack.c.l.b16 %v348
        %v544 = vpack.c.b16 %v529, %v528
        %v545 = vpack.c.b16 %v531, %v530
        %v546 = vpack.c.b16 %v533, %v532
        %v547 = vpack.c.b16 %v535, %v534
        %v548 = vpack.c.b16 %v537, %v536
        %v549 = vpack.c.b16 %v539, %v538
        %v550 = vpack.c.b16 %v541, %v540
        %v551 = vpack.c.b16 %v543, %v542
        %560 = vmatpush.bf16.msra.mxu0 %v551
        %561 = vmatpush.bf16.msra.mxu0 %v550
        %562 = vmatpush.bf16.msra.mxu0 %v549
        %563 = vmatpush.bf16.msra.mxu0 %v548
        %564 = vmatpush.bf16.msra.mxu0 %v547
        %565 = vmatpush.bf16.msra.mxu0 %v546
        %566 = vmatpush.bf16.msra.mxu0 %v545
        %567 = vmatpush.bf16.msra.mxu0 %v544
        %568 = vmatmul.bf16.gmra.mxu0 %v508
        %v569 = vpop.f32.mrf.mxu0
        %v570 = vadd.f32 %v491, %v569
        %v571 = vpop.f32.mrf.mxu0
        %v572 = vadd.f32 %v493, %v571
        %573 = vmatmul.bf16.gmra.mxu0 %v509
        %v574 = vpop.f32.mrf.mxu0
        %v575 = vadd.f32 %v496, %v574
        %v576 = vpop.f32.mrf.mxu0
        %v577 = vadd.f32 %v498, %v576
        %578 = vdwg.mxu0
        %s579 = scalar_lea.vmem %s1, 128
        %v580 = vld [vmem:[%s579] sm:$0xf]
        %v581 = vld [vmem:[%s579 + $0x4] sm:$0xf]
        %v582 = vld [vmem:[%s579 + $0x8] sm:$0xf]
        %v583 = vld [vmem:[%s579 + $0xc] sm:$0xf]
        %v584 = vld [vmem:[%s579 + $0x10] sm:$0xf]
        %v585 = vld [vmem:[%s579 + $0x14] sm:$0xf]
        %v586 = vld [vmem:[%s579 + $0x18] sm:$0xf]
        %v587 = vld [vmem:[%s579 + $0x1c] sm:$0xf]
        %v588 = vld [vmem:[%s579 + $0x20] sm:$0xf]
        %v589 = vld [vmem:[%s579 + $0x24] sm:$0xf]
        %v590 = vld [vmem:[%s579 + $0x28] sm:$0xf]
        %v591 = vld [vmem:[%s579 + $0x2c] sm:$0xf]
        %v592 = vld [vmem:[%s579 + $0x30] sm:$0xf]
        %v593 = vld [vmem:[%s579 + $0x34] sm:$0xf]
        %v594 = vld [vmem:[%s579 + $0x38] sm:$0xf]
        %v595 = vld [vmem:[%s579 + $0x3c] sm:$0xf]
        %v597 = vunpack.c.l.b16 %v331
        %v598 = vpack.c.b16 %v506, %v505
        %v599 = vpack.c.b16 %v597, %v507
        %v618 = vunpack.c.l.b16 %v580
        %v619 = vunpack.c.l.b16 %v581
        %v620 = vunpack.c.l.b16 %v582
        %v621 = vunpack.c.l.b16 %v583
        %v622 = vunpack.c.l.b16 %v584
        %v623 = vunpack.c.l.b16 %v585
        %v624 = vunpack.c.l.b16 %v586
        %v625 = vunpack.c.l.b16 %v587
        %v626 = vunpack.c.l.b16 %v588
        %v627 = vunpack.c.l.b16 %v589
        %v628 = vunpack.c.l.b16 %v590
        %v629 = vunpack.c.l.b16 %v591
        %v630 = vunpack.c.l.b16 %v592
        %v631 = vunpack.c.l.b16 %v593
        %v632 = vunpack.c.l.b16 %v594
        %v633 = vunpack.c.l.b16 %v595
        %v634 = vpack.c.b16 %v619, %v618
        %v635 = vpack.c.b16 %v621, %v620
        %v636 = vpack.c.b16 %v623, %v622
        %v637 = vpack.c.b16 %v625, %v624
        %v638 = vpack.c.b16 %v627, %v626
        %v639 = vpack.c.b16 %v629, %v628
        %v640 = vpack.c.b16 %v631, %v630
        %v641 = vpack.c.b16 %v633, %v632
        %650 = vmatpush.bf16.msra.mxu0 %v641
        %651 = vmatpush.bf16.msra.mxu0 %v640
        %652 = vmatpush.bf16.msra.mxu0 %v639
        %653 = vmatpush.bf16.msra.mxu0 %v638
        %654 = vmatpush.bf16.msra.mxu0 %v637
        %655 = vmatpush.bf16.msra.mxu0 %v636
        %656 = vmatpush.bf16.msra.mxu0 %v635
        %657 = vmatpush.bf16.msra.mxu0 %v634
        %658 = vmatmul.bf16.gmra.mxu0 %v598
        %v659 = vpop.f32.mrf.mxu0
        %v660 = vadd.f32 0.0, %v659
        %v661 = vpop.f32.mrf.mxu0
        %v662 = vadd.f32 0.0, %v661
        %663 = vmatmul.bf16.gmra.mxu0 %v599
        %v664 = vpop.f32.mrf.mxu0
        %v665 = vadd.f32 0.0, %v664
        %v666 = vpop.f32.mrf.mxu0
        %v667 = vadd.f32 0.0, %v666
        %668 = vdwg.mxu0
        %v669 = vadd.f32 %v570, %v660
        %v670 = vadd.f32 %v572, %v662
        %v671 = vadd.f32 %v575, %v665
        %v672 = vadd.f32 %v577, %v667
        %v674 = vshrl.u32 %v331, 16
        %v676 = vrot.slane %v674, 4
        %v677 = vshll.u32 %v331, 16
        %v679 = vrot.slane %v677, 5
        %v680 = vor.u32 %v676, %v679
        %v681 = vrot.slane %v680, 4
        %v683 = vshll.u32 %v332, 16
        %v685 = vrot.slane %v683, 5
        %v686 = vsel %vm351, %v681, %v685
        %s687 = scalar_lea.vmem %s1, 192
        %v688 = vld [vmem:[%s687] sm:$0xf]
        %v689 = vld [vmem:[%s687 + $0x4] sm:$0xf]
        %v690 = vld [vmem:[%s687 + $0x8] sm:$0xf]
        %v691 = vld [vmem:[%s687 + $0xc] sm:$0xf]
        %v692 = vld [vmem:[%s687 + $0x10] sm:$0xf]
        %v693 = vld [vmem:[%s687 + $0x14] sm:$0xf]
        %v694 = vld [vmem:[%s687 + $0x18] sm:$0xf]
        %v695 = vld [vmem:[%s687 + $0x1c] sm:$0xf]
        %v696 = vld [vmem:[%s687 + $0x20] sm:$0xf]
        %v697 = vld [vmem:[%s687 + $0x24] sm:$0xf]
        %v698 = vld [vmem:[%s687 + $0x28] sm:$0xf]
        %v699 = vld [vmem:[%s687 + $0x2c] sm:$0xf]
        %v700 = vld [vmem:[%s687 + $0x30] sm:$0xf]
        %v701 = vld [vmem:[%s687 + $0x34] sm:$0xf]
        %v702 = vld [vmem:[%s687 + $0x38] sm:$0xf]
        %v703 = vld [vmem:[%s687 + $0x3c] sm:$0xf]
        %v704 = vunpack.c.l.b16 %v686
        %v705 = vpack.c.b16 %v427, %v426
        %v706 = vpack.c.b16 %v704, %v428
        %v725 = vunpack.c.l.b16 %v688
        %v726 = vunpack.c.l.b16 %v689
        %v727 = vunpack.c.l.b16 %v690
        %v728 = vunpack.c.l.b16 %v691
        %v729 = vunpack.c.l.b16 %v692
        %v730 = vunpack.c.l.b16 %v693
        %v731 = vunpack.c.l.b16 %v694
        %v732 = vunpack.c.l.b16 %v695
        %v733 = vunpack.c.l.b16 %v696
        %v734 = vunpack.c.l.b16 %v697
        %v735 = vunpack.c.l.b16 %v698
        %v736 = vunpack.c.l.b16 %v699
        %v737 = vunpack.c.l.b16 %v700
        %v738 = vunpack.c.l.b16 %v701
        %v739 = vunpack.c.l.b16 %v702
        %v740 = vunpack.c.l.b16 %v703
        %v741 = vpack.c.b16 %v726, %v725
        %v742 = vpack.c.b16 %v728, %v727
        %v743 = vpack.c.b16 %v730, %v729
        %v744 = vpack.c.b16 %v732, %v731
        %v745 = vpack.c.b16 %v734, %v733
        %v746 = vpack.c.b16 %v736, %v735
        %v747 = vpack.c.b16 %v738, %v737
        %v748 = vpack.c.b16 %v740, %v739
        %757 = vmatpush.bf16.msra.mxu0 %v748
        %758 = vmatpush.bf16.msra.mxu0 %v747
        %759 = vmatpush.bf16.msra.mxu0 %v746
        %760 = vmatpush.bf16.msra.mxu0 %v745
        %761 = vmatpush.bf16.msra.mxu0 %v744
        %762 = vmatpush.bf16.msra.mxu0 %v743
        %763 = vmatpush.bf16.msra.mxu0 %v742
        %764 = vmatpush.bf16.msra.mxu0 %v741
        %765 = vmatmul.bf16.gmra.mxu0 %v705
        %v766 = vpop.f32.mrf.mxu0
        %v767 = vadd.f32 0.0, %v766
        %v768 = vpop.f32.mrf.mxu0
        %v769 = vadd.f32 0.0, %v768
        %770 = vmatmul.bf16.gmra.mxu0 %v706
        %v771 = vpop.f32.mrf.mxu0
        %v772 = vadd.f32 0.0, %v771
        %v773 = vpop.f32.mrf.mxu0
        %v774 = vadd.f32 0.0, %v773
        %775 = vdwg.mxu0
        %v776 = vadd.f32 %v669, %v767
        %v777 = vadd.f32 %v670, %v769
        %v778 = vadd.f32 %v671, %v772
        %v779 = vadd.f32 %v672, %v774
        %v780 = vld [vmem:[%s2] sm:$0x1]
        %v782 = vperm.slane %v780, 0
        %v784 = vadd.f32 %v776, %v782
        %v785 = vadd.f32 %v777, %v782
        %v786 = vadd.f32 %v778, %v782
        %v787 = vadd.f32 %v779, %v782
        %v788 = vmax.f32 %v784, 0.0
        %v789 = vmax.f32 %v785, 0.0
        %v790 = vmax.f32 %v786, 0.0
        %v791 = vmax.f32 %v787, 0.0
        %v792 = vpack.c.bf16 %v788, %v788
        %v793 = vpack.c.bf16 %v789, %v789
        %v794 = vpack.c.bf16 %v790, %v790
        %v795 = vpack.c.bf16 %v791, %v791
        %vm796 = vcmask 1040384
        %vm797 = vsmask.f32 256
        %vm798 = vmand %vm796, %vm797
        %v799 = vld [vmem:[#allocation2] sm:$0x1]
        %v800 = vsel %vm798, 0, %v799
        %801 = vst [vmem:[#allocation2] sm:$0x1] %v800
        %v802 = vld [vmem:[#allocation2 + $0x8] sm:$0x1]
        %v803 = vsel %vm798, 0, %v802
        %804 = vst [vmem:[#allocation2 + $0x8] sm:$0x1] %v803
        %v805 = vld [vmem:[#allocation2 + $0x10] sm:$0x1]
        %v806 = vsel %vm798, 0, %v805
        %807 = vst [vmem:[#allocation2 + $0x10] sm:$0x1] %v806
        %v808 = vld [vmem:[#allocation2 + $0x18] sm:$0x1]
        %v809 = vsel %vm798, 0, %v808
        %810 = vst [vmem:[#allocation2 + $0x18] sm:$0x1] %v809
        %vm811 = vsmask.f32 7938
        %vm812 = vmand %vm796, %vm811
        %v813 = vld [vmem:[#allocation2 + $0x4] sm:$0x1]
        %v814 = vsel %vm812, 0, %v813
        %815 = vst [vmem:[#allocation2 + $0x4] sm:$0x1] %v814
        %v816 = vld [vmem:[#allocation2 + $0xc] sm:$0x1]
        %v817 = vsel %vm812, 0, %v816
        %818 = vst [vmem:[#allocation2 + $0xc] sm:$0x1] %v817
        %v819 = vld [vmem:[#allocation2 + $0x14] sm:$0x1]
        %v820 = vsel %vm812, 0, %v819
        %821 = vst [vmem:[#allocation2 + $0x14] sm:$0x1] %v820
        %v822 = vld [vmem:[#allocation2 + $0x1c] sm:$0x1]
        %v823 = vsel %vm812, 0, %v822
        %824 = vst [vmem:[#allocation2 + $0x1c] sm:$0x1] %v823
        %v826 = vshrl.u32 %v792, 16
        %v828 = vrot.slane %v826, 7
        %v829 = vshll.u32 %v792, 16
        %v831 = vor.u32 %v828, %v829
        %v832 = vrot.slane %v828, 4
        %v834 = vshrl.u32 %v793, 16
        %v836 = vrot.slane %v834, 7
        %v837 = vshll.u32 %v793, 16
        %v839 = vor.u32 %v836, %v837
        %v840 = vrot.slane %v836, 4
        %v842 = vshrl.u32 %v794, 16
        %v844 = vrot.slane %v842, 7
        %v845 = vshll.u32 %v794, 16
        %v847 = vor.u32 %v844, %v845
        %v848 = vrot.slane %v844, 4
        %v850 = vshrl.u32 %v795, 16
        %v852 = vrot.slane %v850, 7
        %v853 = vshll.u32 %v795, 16
        %v855 = vor.u32 %v852, %v853
        %v856 = vrot.slane %v852, 4
        %vm865 = vcmask 1043456
        %vm866 = vmand %vm865, %vm811
        %v867 = vld [vmem:[#allocation2] sm:$0xf]
        %v868 = vsel %vm866, %v831, %v867
        %869 = vst [vmem:[#allocation2] sm:$0xf] %v868
        %v870 = vld [vmem:[#allocation2 + $0x4] sm:$0x1]
        %v871 = vsel %vm798, %v832, %v870
        %872 = vst [vmem:[#allocation2 + $0x4] sm:$0x1] %v871
        %v873 = vld [vmem:[#allocation2 + $0x8] sm:$0xf]
        %v874 = vsel %vm866, %v839, %v873
        %875 = vst [vmem:[#allocation2 + $0x8] sm:$0xf] %v874
        %v876 = vld [vmem:[#allocation2 + $0xc] sm:$0x1]
        %v877 = vsel %vm798, %v840, %v876
        %878 = vst [vmem:[#allocation2 + $0xc] sm:$0x1] %v877
        %v879 = vld [vmem:[#allocation2 + $0x10] sm:$0xf]
        %v880 = vsel %vm866, %v847, %v879
        %881 = vst [vmem:[#allocation2 + $0x10] sm:$0xf] %v880
        %v882 = vld [vmem:[#allocation2 + $0x14] sm:$0x1]
        %v883 = vsel %vm798, %v848, %v882
        %884 = vst [vmem:[#allocation2 + $0x14] sm:$0x1] %v883
        %v885 = vld [vmem:[#allocation2 + $0x18] sm:$0xf]
        %v886 = vsel %vm866, %v855, %v885
        %887 = vst [vmem:[#allocation2 + $0x18] sm:$0xf] %v886
        %v888 = vld [vmem:[#allocation2 + $0x1c] sm:$0x1]
        %v889 = vsel %vm798, %v856, %v888
        %890 = vst [vmem:[#allocation2 + $0x1c] sm:$0x1] %v889
        %p891 = scmp.eq.s32.totalorder %s27, 0
        // Predicated region
        $region53: #{tpu_custom_call.1} parent=47 // pred_check
          %p892 = pneg %p891
        $region54: #{tpu_custom_call.1} parent=47 // pred_check_branch
          %894 = sbr.rel (%p892) target = $region56
        $region55: #{tpu_custom_call.1} parent=47 // pred_region
          %895 = vst [vmem:[#allocation2] sm:$0xf] 0
          %896 = vst [vmem:[#allocation2 + $0x4] sm:$0x1] 0
        $region56: #{tpu_custom_call.1} parent=47 // pred_fallthru
          _
        %p897 = scmp.eq.s32.totalorder %s27, 3
        // Predicated region
        $region57: #{tpu_custom_call.1} parent=47 // pred_check
          %p898 = pneg %p897
        $region58: #{tpu_custom_call.1} parent=47 // pred_check_branch
          %900 = sbr.rel (%p898) target = $region60
        $region59: #{tpu_custom_call.1} parent=47 // pred_region
          %s901 = scalar_lea.vmem [#allocation2], 24
          %902 = vst [vmem:[%s901] sm:$0xf] 0
          %903 = vst [vmem:[%s901 + $0x4] sm:$0x1] 0
        $region60: #{tpu_custom_call.1} parent=47 // pred_fallthru
          _
        %v904 = vld [vmem:[#allocation2] sm:$0xf]
        %v905 = vld [vmem:[#allocation2 + $0x8] sm:$0xf]
        %v906 = vld [vmem:[#allocation3] sm:$0xf]
        %v907 = vld [vmem:[#allocation3 + $0x4] sm:$0xf]
        %v908 = vld [vmem:[#allocation3 + $0x8] sm:$0xf]
        %v909 = vld [vmem:[#allocation3 + $0xc] sm:$0xf]
        %v910 = vld [vmem:[#allocation3 + $0x10] sm:$0xf]
        %v911 = vld [vmem:[#allocation3 + $0x14] sm:$0xf]
        %v912 = vld [vmem:[#allocation3 + $0x18] sm:$0xf]
        %v913 = vld [vmem:[#allocation3 + $0x1c] sm:$0xf]
        %v914 = vld [vmem:[#allocation3 + $0x20] sm:$0xf]
        %v915 = vld [vmem:[#allocation3 + $0x24] sm:$0xf]
        %v916 = vld [vmem:[#allocation3 + $0x28] sm:$0xf]
        %v917 = vld [vmem:[#allocation3 + $0x2c] sm:$0xf]
        %v918 = vld [vmem:[#allocation3 + $0x30] sm:$0xf]
        %v919 = vld [vmem:[#allocation3 + $0x34] sm:$0xf]
        %v920 = vld [vmem:[#allocation3 + $0x38] sm:$0xf]
        %v921 = vld [vmem:[#allocation3 + $0x3c] sm:$0xf]
        %v922 = vld [vmem:[#allocation2 + $0x4] sm:$0x1]
        %v923 = vld [vmem:[#allocation2 + $0xc] sm:$0x1]
        %v925 = vshrl.u32 %v904, 16
        %v927 = vrot.slane %v925, 4
        %v928 = vshll.u32 %v904, 16
        %v930 = vrot.slane %v928, 5
        %v931 = vor.u32 %v927, %v930
        %v932 = vrot.slane %v931, 4
        %v934 = vshll.u32 %v922, 16
        %v936 = vrot.slane %v934, 5
        %v937 = vsel %vm351, %v932, %v936
        %v939 = vshrl.u32 %v905, 16
        %v941 = vrot.slane %v939, 4
        %v942 = vshll.u32 %v905, 16
        %v944 = vrot.slane %v942, 5
        %v945 = vor.u32 %v941, %v944
        %v946 = vrot.slane %v945, 4
        %v948 = vshll.u32 %v923, 16
        %v950 = vrot.slane %v948, 5
        %v951 = vsel %vm351, %v946, %v950
        %s952 = scalar_lea.vmem [#allocation3], 64
        %v953 = vld [vmem:[%s952] sm:$0xf]
        %v954 = vld [vmem:[%s952 + $0x4] sm:$0xf]
        %v955 = vld [vmem:[%s952 + $0x8] sm:$0xf]
        %v956 = vld [vmem:[%s952 + $0xc] sm:$0xf]
        %v957 = vld [vmem:[%s952 + $0x10] sm:$0xf]
        %v958 = vld [vmem:[%s952 + $0x14] sm:$0xf]
        %v959 = vld [vmem:[%s952 + $0x18] sm:$0xf]
        %v960 = vld [vmem:[%s952 + $0x1c] sm:$0xf]
        %v961 = vld [vmem:[%s952 + $0x20] sm:$0xf]
        %v962 = vld [vmem:[%s952 + $0x24] sm:$0xf]
        %v963 = vld [vmem:[%s952 + $0x28] sm:$0xf]
        %v964 = vld [vmem:[%s952 + $0x2c] sm:$0xf]
        %v965 = vld [vmem:[%s952 + $0x30] sm:$0xf]
        %v966 = vld [vmem:[%s952 + $0x34] sm:$0xf]
        %v967 = vld [vmem:[%s952 + $0x38] sm:$0xf]
        %v968 = vld [vmem:[%s952 + $0x3c] sm:$0xf]
        %v969 = vunpack.c.l.b16 %v937
        %v970 = vunpack.c.l.b16 %v951
        %v971 = vpack.c.b16 %v970, %v969
        %v989 = vunpack.c.l.b16 %v953
        %v990 = vunpack.c.l.b16 %v954
        %v991 = vunpack.c.l.b16 %v955
        %v992 = vunpack.c.l.b16 %v956
        %v993 = vunpack.c.l.b16 %v957
        %v994 = vunpack.c.l.b16 %v958
        %v995 = vunpack.c.l.b16 %v959
        %v996 = vunpack.c.l.b16 %v960
        %v997 = vunpack.c.l.b16 %v961
        %v998 = vunpack.c.l.b16 %v962
        %v999 = vunpack.c.l.b16 %v963
        %v1000 = vunpack.c.l.b16 %v964
        %v1001 = vunpack.c.l.b16 %v965
        %v1002 = vunpack.c.l.b16 %v966
        %v1003 = vunpack.c.l.b16 %v967
        %v1004 = vunpack.c.l.b16 %v968
        %v1005 = vpack.c.b16 %v990, %v989
        %v1006 = vpack.c.b16 %v992, %v991
        %v1007 = vpack.c.b16 %v994, %v993
        %v1008 = vpack.c.b16 %v996, %v995
        %v1009 = vpack.c.b16 %v998, %v997
        %v1010 = vpack.c.b16 %v1000, %v999
        %v1011 = vpack.c.b16 %v1002, %v1001
        %v1012 = vpack.c.b16 %v1004, %v1003
        %1021 = vmatpush.bf16.msra.mxu0 %v1012
        %1022 = vmatpush.bf16.msra.mxu0 %v1011
        %1023 = vmatpush.bf16.msra.mxu0 %v1010
        %1024 = vmatpush.bf16.msra.mxu0 %v1009
        %1025 = vmatpush.bf16.msra.mxu0 %v1008
        %1026 = vmatpush.bf16.msra.mxu0 %v1007
        %1027 = vmatpush.bf16.msra.mxu0 %v1006
        %1028 = vmatpush.bf16.msra.mxu0 %v1005
        %1029 = vmatmul.bf16.gmra.mxu0 %v971
        %v1030 = vpop.f32.mrf.mxu0
        %v1031 = vadd.f32 0.0, %v1030
        %v1032 = vpop.f32.mrf.mxu0
        %v1033 = vadd.f32 0.0, %v1032
        %1034 = vdwg.mxu0
        %v1037 = vunpack.c.l.b16 %v904
        %v1038 = vunpack.c.l.b16 %v905
        %v1039 = vpack.c.b16 %v1038, %v1037
        %v1057 = vunpack.c.l.b16 %v906
        %v1058 = vunpack.c.l.b16 %v907
        %v1059 = vunpack.c.l.b16 %v908
        %v1060 = vunpack.c.l.b16 %v909
        %v1061 = vunpack.c.l.b16 %v910
        %v1062 = vunpack.c.l.b16 %v911
        %v1063 = vunpack.c.l.b16 %v912
        %v1064 = vunpack.c.l.b16 %v913
        %v1065 = vunpack.c.l.b16 %v914
        %v1066 = vunpack.c.l.b16 %v915
        %v1067 = vunpack.c.l.b16 %v916
        %v1068 = vunpack.c.l.b16 %v917
        %v1069 = vunpack.c.l.b16 %v918
        %v1070 = vunpack.c.l.b16 %v919
        %v1071 = vunpack.c.l.b16 %v920
        %v1072 = vunpack.c.l.b16 %v921
        %v1073 = vpack.c.b16 %v1058, %v1057
        %v1074 = vpack.c.b16 %v1060, %v1059
        %v1075 = vpack.c.b16 %v1062, %v1061
        %v1076 = vpack.c.b16 %v1064, %v1063
        %v1077 = vpack.c.b16 %v1066, %v1065
        %v1078 = vpack.c.b16 %v1068, %v1067
        %v1079 = vpack.c.b16 %v1070, %v1069
        %v1080 = vpack.c.b16 %v1072, %v1071
        %1089 = vmatpush.bf16.msra.mxu0 %v1080
        %1090 = vmatpush.bf16.msra.mxu0 %v1079
        %1091 = vmatpush.bf16.msra.mxu0 %v1078
        %1092 = vmatpush.bf16.msra.mxu0 %v1077
        %1093 = vmatpush.bf16.msra.mxu0 %v1076
        %1094 = vmatpush.bf16.msra.mxu0 %v1075
        %1095 = vmatpush.bf16.msra.mxu0 %v1074
        %1096 = vmatpush.bf16.msra.mxu0 %v1073
        %1097 = vmatmul.bf16.gmra.mxu0 %v1039
        %v1098 = vpop.f32.mrf.mxu0
        %v1099 = vadd.f32 %v1031, %v1098
        %v1100 = vpop.f32.mrf.mxu0
        %v1101 = vadd.f32 %v1033, %v1100
        %1102 = vdwg.mxu0
        %v1103 = vld [vmem:[#allocation2] sm:$0xe]
        %v1104 = vld [vmem:[#allocation2 + $0x8] sm:$0xe]
        %vm1109 = vcmask 1042432
        %vm1110 = vcmask 1046532
        %vm1111 = vmor %vm1109, %vm1110
        %v1112 = vrot.slane %v1103, 5
        %v1113 = vrot.slane %v1112, 4
        %v1114 = vrot.slane %v922, 5
        %v1115 = vsel %vm1111, %v1113, %v1114
        %v1116 = vrot.slane %v1104, 5
        %v1117 = vrot.slane %v1116, 4
        %v1118 = vrot.slane %v923, 5
        %v1119 = vsel %vm1111, %v1117, %v1118
        %s1120 = scalar_lea.vmem [#allocation3], 128
        %v1121 = vld [vmem:[%s1120] sm:$0xf]
        %v1122 = vld [vmem:[%s1120 + $0x4] sm:$0xf]
        %v1123 = vld [vmem:[%s1120 + $0x8] sm:$0xf]
        %v1124 = vld [vmem:[%s1120 + $0xc] sm:$0xf]
        %v1125 = vld [vmem:[%s1120 + $0x10] sm:$0xf]
        %v1126 = vld [vmem:[%s1120 + $0x14] sm:$0xf]
        %v1127 = vld [vmem:[%s1120 + $0x18] sm:$0xf]
        %v1128 = vld [vmem:[%s1120 + $0x1c] sm:$0xf]
        %v1129 = vld [vmem:[%s1120 + $0x20] sm:$0xf]
        %v1130 = vld [vmem:[%s1120 + $0x24] sm:$0xf]
        %v1131 = vld [vmem:[%s1120 + $0x28] sm:$0xf]
        %v1132 = vld [vmem:[%s1120 + $0x2c] sm:$0xf]
        %v1133 = vld [vmem:[%s1120 + $0x30] sm:$0xf]
        %v1134 = vld [vmem:[%s1120 + $0x34] sm:$0xf]
        %v1135 = vld [vmem:[%s1120 + $0x38] sm:$0xf]
        %v1136 = vld [vmem:[%s1120 + $0x3c] sm:$0xf]
        %v1137 = vunpack.c.l.b16 %v1115
        %v1138 = vunpack.c.l.b16 %v1119
        %v1139 = vpack.c.b16 %v1138, %v1137
        %v1157 = vunpack.c.l.b16 %v1121
        %v1158 = vunpack.c.l.b16 %v1122
        %v1159 = vunpack.c.l.b16 %v1123
        %v1160 = vunpack.c.l.b16 %v1124
        %v1161 = vunpack.c.l.b16 %v1125
        %v1162 = vunpack.c.l.b16 %v1126
        %v1163 = vunpack.c.l.b16 %v1127
        %v1164 = vunpack.c.l.b16 %v1128
        %v1165 = vunpack.c.l.b16 %v1129
        %v1166 = vunpack.c.l.b16 %v1130
        %v1167 = vunpack.c.l.b16 %v1131
        %v1168 = vunpack.c.l.b16 %v1132
        %v1169 = vunpack.c.l.b16 %v1133
        %v1170 = vunpack.c.l.b16 %v1134
        %v1171 = vunpack.c.l.b16 %v1135
        %v1172 = vunpack.c.l.b16 %v1136
        %v1173 = vpack.c.b16 %v1158, %v1157
        %v1174 = vpack.c.b16 %v1160, %v1159
        %v1175 = vpack.c.b16 %v1162, %v1161
        %v1176 = vpack.c.b16 %v1164, %v1163
        %v1177 = vpack.c.b16 %v1166, %v1165
        %v1178 = vpack.c.b16 %v1168, %v1167
        %v1179 = vpack.c.b16 %v1170, %v1169
        %v1180 = vpack.c.b16 %v1172, %v1171
        %1189 = vmatpush.bf16.msra.mxu0 %v1180
        %1190 = vmatpush.bf16.msra.mxu0 %v1179
        %1191 = vmatpush.bf16.msra.mxu0 %v1178
        %1192 = vmatpush.bf16.msra.mxu0 %v1177
        %1193 = vmatpush.bf16.msra.mxu0 %v1176
        %1194 = vmatpush.bf16.msra.mxu0 %v1175
        %1195 = vmatpush.bf16.msra.mxu0 %v1174
        %1196 = vmatpush.bf16.msra.mxu0 %v1173
        %1197 = vmatmul.bf16.gmra.mxu0 %v1139
        %v1198 = vpop.f32.mrf.mxu0
        %v1199 = vadd.f32 0.0, %v1198
        %v1200 = vpop.f32.mrf.mxu0
        %v1201 = vadd.f32 0.0, %v1200
        %1202 = vdwg.mxu0
        %v1203 = vadd.f32 %v1099, %v1199
        %v1204 = vadd.f32 %v1101, %v1201
        %s1205 = scalar_lea.vmem [#allocation2], 8
        %v1206 = vld [vmem:[%s1205] sm:$0xf]
        %v1207 = vld [vmem:[%s1205 + $0x8] sm:$0xf]
        %s1208 = scalar_lea.vmem [#allocation3], 192
        %v1209 = vld [vmem:[%s1208] sm:$0xf]
        %v1210 = vld [vmem:[%s1208 + $0x4] sm:$0xf]
        %v1211 = vld [vmem:[%s1208 + $0x8] sm:$0xf]
        %v1212 = vld [vmem:[%s1208 + $0xc] sm:$0xf]
        %v1213 = vld [vmem:[%s1208 + $0x10] sm:$0xf]
        %v1214 = vld [vmem:[%s1208 + $0x14] sm:$0xf]
        %v1215 = vld [vmem:[%s1208 + $0x18] sm:$0xf]
        %v1216 = vld [vmem:[%s1208 + $0x1c] sm:$0xf]
        %v1217 = vld [vmem:[%s1208 + $0x20] sm:$0xf]
        %v1218 = vld [vmem:[%s1208 + $0x24] sm:$0xf]
        %v1219 = vld [vmem:[%s1208 + $0x28] sm:$0xf]
        %v1220 = vld [vmem:[%s1208 + $0x2c] sm:$0xf]
        %v1221 = vld [vmem:[%s1208 + $0x30] sm:$0xf]
        %v1222 = vld [vmem:[%s1208 + $0x34] sm:$0xf]
        %v1223 = vld [vmem:[%s1208 + $0x38] sm:$0xf]
        %v1224 = vld [vmem:[%s1208 + $0x3c] sm:$0xf]
        %v1227 = vunpack.c.l.b16 %v1206
        %v1228 = vunpack.c.l.b16 %v1207
        %v1229 = vpack.c.b16 %v1228, %v1227
        %v1247 = vunpack.c.l.b16 %v1209
        %v1248 = vunpack.c.l.b16 %v1210
        %v1249 = vunpack.c.l.b16 %v1211
        %v1250 = vunpack.c.l.b16 %v1212
        %v1251 = vunpack.c.l.b16 %v1213
        %v1252 = vunpack.c.l.b16 %v1214
        %v1253 = vunpack.c.l.b16 %v1215
        %v1254 = vunpack.c.l.b16 %v1216
        %v1255 = vunpack.c.l.b16 %v1217
        %v1256 = vunpack.c.l.b16 %v1218
        %v1257 = vunpack.c.l.b16 %v1219
        %v1258 = vunpack.c.l.b16 %v1220
        %v1259 = vunpack.c.l.b16 %v1221
        %v1260 = vunpack.c.l.b16 %v1222
        %v1261 = vunpack.c.l.b16 %v1223
        %v1262 = vunpack.c.l.b16 %v1224
        %v1263 = vpack.c.b16 %v1248, %v1247
        %v1264 = vpack.c.b16 %v1250, %v1249
        %v1265 = vpack.c.b16 %v1252, %v1251
        %v1266 = vpack.c.b16 %v1254, %v1253
        %v1267 = vpack.c.b16 %v1256, %v1255
        %v1268 = vpack.c.b16 %v1258, %v1257
        %v1269 = vpack.c.b16 %v1260, %v1259
        %v1270 = vpack.c.b16 %v1262, %v1261
        %1279 = vmatpush.bf16.msra.mxu0 %v1270
        %1280 = vmatpush.bf16.msra.mxu0 %v1269
        %1281 = vmatpush.bf16.msra.mxu0 %v1268
        %1282 = vmatpush.bf16.msra.mxu0 %v1267
        %1283 = vmatpush.bf16.msra.mxu0 %v1266
        %1284 = vmatpush.bf16.msra.mxu0 %v1265
        %1285 = vmatpush.bf16.msra.mxu0 %v1264
        %1286 = vmatpush.bf16.msra.mxu0 %v1263
        %1287 = vmatmul.bf16.gmra.mxu0 %v1229
        %v1288 = vpop.f32.mrf.mxu0
        %v1289 = vadd.f32 0.0, %v1288
        %v1290 = vpop.f32.mrf.mxu0
        %v1291 = vadd.f32 0.0, %v1290
        %1292 = vdwg.mxu0
        %v1293 = vadd.f32 %v1203, %v1289
        %v1294 = vadd.f32 %v1204, %v1291
        %v1295 = vld [vmem:[%s1205] sm:$0xf]
        %v1296 = vld [vmem:[%s1205 + $0x4] sm:$0x1]
        %v1297 = vld [vmem:[%s1205 + $0x8] sm:$0xf]
        %v1298 = vld [vmem:[%s1205 + $0xc] sm:$0x1]
        %v1300 = vshrl.u32 %v1295, 16
        %v1302 = vrot.slane %v1300, 4
        %v1303 = vshll.u32 %v1295, 16
        %v1305 = vrot.slane %v1303, 5
        %v1306 = vor.u32 %v1302, %v1305
        %v1307 = vrot.slane %v1306, 4
        %v1309 = vshll.u32 %v1296, 16
        %v1311 = vrot.slane %v1309, 5
        %v1312 = vsel %vm351, %v1307, %v1311
        %v1314 = vshrl.u32 %v1297, 16
        %v1316 = vrot.slane %v1314, 4
        %v1317 = vshll.u32 %v1297, 16
        %v1319 = vrot.slane %v1317, 5
        %v1320 = vor.u32 %v1316, %v1319
        %v1321 = vrot.slane %v1320, 4
        %v1323 = vshll.u32 %v1298, 16
        %v1325 = vrot.slane %v1323, 5
        %v1326 = vsel %vm351, %v1321, %v1325
        %s1327 = scalar_lea.vmem [#allocation3], 256
        %v1328 = vld [vmem:[%s1327] sm:$0xf]
        %v1329 = vld [vmem:[%s1327 + $0x4] sm:$0xf]
        %v1330 = vld [vmem:[%s1327 + $0x8] sm:$0xf]
        %v1331 = vld [vmem:[%s1327 + $0xc] sm:$0xf]
        %v1332 = vld [vmem:[%s1327 + $0x10] sm:$0xf]
        %v1333 = vld [vmem:[%s1327 + $0x14] sm:$0xf]
        %v1334 = vld [vmem:[%s1327 + $0x18] sm:$0xf]
        %v1335 = vld [vmem:[%s1327 + $0x1c] sm:$0xf]
        %v1336 = vld [vmem:[%s1327 + $0x20] sm:$0xf]
        %v1337 = vld [vmem:[%s1327 + $0x24] sm:$0xf]
        %v1338 = vld [vmem:[%s1327 + $0x28] sm:$0xf]
        %v1339 = vld [vmem:[%s1327 + $0x2c] sm:$0xf]
        %v1340 = vld [vmem:[%s1327 + $0x30] sm:$0xf]
        %v1341 = vld [vmem:[%s1327 + $0x34] sm:$0xf]
        %v1342 = vld [vmem:[%s1327 + $0x38] sm:$0xf]
        %v1343 = vld [vmem:[%s1327 + $0x3c] sm:$0xf]
        %v1344 = vunpack.c.l.b16 %v1312
        %v1345 = vunpack.c.l.b16 %v1326
        %v1346 = vpack.c.b16 %v1345, %v1344
        %v1364 = vunpack.c.l.b16 %v1328
        %v1365 = vunpack.c.l.b16 %v1329
        %v1366 = vunpack.c.l.b16 %v1330
        %v1367 = vunpack.c.l.b16 %v1331
        %v1368 = vunpack.c.l.b16 %v1332
        %v1369 = vunpack.c.l.b16 %v1333
        %v1370 = vunpack.c.l.b16 %v1334
        %v1371 = vunpack.c.l.b16 %v1335
        %v1372 = vunpack.c.l.b16 %v1336
        %v1373 = vunpack.c.l.b16 %v1337
        %v1374 = vunpack.c.l.b16 %v1338
        %v1375 = vunpack.c.l.b16 %v1339
        %v1376 = vunpack.c.l.b16 %v1340
        %v1377 = vunpack.c.l.b16 %v1341
        %v1378 = vunpack.c.l.b16 %v1342
        %v1379 = vunpack.c.l.b16 %v1343
        %v1380 = vpack.c.b16 %v1365, %v1364
        %v1381 = vpack.c.b16 %v1367, %v1366
        %v1382 = vpack.c.b16 %v1369, %v1368
        %v1383 = vpack.c.b16 %v1371, %v1370
        %v1384 = vpack.c.b16 %v1373, %v1372
        %v1385 = vpack.c.b16 %v1375, %v1374
        %v1386 = vpack.c.b16 %v1377, %v1376
        %v1387 = vpack.c.b16 %v1379, %v1378
        %1396 = vmatpush.bf16.msra.mxu0 %v1387
        %1397 = vmatpush.bf16.msra.mxu0 %v1386
        %1398 = vmatpush.bf16.msra.mxu0 %v1385
        %1399 = vmatpush.bf16.msra.mxu0 %v1384
        %1400 = vmatpush.bf16.msra.mxu0 %v1383
        %1401 = vmatpush.bf16.msra.mxu0 %v1382
        %1402 = vmatpush.bf16.msra.mxu0 %v1381
        %1403 = vmatpush.bf16.msra.mxu0 %v1380
        %1404 = vmatmul.bf16.gmra.mxu0 %v1346
        %v1405 = vpop.f32.mrf.mxu0
        %v1406 = vadd.f32 0.0, %v1405
        %v1407 = vpop.f32.mrf.mxu0
        %v1408 = vadd.f32 0.0, %v1407
        %1409 = vdwg.mxu0
        %v1410 = vadd.f32 %v1293, %v1406
        %v1411 = vadd.f32 %v1294, %v1408
        %v1412 = vld [vmem:[%s1205] sm:$0xe]
        %v1413 = vld [vmem:[%s1205 + $0x8] sm:$0xe]
        %v1418 = vrot.slane %v1412, 5
        %v1419 = vrot.slane %v1418, 4
        %v1420 = vrot.slane %v1296, 5
        %v1421 = vsel %vm1111, %v1419, %v1420
        %v1422 = vrot.slane %v1413, 5
        %v1423 = vrot.slane %v1422, 4
        %v1424 = vrot.slane %v1298, 5
        %v1425 = vsel %vm1111, %v1423, %v1424
        %s1426 = scalar_lea.vmem [#allocation3], 320
        %v1427 = vld [vmem:[%s1426] sm:$0xf]
        %v1428 = vld [vmem:[%s1426 + $0x4] sm:$0xf]
        %v1429 = vld [vmem:[%s1426 + $0x8] sm:$0xf]
        %v1430 = vld [vmem:[%s1426 + $0xc] sm:$0xf]
        %v1431 = vld [vmem:[%s1426 + $0x10] sm:$0xf]
        %v1432 = vld [vmem:[%s1426 + $0x14] sm:$0xf]
        %v1433 = vld [vmem:[%s1426 + $0x18] sm:$0xf]
        %v1434 = vld [vmem:[%s1426 + $0x1c] sm:$0xf]
        %v1435 = vld [vmem:[%s1426 + $0x20] sm:$0xf]
        %v1436 = vld [vmem:[%s1426 + $0x24] sm:$0xf]
        %v1437 = vld [vmem:[%s1426 + $0x28] sm:$0xf]
        %v1438 = vld [vmem:[%s1426 + $0x2c] sm:$0xf]
        %v1439 = vld [vmem:[%s1426 + $0x30] sm:$0xf]
        %v1440 = vld [vmem:[%s1426 + $0x34] sm:$0xf]
        %v1441 = vld [vmem:[%s1426 + $0x38] sm:$0xf]
        %v1442 = vld [vmem:[%s1426 + $0x3c] sm:$0xf]
        %v1443 = vunpack.c.l.b16 %v1421
        %v1444 = vunpack.c.l.b16 %v1425
        %v1445 = vpack.c.b16 %v1444, %v1443
        %v1463 = vunpack.c.l.b16 %v1427
        %v1464 = vunpack.c.l.b16 %v1428
        %v1465 = vunpack.c.l.b16 %v1429
        %v1466 = vunpack.c.l.b16 %v1430
        %v1467 = vunpack.c.l.b16 %v1431
        %v1468 = vunpack.c.l.b16 %v1432
        %v1469 = vunpack.c.l.b16 %v1433
        %v1470 = vunpack.c.l.b16 %v1434
        %v1471 = vunpack.c.l.b16 %v1435
        %v1472 = vunpack.c.l.b16 %v1436
        %v1473 = vunpack.c.l.b16 %v1437
        %v1474 = vunpack.c.l.b16 %v1438
        %v1475 = vunpack.c.l.b16 %v1439
        %v1476 = vunpack.c.l.b16 %v1440
        %v1477 = vunpack.c.l.b16 %v1441
        %v1478 = vunpack.c.l.b16 %v1442
        %v1479 = vpack.c.b16 %v1464, %v1463
        %v1480 = vpack.c.b16 %v1466, %v1465
        %v1481 = vpack.c.b16 %v1468, %v1467
        %v1482 = vpack.c.b16 %v1470, %v1469
        %v1483 = vpack.c.b16 %v1472, %v1471
        %v1484 = vpack.c.b16 %v1474, %v1473
        %v1485 = vpack.c.b16 %v1476, %v1475
        %v1486 = vpack.c.b16 %v1478, %v1477
        %1495 = vmatpush.bf16.msra.mxu0 %v1486
        %1496 = vmatpush.bf16.msra.mxu0 %v1485
        %1497 = vmatpush.bf16.msra.mxu0 %v1484
        %1498 = vmatpush.bf16.msra.mxu0 %v1483
        %1499 = vmatpush.bf16.msra.mxu0 %v1482
        %1500 = vmatpush.bf16.msra.mxu0 %v1481
        %1501 = vmatpush.bf16.msra.mxu0 %v1480
        %1502 = vmatpush.bf16.msra.mxu0 %v1479
        %1503 = vmatmul.bf16.gmra.mxu0 %v1445
        %v1504 = vpop.f32.mrf.mxu0
        %v1505 = vadd.f32 0.0, %v1504
        %v1506 = vpop.f32.mrf.mxu0
        %v1507 = vadd.f32 0.0, %v1506
        %1508 = vdwg.mxu0
        %v1509 = vadd.f32 %v1410, %v1505
        %v1510 = vadd.f32 %v1411, %v1507
        %s1511 = scalar_lea.vmem [#allocation2], 16
        %v1512 = vld [vmem:[%s1511] sm:$0xf]
        %v1513 = vld [vmem:[%s1511 + $0x8] sm:$0xf]
        %s1514 = scalar_lea.vmem [#allocation3], 384
        %v1515 = vld [vmem:[%s1514] sm:$0xf]
        %v1516 = vld [vmem:[%s1514 + $0x4] sm:$0xf]
        %v1517 = vld [vmem:[%s1514 + $0x8] sm:$0xf]
        %v1518 = vld [vmem:[%s1514 + $0xc] sm:$0xf]
        %v1519 = vld [vmem:[%s1514 + $0x10] sm:$0xf]
        %v1520 = vld [vmem:[%s1514 + $0x14] sm:$0xf]
        %v1521 = vld [vmem:[%s1514 + $0x18] sm:$0xf]
        %v1522 = vld [vmem:[%s1514 + $0x1c] sm:$0xf]
        %v1523 = vld [vmem:[%s1514 + $0x20] sm:$0xf]
        %v1524 = vld [vmem:[%s1514 + $0x24] sm:$0xf]
        %v1525 = vld [vmem:[%s1514 + $0x28] sm:$0xf]
        %v1526 = vld [vmem:[%s1514 + $0x2c] sm:$0xf]
        %v1527 = vld [vmem:[%s1514 + $0x30] sm:$0xf]
        %v1528 = vld [vmem:[%s1514 + $0x34] sm:$0xf]
        %v1529 = vld [vmem:[%s1514 + $0x38] sm:$0xf]
        %v1530 = vld [vmem:[%s1514 + $0x3c] sm:$0xf]
        %v1533 = vunpack.c.l.b16 %v1512
        %v1534 = vunpack.c.l.b16 %v1513
        %v1535 = vpack.c.b16 %v1534, %v1533
        %v1553 = vunpack.c.l.b16 %v1515
        %v1554 = vunpack.c.l.b16 %v1516
        %v1555 = vunpack.c.l.b16 %v1517
        %v1556 = vunpack.c.l.b16 %v1518
        %v1557 = vunpack.c.l.b16 %v1519
        %v1558 = vunpack.c.l.b16 %v1520
        %v1559 = vunpack.c.l.b16 %v1521
        %v1560 = vunpack.c.l.b16 %v1522
        %v1561 = vunpack.c.l.b16 %v1523
        %v1562 = vunpack.c.l.b16 %v1524
        %v1563 = vunpack.c.l.b16 %v1525
        %v1564 = vunpack.c.l.b16 %v1526
        %v1565 = vunpack.c.l.b16 %v1527
        %v1566 = vunpack.c.l.b16 %v1528
        %v1567 = vunpack.c.l.b16 %v1529
        %v1568 = vunpack.c.l.b16 %v1530
        %v1569 = vpack.c.b16 %v1554, %v1553
        %v1570 = vpack.c.b16 %v1556, %v1555
        %v1571 = vpack.c.b16 %v1558, %v1557
        %v1572 = vpack.c.b16 %v1560, %v1559
        %v1573 = vpack.c.b16 %v1562, %v1561
        %v1574 = vpack.c.b16 %v1564, %v1563
        %v1575 = vpack.c.b16 %v1566, %v1565
        %v1576 = vpack.c.b16 %v1568, %v1567
        %1585 = vmatpush.bf16.msra.mxu0 %v1576
        %1586 = vmatpush.bf16.msra.mxu0 %v1575
        %1587 = vmatpush.bf16.msra.mxu0 %v1574
        %1588 = vmatpush.bf16.msra.mxu0 %v1573
        %1589 = vmatpush.bf16.msra.mxu0 %v1572
        %1590 = vmatpush.bf16.msra.mxu0 %v1571
        %1591 = vmatpush.bf16.msra.mxu0 %v1570
        %1592 = vmatpush.bf16.msra.mxu0 %v1569
        %1593 = vmatmul.bf16.gmra.mxu0 %v1535
        %v1594 = vpop.f32.mrf.mxu0
        %v1595 = vadd.f32 0.0, %v1594
        %v1596 = vpop.f32.mrf.mxu0
        %v1597 = vadd.f32 0.0, %v1596
        %1598 = vdwg.mxu0
        %v1599 = vadd.f32 %v1509, %v1595
        %v1600 = vadd.f32 %v1510, %v1597
        %v1601 = vld [vmem:[%s1511] sm:$0xf]
        %v1602 = vld [vmem:[%s1511 + $0x4] sm:$0x1]
        %v1603 = vld [vmem:[%s1511 + $0x8] sm:$0xf]
        %v1604 = vld [vmem:[%s1511 + $0xc] sm:$0x1]
        %v1606 = vshrl.u32 %v1601, 16
        %v1608 = vrot.slane %v1606, 4
        %v1609 = vshll.u32 %v1601, 16
        %v1611 = vrot.slane %v1609, 5
        %v1612 = vor.u32 %v1608, %v1611
        %v1613 = vrot.slane %v1612, 4
        %v1615 = vshll.u32 %v1602, 16
        %v1617 = vrot.slane %v1615, 5
        %v1618 = vsel %vm351, %v1613, %v1617
        %v1620 = vshrl.u32 %v1603, 16
        %v1622 = vrot.slane %v1620, 4
        %v1623 = vshll.u32 %v1603, 16
        %v1625 = vrot.slane %v1623, 5
        %v1626 = vor.u32 %v1622, %v1625
        %v1627 = vrot.slane %v1626, 4
        %v1629 = vshll.u32 %v1604, 16
        %v1631 = vrot.slane %v1629, 5
        %v1632 = vsel %vm351, %v1627, %v1631
        %s1633 = scalar_lea.vmem [#allocation3], 448
        %v1634 = vld [vmem:[%s1633] sm:$0xf]
        %v1635 = vld [vmem:[%s1633 + $0x4] sm:$0xf]
        %v1636 = vld [vmem:[%s1633 + $0x8] sm:$0xf]
        %v1637 = vld [vmem:[%s1633 + $0xc] sm:$0xf]
        %v1638 = vld [vmem:[%s1633 + $0x10] sm:$0xf]
        %v1639 = vld [vmem:[%s1633 + $0x14] sm:$0xf]
        %v1640 = vld [vmem:[%s1633 + $0x18] sm:$0xf]
        %v1641 = vld [vmem:[%s1633 + $0x1c] sm:$0xf]
        %v1642 = vld [vmem:[%s1633 + $0x20] sm:$0xf]
        %v1643 = vld [vmem:[%s1633 + $0x24] sm:$0xf]
        %v1644 = vld [vmem:[%s1633 + $0x28] sm:$0xf]
        %v1645 = vld [vmem:[%s1633 + $0x2c] sm:$0xf]
        %v1646 = vld [vmem:[%s1633 + $0x30] sm:$0xf]
        %v1647 = vld [vmem:[%s1633 + $0x34] sm:$0xf]
        %v1648 = vld [vmem:[%s1633 + $0x38] sm:$0xf]
        %v1649 = vld [vmem:[%s1633 + $0x3c] sm:$0xf]
        %v1650 = vunpack.c.l.b16 %v1618
        %v1651 = vunpack.c.l.b16 %v1632
        %v1652 = vpack.c.b16 %v1651, %v1650
        %v1670 = vunpack.c.l.b16 %v1634
        %v1671 = vunpack.c.l.b16 %v1635
        %v1672 = vunpack.c.l.b16 %v1636
        %v1673 = vunpack.c.l.b16 %v1637
        %v1674 = vunpack.c.l.b16 %v1638
        %v1675 = vunpack.c.l.b16 %v1639
        %v1676 = vunpack.c.l.b16 %v1640
        %v1677 = vunpack.c.l.b16 %v1641
        %v1678 = vunpack.c.l.b16 %v1642
        %v1679 = vunpack.c.l.b16 %v1643
        %v1680 = vunpack.c.l.b16 %v1644
        %v1681 = vunpack.c.l.b16 %v1645
        %v1682 = vunpack.c.l.b16 %v1646
        %v1683 = vunpack.c.l.b16 %v1647
        %v1684 = vunpack.c.l.b16 %v1648
        %v1685 = vunpack.c.l.b16 %v1649
        %v1686 = vpack.c.b16 %v1671, %v1670
        %v1687 = vpack.c.b16 %v1673, %v1672
        %v1688 = vpack.c.b16 %v1675, %v1674
        %v1689 = vpack.c.b16 %v1677, %v1676
        %v1690 = vpack.c.b16 %v1679, %v1678
        %v1691 = vpack.c.b16 %v1681, %v1680
        %v1692 = vpack.c.b16 %v1683, %v1682
        %v1693 = vpack.c.b16 %v1685, %v1684
        %1702 = vmatpush.bf16.msra.mxu0 %v1693
        %1703 = vmatpush.bf16.msra.mxu0 %v1692
        %1704 = vmatpush.bf16.msra.mxu0 %v1691
        %1705 = vmatpush.bf16.msra.mxu0 %v1690
        %1706 = vmatpush.bf16.msra.mxu0 %v1689
        %1707 = vmatpush.bf16.msra.mxu0 %v1688
        %1708 = vmatpush.bf16.msra.mxu0 %v1687
        %1709 = vmatpush.bf16.msra.mxu0 %v1686
        %1710 = vmatmul.bf16.gmra.mxu0 %v1652
        %v1711 = vpop.f32.mrf.mxu0
        %v1712 = vadd.f32 0.0, %v1711
        %v1713 = vpop.f32.mrf.mxu0
        %v1714 = vadd.f32 0.0, %v1713
        %1715 = vdwg.mxu0
        %v1716 = vadd.f32 %v1599, %v1712
        %v1717 = vadd.f32 %v1600, %v1714
        %v1718 = vld [vmem:[%s1511] sm:$0xe]
        %v1719 = vld [vmem:[%s1511 + $0x8] sm:$0xe]
        %v1724 = vrot.slane %v1718, 5
        %v1725 = vrot.slane %v1724, 4
        %v1726 = vrot.slane %v1602, 5
        %v1727 = vsel %vm1111, %v1725, %v1726
        %v1728 = vrot.slane %v1719, 5
        %v1729 = vrot.slane %v1728, 4
        %v1730 = vrot.slane %v1604, 5
        %v1731 = vsel %vm1111, %v1729, %v1730
        %s1732 = scalar_lea.vmem [#allocation3], 512
        %v1733 = vld [vmem:[%s1732] sm:$0xf]
        %v1734 = vld [vmem:[%s1732 + $0x4] sm:$0xf]
        %v1735 = vld [vmem:[%s1732 + $0x8] sm:$0xf]
        %v1736 = vld [vmem:[%s1732 + $0xc] sm:$0xf]
        %v1737 = vld [vmem:[%s1732 + $0x10] sm:$0xf]
        %v1738 = vld [vmem:[%s1732 + $0x14] sm:$0xf]
        %v1739 = vld [vmem:[%s1732 + $0x18] sm:$0xf]
        %v1740 = vld [vmem:[%s1732 + $0x1c] sm:$0xf]
        %v1741 = vld [vmem:[%s1732 + $0x20] sm:$0xf]
        %v1742 = vld [vmem:[%s1732 + $0x24] sm:$0xf]
        %v1743 = vld [vmem:[%s1732 + $0x28] sm:$0xf]
        %v1744 = vld [vmem:[%s1732 + $0x2c] sm:$0xf]
        %v1745 = vld [vmem:[%s1732 + $0x30] sm:$0xf]
        %v1746 = vld [vmem:[%s1732 + $0x34] sm:$0xf]
        %v1747 = vld [vmem:[%s1732 + $0x38] sm:$0xf]
        %v1748 = vld [vmem:[%s1732 + $0x3c] sm:$0xf]
        %v1749 = vunpack.c.l.b16 %v1727
        %v1750 = vunpack.c.l.b16 %v1731
        %v1751 = vpack.c.b16 %v1750, %v1749
        %v1769 = vunpack.c.l.b16 %v1733
        %v1770 = vunpack.c.l.b16 %v1734
        %v1771 = vunpack.c.l.b16 %v1735
        %v1772 = vunpack.c.l.b16 %v1736
        %v1773 = vunpack.c.l.b16 %v1737
        %v1774 = vunpack.c.l.b16 %v1738
        %v1775 = vunpack.c.l.b16 %v1739
        %v1776 = vunpack.c.l.b16 %v1740
        %v1777 = vunpack.c.l.b16 %v1741
        %v1778 = vunpack.c.l.b16 %v1742
        %v1779 = vunpack.c.l.b16 %v1743
        %v1780 = vunpack.c.l.b16 %v1744
        %v1781 = vunpack.c.l.b16 %v1745
        %v1782 = vunpack.c.l.b16 %v1746
        %v1783 = vunpack.c.l.b16 %v1747
        %v1784 = vunpack.c.l.b16 %v1748
        %v1785 = vpack.c.b16 %v1770, %v1769
        %v1786 = vpack.c.b16 %v1772, %v1771
        %v1787 = vpack.c.b16 %v1774, %v1773
        %v1788 = vpack.c.b16 %v1776, %v1775
        %v1789 = vpack.c.b16 %v1778, %v1777
        %v1790 = vpack.c.b16 %v1780, %v1779
        %v1791 = vpack.c.b16 %v1782, %v1781
        %v1792 = vpack.c.b16 %v1784, %v1783
        %1801 = vmatpush.bf16.msra.mxu0 %v1792
        %1802 = vmatpush.bf16.msra.mxu0 %v1791
        %1803 = vmatpush.bf16.msra.mxu0 %v1790
        %1804 = vmatpush.bf16.msra.mxu0 %v1789
        %1805 = vmatpush.bf16.msra.mxu0 %v1788
        %1806 = vmatpush.bf16.msra.mxu0 %v1787
        %1807 = vmatpush.bf16.msra.mxu0 %v1786
        %1808 = vmatpush.bf16.msra.mxu0 %v1785
        %1809 = vmatmul.bf16.gmra.mxu0 %v1751
        %v1810 = vpop.f32.mrf.mxu0
        %v1811 = vadd.f32 0.0, %v1810
        %v1812 = vpop.f32.mrf.mxu0
        %v1813 = vadd.f32 0.0, %v1812
        %1814 = vdwg.mxu0
        %v1815 = vadd.f32 %v1716, %v1811
        %v1816 = vadd.f32 %v1717, %v1813
        %v1817 = vld [vmem:[%s4] sm:$0x1]
        %v1819 = vperm.slane %v1817, 0
        %v1821 = vadd.f32 %v1815, %v1819
        %v1822 = vadd.f32 %v1816, %v1819
        %v1823 = vld [vmem:[%s5] sm:$0xf]
        %v1824 = vld [vmem:[%s5 + $0x4] sm:$0xf]
        %v1825 = vld [vmem:[%s5 + $0x8] sm:$0xf]
        %v1826 = vld [vmem:[%s5 + $0xc] sm:$0xf]
        %v1827 = vld [vmem:[%s5 + $0x10] sm:$0xf]
        %v1828 = vld [vmem:[%s5 + $0x14] sm:$0xf]
        %v1829 = vld [vmem:[%s5 + $0x18] sm:$0xf]
        %v1830 = vld [vmem:[%s5 + $0x1c] sm:$0xf]
        %v1831 = vld [vmem:[%s5 + $0x20] sm:$0xf]
        %v1832 = vld [vmem:[%s5 + $0x24] sm:$0xf]
        %v1833 = vld [vmem:[%s5 + $0x28] sm:$0xf]
        %v1834 = vld [vmem:[%s5 + $0x2c] sm:$0xf]
        %v1835 = vld [vmem:[%s5 + $0x30] sm:$0xf]
        %v1836 = vld [vmem:[%s5 + $0x34] sm:$0xf]
        %v1837 = vld [vmem:[%s5 + $0x38] sm:$0xf]
        %v1838 = vld [vmem:[%s5 + $0x3c] sm:$0xf]
        %v1839 = vld [vmem:[%s6] sm:$0x1]
        %v1841 = vperm.slane %v1839, 0
        %v1859 = vunpack.c.l.b16 %v1823
        %v1860 = vunpack.c.l.b16 %v1824
        %v1861 = vunpack.c.l.b16 %v1825
        %v1862 = vunpack.c.l.b16 %v1826
        %v1863 = vunpack.c.l.b16 %v1827
        %v1864 = vunpack.c.l.b16 %v1828
        %v1865 = vunpack.c.l.b16 %v1829
        %v1866 = vunpack.c.l.b16 %v1830
        %v1867 = vunpack.c.l.b16 %v1831
        %v1868 = vunpack.c.l.b16 %v1832
        %v1869 = vunpack.c.l.b16 %v1833
        %v1870 = vunpack.c.l.b16 %v1834
        %v1871 = vunpack.c.l.b16 %v1835
        %v1872 = vunpack.c.l.b16 %v1836
        %v1873 = vunpack.c.l.b16 %v1837
        %v1874 = vunpack.c.l.b16 %v1838
        %v1875 = vpack.c.b16 %v1860, %v1859
        %v1876 = vpack.c.b16 %v1862, %v1861
        %v1877 = vpack.c.b16 %v1864, %v1863
        %v1878 = vpack.c.b16 %v1866, %v1865
        %v1879 = vpack.c.b16 %v1868, %v1867
        %v1880 = vpack.c.b16 %v1870, %v1869
        %v1881 = vpack.c.b16 %v1872, %v1871
        %v1882 = vpack.c.b16 %v1874, %v1873
        %1891 = vmatpush.bf16.msra.mxu0 %v1882
        %1892 = vmatpush.bf16.msra.mxu0 %v1881
        %1893 = vmatpush.bf16.msra.mxu0 %v1880
        %1894 = vmatpush.bf16.msra.mxu0 %v1879
        %1895 = vmatpush.bf16.msra.mxu0 %v1878
        %1896 = vmatpush.bf16.msra.mxu0 %v1877
        %1897 = vmatpush.bf16.msra.mxu0 %v1876
        %1898 = vmatpush.bf16.msra.mxu0 %v1875
        %1899 = vmatmul.bf16.gmra.mxu0 %v430
        %v1900 = vpop.f32.mrf.mxu0
        %v1901 = vadd.f32 %v1841, %v1900
        %v1902 = vpop.f32.mrf.mxu0
        %v1903 = vadd.f32 %v1841, %v1902
        %1904 = vdwg.mxu0
        %v1905 = vadd.f32 %v1821, %v1901
        %v1906 = vadd.f32 %v1822, %v1903
        %v1907 = vmax.f32 %v1905, 0.0
        %v1908 = vmax.f32 %v1906, 0.0
        %1909 = vst [vmem:[%s302] sm:$0xff] %v1907
        %1910 = vst [vmem:[%s302 + $0x8] sm:$0xff] %v1908
        %s1911 = sand.u32 %s196, 1
        %s1912 = scalar_lea.sflag [#allocation5], %s1911
        %s1913 = sand.u32 %s196, 1
        %s1914 = smul.addr %s1913, 16
        %s1915 = scalar_lea.vmem [#allocation6], %s1914
        // Predicated region
        $region61: #{tpu_custom_call.1} parent=47 // pred_check
          %p1916 = pneg %p206
        $region62: #{tpu_custom_call.1} parent=47 // pred_check_branch
          %1918 = sbr.rel (%p1916) target = $region64
        $region63: #{tpu_custom_call.1} parent=47 // pred_region
          %s1919 = smul.u32 2, %s27
          %1921 = vsyncadd %s1912, 0
          %s1922 = smul.addr %s26, 8
          %s1923 = sadd.s32 %s1919, %s1922
          %s1924 = smul.addr %s1923, 8
          %s1925 = scalar_lea.hbm %s7, %s1924
          %s1926 = sshll.u32 %s1915, 4
          %s1927 = int_to_ptr.vmem [resolvable:$true] %s1926
          %s1928 = sshll.u32 %s1925, 4
          %s1929 = int_to_ptr.hbm [resolvable:$true] %s1928
          %1934 = dma.vmem_to_hbm [thread:$0]  %s1927, 256, %s1929, %s1912, 128, 128, 8
        $region64: #{tpu_custom_call.1} parent=47 // pred_fallthru
          _
      $region48: #{tpu_custom_call.1} parent=5 // pred_fallthru
        _
      %p1935 = scmp.le.s32.totalorder 2, %s17
      // Predicated region
      $region65: #{tpu_custom_call.1} parent=5 // pred_check
        %p1936 = pneg %p1935
      $region66: #{tpu_custom_call.1} parent=5 // pred_check_branch
        %1938 = sbr.rel (%p1936) target = $region68
      $region67: #{tpu_custom_call.1} parent=5 // pred_region
        %s1939 = ssub.s32 %s17, 2
        // Predicated region
        $region69: #{tpu_custom_call.1} parent=67 // pred_check
          %p1940 = pneg %p212
        $region70: #{tpu_custom_call.1} parent=67 // pred_check_branch
          %1942 = sbr.rel (%p1940) target = $region72
        $region71: #{tpu_custom_call.1} parent=67 // pred_region
          %s1943 = sand.u32 %s197, 1
          %s1944 = scalar_lea.sflag [#allocation5], %s1943
          %s1945 = sand.u32 %s197, 1
          %s1946 = smul.addr %s1945, 16
          %s1947 = scalar_lea.vmem [#allocation6], %s1946
          %1949 = dma.done %s1944, 256
        $region72: #{tpu_custom_call.1} parent=67 // pred_fallthru
          _
      $region68: #{tpu_custom_call.1} parent=5 // pred_fallthru
        _
    $region6: #{tpu_custom_call.1} parent=1 // loop_footer
      %s21 = sadd.s32 1, %s17
    $region7: #{tpu_custom_call.1} parent=1 // loop_footer_branch
      %16 = sbr.rel target = $region3
    $region8: #{tpu_custom_call.1} parent=1 // loop_exit
      _
    %1950 = vsyncpa [#allocation4], 1
    %s1951 = scalar_lea.sflag [#allocation4], 1
    %1952 = vsyncpa %s1951, 1
    %1953 = vsyncpa [#allocation5], 1
    %s1954 = scalar_lea.sflag [#allocation5], 1
    %1955 = vsyncpa %s1954, 1

</llo_original>
